<compile_context>
chip_gen: v7x
topology: tpu7x:2x2x1
jax: 0.10.0
libtpu: 0.0.40
codegen_flags: <defaults>
</compile_context>

<pallas_src>
import functools

import numpy as np
import jax
import jax.numpy as jnp
from jax.experimental import pallas as pl
from jax.experimental.pallas import tpu as pltpu

# ----------------------- scaled-down ModelParams -----------------------------
P = dict(
    conv_ch=8,           # layer_width   (reference model: 16)
    emb_hidden_dim=32,   # reference: 256
    df_hidden_dim=32,    # reference: 256
    df_num_layers=3,
    df_order=2,
    nb_df=16,
    df_lookahead=0,
    gru_groups=1,
    group_shuffle=True,  # no-op when gru_groups == 1
)
# Stacking the GRU weights in one [L,Hg,3Hg] ref assumes emb_hidden == df_hidden
# (true for the reference ModelParams: both 256).
assert P["emb_hidden_dim"] == P["df_hidden_dim"]

NCOEF = P["nb_df"] * P["df_order"] * 2    # 64  (df_fc_out width)
NPAD = 128                                # lane-dense fused-fc output width
assert NCOEF + 1 <= NPAD

VMEM_LIMIT = 48 * 1024 * 1024             # safe on v5e/v6e (128 MiB) and v7x (64 MiB)


def _ceil_to(x, m):
    return ((x + m - 1) // m) * m


def _pick_block(n, target, unit):
    """Largest multiple-of-`unit` divisor of n that is <= target, preferring
    at least 2 blocks (so megacore / pipelining can engage)."""
    cands = [d for d in range(unit, min(n, target) + 1, unit) if n % d == 0]
    if not cands:
        return n
    smaller = [d for d in cands if d < n]
    return max(smaller) if smaller else max(cands)


HG = _ceil_to(P["df_hidden_dim"], 128)    # hidden width padded to lane multiple


# ------------------------------ Pallas kernels -------------------------------
def _sigmoid(x):
    # Exact sigmoid via a single tanh (one EUP pass, no approx reciprocal).
    return 0.5 * jnp.tanh(0.5 * x) + 0.5


def _gru_stack_kernel(x_ref, wih_ref, bih_ref, whh_ref, bhh_ref, c_ref,
                      h_scr, xg_scr, seq_scr, *, chunk, bblk, hg, n_layers):
    """Stacked GRU (GroupedGRU with groups=1), output = sum over layer outputs
    (add_outputs=True), PyTorch gate semantics, h0 = 0.

    Grid: (batch blocks [parallel], time chunks [arbitrary]).
    x_ref:   [chunk, bblk, hg]     time-chunk of (lane-padded) inputs
    wih_ref: [L, hg, 3*hg] bf16    gate bands r|z|n at 128-aligned lane offsets
    bih_ref: [L, 1, 3*hg]  f32
    whh_ref: [L, hg, 3*hg] bf16
    bhh_ref: [L, 1, 3*hg]  f32
    c_ref:   [chunk, bblk, hg]     sum of per-layer output sequences
    h_scr:   [L, bblk, hg]         hidden state carried across time chunks
    """
    # Zero the carried hidden state at the start of every time sweep.
    @pl.when(pl.program_id(1) == 0)
    def _():
        h_scr[...] = jnp.zeros_like(h_scr)

    for layer in range(n_layers):                  # static: weights differ
        inp = x_ref[...] if layer == 0 else seq_scr[...]
        inp2 = inp.reshape(chunk * bblk, hg).astype(jnp.bfloat16)
        # One input-gate matmul for the whole chunk of this layer (bf16 MXU,
        # f32 accumulation).
        xg = jnp.dot(inp2, wih_ref[layer], preferred_element_type=jnp.float32)
        xg_scr[...] = (xg + bih_ref[layer]).reshape(chunk, bblk, 3 * hg)

        whh = whh_ref[layer]                        # [hg, 3hg] bf16, hoisted
        bhh = bhh_ref[layer]                        # [1, 3hg]  f32
        h = h_scr[layer]                            # [bblk, hg] f32 carried state
        for t in range(chunk):                      # unrolled (chunk <= 16)
            g = xg_scr[t]                           # [bblk, 3hg]
            hh = jnp.dot(h.astype(jnp.bfloat16), whh,
                         preferred_element_type=jnp.float32) + bhh
            r = _sigmoid(g[:, 0:hg] + hh[:, 0:hg])
            z = _sigmoid(g[:, hg:2 * hg] + hh[:, hg:2 * hg])
            n = jnp.tanh(g[:, 2 * hg:3 * hg] + r * hh[:, 2 * hg:3 * hg])
            h = (1.0 - z) * n + z * h
            seq_scr[t] = h                          # unmasked (8,128) tile store
        h_scr[layer] = h

        if layer == 0:
            c_ref[...] = seq_scr[...]
        else:
            c_ref[...] += seq_scr[...]


def _convp_stats_kernel(x_ref, w_ref, s1_ref, s2_ref):
    """Per-channel sum / sum-of-squares of the folded 1x1 conv output,
    accumulated across an 'arbitrary' grid over the sample (lane) axis.
    x_ref [Cin, ntile], w_ref [Cout, Cin], s1/s2 [Cout, 1] accumulators."""
    @pl.when(pl.program_id(0) == 0)
    def _():
        s1_ref[...] = jnp.zeros_like(s1_ref)
        s2_ref[...] = jnp.zeros_like(s2_ref)
    y = jnp.dot(w_ref[...], x_ref[...], preferred_element_type=jnp.float32)
    s1_ref[...] += jnp.sum(y, axis=1, keepdims=True)
    s2_ref[...] += jnp.sum(y * y, axis=1, keepdims=True)


def _convp_norm_kernel(x_ref, w_ref, s1_ref, s2_ref, g_ref, b_ref, o_ref,
                       *, inv_n, eps):
    """Folded conv -> BatchNorm (batch statistics from s1/s2) -> ReLU, per
    sample tile ('parallel' grid).  Padded samples are zero (bias-free conv)
    so stats divided by the real sample count stay exact."""
    y = jnp.dot(w_ref[...], x_ref[...], preferred_element_type=jnp.float32)
    mean = s1_ref[...] * inv_n
    var = s2_ref[...] * inv_n - mean * mean
    scale = g_ref[...] * jax.lax.rsqrt(var + eps)
    shift = b_ref[...] - mean * scale
    o_ref[...] = jnp.maximum(y * scale + shift, 0.0)


def _df_out_kernel(c_ref, w_ref, b_ref, p_ref, o_ref, *, n_coef, n_ch):
    """Fused df_fc_out (tanh) + df_fc_a (sigmoid) + c0p add.

    c_ref [rblk, Hg] f32, w_ref [Hg, NPAD] bf16 (cols [0,n_coef) tanh head,
    col n_coef sigmoid head, rest zero pad), b_ref [1, NPAD] f32,
    p_ref [n_ch, rblk, F] f32 (df_convp output, reordered to ch*F+f columns
    in-kernel), o_ref [rblk, NPAD].
    """
    z = jnp.dot(c_ref[...].astype(jnp.bfloat16), w_ref[...],
                preferred_element_type=jnp.float32) + b_ref[...]
    col = jax.lax.broadcasted_iota(jnp.int32, z.shape, 1)
    is_coef = col < n_coef
    # Single tanh pass: tanh(z) for coef columns, 0.5*tanh(0.5 z)+0.5 (= exact
    # sigmoid) for the alpha column.
    t = jnp.tanh(jnp.where(is_coef, z, 0.5 * z))
    act = jnp.where(is_coef, t, 0.5 * t + 0.5)
    parts = [p_ref[ch] for ch in range(n_ch)]                 # each [rblk, F]
    parts.append(jnp.zeros((z.shape[0], z.shape[1] - n_coef), jnp.float32))
    p_full = jnp.concatenate(parts, axis=1)                   # [rblk, NPAD]
    o_ref[...] = act + p_full


# ------------------------------ parameter init -------------------------------
def _convp_groups(in_ch, out_ch, depthwise=True, complex_in=True):
    groups = min(in_ch, out_ch) if depthwise else 1
    if in_ch % groups != 0 or out_ch % groups != 0:
        groups = 1
    if complex_in and groups % 2 == 0:
        groups //= 2
    return groups


def init_df_decoder(seed=0):
    key = jax.random.PRNGKey(seed)

    def nxt():
        nonlocal key
        key, sub = jax.random.split(key)
        return sub

    H = P["df_hidden_dim"]
    I = P["emb_hidden_dim"]
    L = P["df_num_layers"]
    O = P["df_order"]
    cin = P["conv_ch"]
    cout = 2 * O

    # ---- df_gru: gate bands padded to 128-aligned lane offsets, bf16 -------
    def pad_gates_w(w):            # [in, 3H] -> [HG, 3HG]
        out = np.zeros((HG, 3 * HG), np.float32)
        for g in range(3):
            out[:w.shape[0], g * HG:g * HG + H] = w[:, g * H:(g + 1) * H]
        return out

    def pad_gates_b(b):            # [3H] -> [1, 3HG]
        out = np.zeros((1, 3 * HG), np.float32)
        for g in range(3):
            out[0, g * HG:g * HG + H] = b[g * H:(g + 1) * H]
        return out

    wih, bih, whh, bhh = [], [], [], []
    for l in range(L):
        in_dim = I if l == 0 else H
        wih.append(pad_gates_w(np.asarray(
            0.1 * jax.random.normal(nxt(), (in_dim, 3 * H), jnp.float32))))
        bih.append(pad_gates_b(np.asarray(
            0.05 * jax.random.normal(nxt(), (3 * H,), jnp.float32))))
        whh.append(pad_gates_w(np.asarray(
            0.1 * jax.random.normal(nxt(), (H, 3 * H), jnp.float32))))
        bhh.append(pad_gates_b(np.asarray(
            0.05 * jax.random.normal(nxt(), (3 * H,), jnp.float32))))
    wih = jnp.asarray(np.stack(wih), jnp.bfloat16)
    whh = jnp.asarray(np.stack(whh), jnp.bfloat16)
    bih = jnp.asarray(np.stack(bih), jnp.float32)
    bhh = jnp.asarray(np.stack(bhh), jnp.float32)

    # ---- df_convp: grouped 1x1 conv o 1x1 conv folded into one weight ------
    g = _convp_groups(cin, cout)
    cin_g, cout_g = cin // g, cout // g
    w_conv = np.asarray(0.1 * jax.random.normal(nxt(), (cout, cin_g), jnp.float32))
    wg_dense = np.zeros((cout, cin), np.float32)    # block-diagonal grouped weight
    for gi in range(g):
        wg_dense[gi * cout_g:(gi + 1) * cout_g, gi * cin_g:(gi + 1) * cin_g] = \
            w_conv[gi * cout_g:(gi + 1) * cout_g]
    if g > 1:
        w1x1 = np.asarray(0.1 * jax.random.normal(nxt(), (cout, cout), jnp.float32))
    else:   # convkxf adds no 1x1 conv when groups == 1
        w1x1 = np.eye(cout, dtype=np.float32)
    w_eff = jnp.asarray(w1x1 @ wg_dense, jnp.float32)   # fold the two linear maps
    bn_gamma = jnp.ones((cout, 1), jnp.float32)          # PyTorch BN init
    bn_beta = jnp.zeros((cout, 1), jnp.float32)

    # ---- df_fc_out (Tanh) + df_fc_a (Sigmoid), concatenated & lane padded ---
    w_out = np.asarray(0.1 * jax.random.normal(nxt(), (H, NCOEF), jnp.float32))
    b_out = np.asarray(0.05 * jax.random.normal(nxt(), (NCOEF,), jnp.float32))
    w_a = np.asarray(0.1 * jax.random.normal(nxt(), (H, 1), jnp.float32))
    b_a = np.asarray(0.05 * jax.random.normal(nxt(), (1,), jnp.float32))
    w_cat = np.zeros((HG, NPAD), np.float32)
    w_cat[:H, :NCOEF] = w_out
    w_cat[:H, NCOEF:NCOEF + 1] = w_a
    b_cat = np.zeros((1, NPAD), np.float32)
    b_cat[0, :NCOEF] = b_out
    b_cat[0, NCOEF] = b_a[0]

    return dict(wih=wih, bih=bih, whh=whh, bhh=bhh,
                w_eff=w_eff, bn_gamma=bn_gamma, bn_beta=bn_beta,
                w_cat=jnp.asarray(w_cat, jnp.bfloat16),
                b_cat=jnp.asarray(b_cat, jnp.float32))


# ------------------------------- forward pass --------------------------------
def df_decoder_forward(params, emb, c0):
    """DfDecoder.forward.
      emb: [B, T, emb_hidden_dim]
      c0 : [B, conv_ch, T, nb_df]
    returns (coefs [B, T, df_order, nb_df, 2], alpha [B, T, 1])."""
    B, T, I = emb.shape
    H = P["df_hidden_dim"]
    L = P["df_num_layers"]
    O = P["df_order"]
    F = P["nb_df"]
    cin = c0.shape[1]
    cout = 2 * O

    Bp = _ceil_to(max(B, 8), 8)           # batch padded to a full sublane
    B_BLK = 8                             # batch rows per (parallel) grid block
    rows_p = T * Bp
    chunk = _pick_block(T, 16, 1)         # time-chunk size carried via h_scr
    rblk = _pick_block(rows_p, 512, 8)    # large lane/sublane-dense K3 row tile
    Np = rows_p * F
    ntile = _pick_block(Np, 4096, 128)    # K2 sample-axis tile
    n_real = float(T * B * F)             # real (unpadded) BN sample count

    # ---- K1: GRU stack; grid (batch blocks || , time chunks ->) ------------
    x3 = jnp.transpose(emb, (1, 0, 2)).astype(jnp.float32)   # [T, B, I]
    x3 = jnp.pad(x3, ((0, 0), (0, Bp - B), (0, HG - I)))     # [T, Bp, HG]
    c3 = pl.pallas_call(
        functools.partial(_gru_stack_kernel,
                          chunk=chunk, bblk=B_BLK, hg=HG, n_layers=L),
        out_shape=jax.ShapeDtypeStruct((T, Bp, HG), jnp.float32),
        grid=(Bp // B_BLK, T // chunk),
        in_specs=[
            pl.BlockSpec((chunk, B_BLK, HG), lambda bb, tc: (tc, bb, 0)),
            pl.BlockSpec((L, HG, 3 * HG), lambda bb, tc: (0, 0, 0)),
            pl.BlockSpec((L, 1, 3 * HG), lambda bb, tc: (0, 0, 0)),
            pl.BlockSpec((L, HG, 3 * HG), lambda bb, tc: (0, 0, 0)),
            pl.BlockSpec((L, 1, 3 * HG), lambda bb, tc: (0, 0, 0)),
        ],
        out_specs=pl.BlockSpec((chunk, B_BLK, HG), lambda bb, tc: (tc, bb, 0)),
        scratch_shapes=[
            pltpu.VMEM((L, B_BLK, HG), jnp.float32),          # carried h per layer
            pltpu.VMEM((chunk, B_BLK, 3 * HG), jnp.float32),  # chunk input gates
            pltpu.VMEM((chunk, B_BLK, HG), jnp.float32),      # chunk layer output
        ],
        compiler_params=pltpu.CompilerParams(
            dimension_semantics=("parallel", "arbitrary"),
            vmem_limit_bytes=VMEM_LIMIT),
    )(x3, params["wih"], params["bih"], params["whh"], params["bhh"])

    # ---- K2: df_convp, tiled over the sample (lane) axis -------------------
    xc = jnp.transpose(c0, (1, 2, 0, 3)).astype(jnp.float32)   # [cin, T, B, F]
    xc = jnp.pad(xc, ((0, 0), (0, 0), (0, Bp - B), (0, 0))).reshape(cin, Np)

    s1, s2 = pl.pallas_call(
        _convp_stats_kernel,
        out_shape=(jax.ShapeDtypeStruct((cout, 1), jnp.float32),
                   jax.ShapeDtypeStruct((cout, 1), jnp.float32)),
        grid=(Np // ntile,),
        in_specs=[pl.BlockSpec((cin, ntile), lambda i: (0, i)),
                  pl.BlockSpec((cout, cin), lambda i: (0, 0))],
        out_specs=(pl.BlockSpec((cout, 1), lambda i: (0, 0)),
                   pl.BlockSpec((cout, 1), lambda i: (0, 0))),
        compiler_params=pltpu.CompilerParams(
            dimension_semantics=("arbitrary",), vmem_limit_bytes=VMEM_LIMIT),
    )(xc, params["w_eff"])

    c0p = pl.pallas_call(
        functools.partial(_convp_norm_kernel, inv_n=1.0 / n_real, eps=1e-5),
        out_shape=jax.ShapeDtypeStruct((cout, Np), jnp.float32),
        grid=(Np // ntile,),
        in_specs=[pl.BlockSpec((cin, ntile), lambda i: (0, i)),
                  pl.BlockSpec((cout, cin), lambda i: (0, 0)),
                  pl.BlockSpec((cout, 1), lambda i: (0, 0)),
                  pl.BlockSpec((cout, 1), lambda i: (0, 0)),
                  pl.BlockSpec((cout, 1), lambda i: (0, 0)),
                  pl.BlockSpec((cout, 1), lambda i: (0, 0))],
        out_specs=pl.BlockSpec((cout, ntile), lambda i: (0, i)),
        compiler_params=pltpu.CompilerParams(
            dimension_semantics=("parallel",), vmem_limit_bytes=VMEM_LIMIT),
    )(xc, params["w_eff"], s1, s2, params["bn_gamma"], params["bn_beta"])

    # ---- K3: fused df_fc_out + df_fc_a + c0p add, large parallel row blocks -
    c2 = c3.reshape(rows_p, HG)                      # contiguous, free
    c0p_3d = c0p.reshape(cout, rows_p, F)            # contiguous, free
    out = pl.pallas_call(
        functools.partial(_df_out_kernel, n_coef=NCOEF, n_ch=cout),
        out_shape=jax.ShapeDtypeStruct((rows_p, NPAD), jnp.float32),
        grid=(rows_p // rblk,),
        in_specs=[
            pl.BlockSpec((rblk, HG), lambda i: (i, 0)),
            pl.BlockSpec((HG, NPAD), lambda i: (0, 0)),
            pl.BlockSpec((1, NPAD), lambda i: (0, 0)),
            pl.BlockSpec((cout, rblk, F), lambda i: (0, i, 0)),
        ],
        out_specs=pl.BlockSpec((rblk, NPAD), lambda i: (i, 0)),
        compiler_params=pltpu.CompilerParams(
            dimension_semantics=("parallel",), vmem_limit_bytes=VMEM_LIMIT),
    )(c2, params["w_cat"], params["b_cat"], c0p_3d)

    # final view/transpose glue (matches c.view(b,t,O,2,F).transpose(3,4)),
    # dropping the zero-padded batch rows.
    coefs = out[:, :NCOEF].reshape(T, Bp, O, 2, F)[:, :B]
    coefs = jnp.transpose(coefs, (1, 0, 2, 4, 3))            # [B, T, O, nb_df, 2]
    alpha = jnp.transpose(out[:, NCOEF:NCOEF + 1].reshape(T, Bp, 1)[:, :B], (1, 0, 2))
    return coefs, alpha


# --------------------- pure-JAX reference (self-check) -----------------------
def _reference_forward(params, emb, c0):
    B, T, _ = emb.shape
    H = P["df_hidden_dim"]
    L = P["df_num_layers"]
    O = P["df_order"]
    F = P["nb_df"]
    cout = 2 * O

    x = jnp.transpose(emb, (1, 0, 2)).astype(jnp.float32)     # [T, B, H]
    c = jnp.zeros((T, B, H), jnp.float32)
    for l in range(L):
        wih = params["wih"][l].astype(jnp.float32)
        whh = params["whh"][l].astype(jnp.float32)
        bih = params["bih"][l][0]
        bhh = params["bhh"][l][0]
        h = jnp.zeros((B, H), jnp.float32)
        outs = []
        for t in range(T):
            gi = x[t] @ wih[:H] + bih
            gh = h @ whh[:H] + bhh
            r = jax.nn.sigmoid(gi[:, 0:H] + gh[:, 0:H])
            z = jax.nn.sigmoid(gi[:, HG:HG + H] + gh[:, HG:HG + H])
            n = jnp.tanh(gi[:, 2 * HG:2 * HG + H] + r * gh[:, 2 * HG:2 * HG + H])
            h = (1.0 - z) * n + z * h
            outs.append(h)
        x = jnp.stack(outs)
        c = c + x
    # df_convp
    y = jnp.einsum('oc,bctf->botf', params["w_eff"], c0.astype(jnp.float32))
    mean = jnp.mean(y, axis=(0, 2, 3), keepdims=True)
    var = jnp.mean((y - mean) ** 2, axis=(0, 2, 3), keepdims=True)
    y = (y - mean) * jax.lax.rsqrt(var + 1e-5) * params["bn_gamma"].reshape(1, cout, 1, 1) \
        + params["bn_beta"].reshape(1, cout, 1, 1)
    c0p = jnp.transpose(jnp.maximum(y, 0.0), (0, 2, 1, 3))    # [B, T, cout, F]
    # fc heads
    cbt = jnp.transpose(c, (1, 0, 2))                          # [B, T, H]
    w_cat = params["w_cat"].astype(jnp.float32)
    alpha = jax.nn.sigmoid(cbt @ w_cat[:H, NCOEF:NCOEF + 1] + params["b_cat"][0, NCOEF])
    coefs = jnp.tanh(cbt @ w_cat[:H, :NCOEF] + params["b_cat"][0, :NCOEF])
    coefs = coefs.reshape(B, T, cout, F) + c0p
    coefs = coefs.reshape(B, T, O, 2, F).transpose(0, 1, 2, 4, 3)
    return coefs, alpha


# ----------------------------------- main -------------------------------------
if __name__ == "__main__":
    params = init_df_decoder(seed=0)
    B, T = 2, 8
    k1, k2 = jax.random.split(jax.random.PRNGKey(0))
    emb = jax.random.normal(k1, (B, T, P["emb_hidden_dim"]), dtype=jnp.float32)
    c0 = jax.random.normal(k2, (B, P["conv_ch"], T, P["nb_df"]), dtype=jnp.float32)

    fwd = jax.jit(df_decoder_forward)
    coefs, alpha = jax.block_until_ready(fwd(params, emb, c0))

    assert coefs.shape == (B, T, P["df_order"], P["nb_df"], 2), coefs.shape
    assert alpha.shape == (B, T, 1), alpha.shape
    assert bool(jnp.all(jnp.isfinite(coefs)))
    assert bool(jnp.all(jnp.isfinite(alpha)))

    # loose-tolerance self-check against a plain-JAX f32 reference (bf16 is
    # only used on the matmul inputs, so differences stay small)
    ref_coefs, ref_alpha = _reference_forward(params, emb, c0)
    np.testing.assert_allclose(np.asarray(coefs), np.asarray(ref_coefs),
                               atol=8e-2, rtol=8e-2)
    np.testing.assert_allclose(np.asarray(alpha), np.asarray(ref_alpha),
                               atol=8e-2, rtol=8e-2)

    print("KERNEL_OK")
</pallas_src>

<mosaic_0001>
module attributes {stable_mosaic.version = 11 : i64} {
  func.func @_convp_stats_kernel(%arg0: i32, %arg1: memref<8x512xf32, #tpu.memory_space<vmem>>, %arg2: memref<4x8xf32, #tpu.memory_space<vmem>>, %arg3: memref<4x1xf32, #tpu.memory_space<vmem>>, %arg4: memref<4x1xf32, #tpu.memory_space<vmem>>) attributes {dimension_semantics = [#tpu.dimension_semantics<arbitrary>], iteration_bounds = array<i64: 2>, scalar_prefetch = 0 : i64, scratch_operands = 0 : i64, tpu.core_type = #tpu.core_type<tc>, window_params = [{transform_indices = @transform_0, window_bounds = array<i64: 8, 512>}, {pipeline_mode = #tpu.pipeline_mode<synchronous>, transform_indices = @transform_1, window_bounds = array<i64: 4, 8>}, {pipeline_mode = #tpu.pipeline_mode<synchronous>, transform_indices = @transform_2, window_bounds = array<i64: 4, 1>}, {pipeline_mode = #tpu.pipeline_mode<synchronous>, transform_indices = @transform_3, window_bounds = array<i64: 4, 1>}]} {
    %c0_i32 = arith.constant 0 : i32
    %0 = arith.cmpi eq, %arg0, %c0_i32 : i32
    %1 = arith.extui %0 : i1 to i32
    %c0_i32_0 = arith.constant 0 : i32
    %2 = arith.cmpi ne, %1, %c0_i32_0 : i32
    scf.if %2 {
      %cst_14 = arith.constant 0.000000e+00 : f32
      %17 = vector.broadcast %cst_14 : f32 to vector<4x1xf32>
      %c0_15 = arith.constant 0 : index
      %c0_16 = arith.constant 0 : index
      %18 = vector.load %arg3[%c0_15, %c0_16] : memref<4x1xf32, #tpu.memory_space<vmem>>, vector<4x1xf32>
      tpu.vector_store %arg3[%c0_15, %c0_16], %17 {strides = array<i32>} : memref<4x1xf32, #tpu.memory_space<vmem>>, vector<4x1xf32>,
      %cst_17 = arith.constant 0.000000e+00 : f32
      %19 = vector.broadcast %cst_17 : f32 to vector<4x1xf32>
      %c0_18 = arith.constant 0 : index
      %c0_19 = arith.constant 0 : index
      %20 = vector.load %arg4[%c0_18, %c0_19] : memref<4x1xf32, #tpu.memory_space<vmem>>, vector<4x1xf32>
      tpu.vector_store %arg4[%c0_18, %c0_19], %19 {strides = array<i32>} : memref<4x1xf32, #tpu.memory_space<vmem>>, vector<4x1xf32>,
    } else {
    }
    %c0 = arith.constant 0 : index
    %c0_1 = arith.constant 0 : index
    %3 = vector.load %arg2[%c0, %c0_1] : memref<4x8xf32, #tpu.memory_space<vmem>>, vector<4x8xf32>
    %c0_2 = arith.constant 0 : index
    %c0_3 = arith.constant 0 : index
    %4 = vector.load %arg1[%c0_2, %c0_3] : memref<8x512xf32, #tpu.memory_space<vmem>>, vector<8x512xf32>
    %cst = arith.constant dense<0.000000e+00> : vector<4x512xf32>
    %5 = tpu.matmul %3, %4, %cst {dimension_numbers = #tpu.dot_dimension_numbers<[1], [0], [0], [1], [0, 0, 1, 1], [], []>} : vector<4x8xf32>, vector<8x512xf32>, vector<4x512xf32> -> vector<4x512xf32>
    %c0_4 = arith.constant 0 : index
    %c0_5 = arith.constant 0 : index
    %6 = vector.load %arg3[%c0_4, %c0_5] : memref<4x1xf32, #tpu.memory_space<vmem>>, vector<4x1xf32>
    %cst_6 = arith.constant dense<0.000000e+00> : vector<4xf32>
    %7 = vector.multi_reduction <add>, %5, %cst_6 [1] : vector<4x512xf32> to vector<4xf32>
    %8 = vector.shape_cast %7 : vector<4xf32> to vector<4x1xf32>
    %9 = arith.addf %6, %8 : vector<4x1xf32>
    %c0_7 = arith.constant 0 : index
    %c0_8 = arith.constant 0 : index
    %10 = vector.load %arg3[%c0_7, %c0_8] : memref<4x1xf32, #tpu.memory_space<vmem>>, vector<4x1xf32>
    tpu.vector_store %arg3[%c0_7, %c0_8], %9 {strides = array<i32>} : memref<4x1xf32, #tpu.memory_space<vmem>>, vector<4x1xf32>,
    %c0_9 = arith.constant 0 : index
    %c0_10 = arith.constant 0 : index
    %11 = vector.load %arg4[%c0_9, %c0_10] : memref<4x1xf32, #tpu.memory_space<vmem>>, vector<4x1xf32>
    %12 = arith.mulf %5, %5 : vector<4x512xf32>
    %cst_11 = arith.constant dense<0.000000e+00> : vector<4xf32>
    %13 = vector.multi_reduction <add>, %12, %cst_11 [1] : vector<4x512xf32> to vector<4xf32>
    %14 = vector.shape_cast %13 : vector<4xf32> to vector<4x1xf32>
    %15 = arith.addf %11, %14 : vector<4x1xf32>
    %c0_12 = arith.constant 0 : index
    %c0_13 = arith.constant 0 : index
    %16 = vector.load %arg4[%c0_12, %c0_13] : memref<4x1xf32, #tpu.memory_space<vmem>>, vector<4x1xf32>
    tpu.vector_store %arg4[%c0_12, %c0_13], %15 {strides = array<i32>} : memref<4x1xf32, #tpu.memory_space<vmem>>, vector<4x1xf32>,
    return
  }
  func.func @transform_0(%arg0: i32) -> (i32, i32) {
    %c0_i32 = arith.constant 0 : i32
    %c0_i32_0 = arith.constant 0 : i32
    return %c0_i32, %arg0 : i32, i32
  }
  func.func @transform_1(%arg0: i32) -> (i32, i32) {
    %c0_i32 = arith.constant 0 : i32
    %c0_i32_0 = arith.constant 0 : i32
    %c0_i32_1 = arith.constant 0 : i32
    return %c0_i32, %c0_i32_0 : i32, i32
  }
  func.func @transform_2(%arg0: i32) -> (i32, i32) {
    %c0_i32 = arith.constant 0 : i32
    %c0_i32_0 = arith.constant 0 : i32
    %c0_i32_1 = arith.constant 0 : i32
    return %c0_i32, %c0_i32_0 : i32, i32
  }
  func.func @transform_3(%arg0: i32) -> (i32, i32) {
    %c0_i32 = arith.constant 0 : i32
    %c0_i32_0 = arith.constant 0 : i32
    %c0_i32_1 = arith.constant 0 : i32
    return %c0_i32, %c0_i32_0 : i32, i32
  }
}

module attributes {stable_mosaic.version = 11 : i64} {
  func.func @_convp_norm_kernel(%arg0: i32, %arg1: memref<8x512xf32, #tpu.memory_space<vmem>>, %arg2: memref<4x8xf32, #tpu.memory_space<vmem>>, %arg3: memref<4x1xf32, #tpu.memory_space<vmem>>, %arg4: memref<4x1xf32, #tpu.memory_space<vmem>>, %arg5: memref<4x1xf32, #tpu.memory_space<vmem>>, %arg6: memref<4x1xf32, #tpu.memory_space<vmem>>, %arg7: memref<4x512xf32, #tpu.memory_space<vmem>>) attributes {dimension_semantics = [#tpu.dimension_semantics<parallel>], iteration_bounds = array<i64: 2>, scalar_prefetch = 0 : i64, scratch_operands = 0 : i64, tpu.core_type = #tpu.core_type<tc>, window_params = [{transform_indices = @transform_0, window_bounds = array<i64: 8, 512>}, {pipeline_mode = #tpu.pipeline_mode<synchronous>, transform_indices = @transform_1, window_bounds = array<i64: 4, 8>}, {pipeline_mode = #tpu.pipeline_mode<synchronous>, transform_indices = @transform_2, window_bounds = array<i64: 4, 1>}, {pipeline_mode = #tpu.pipeline_mode<synchronous>, transform_indices = @transform_3, window_bounds = array<i64: 4, 1>}, {pipeline_mode = #tpu.pipeline_mode<synchronous>, transform_indices = @transform_4, window_bounds = array<i64: 4, 1>}, {pipeline_mode = #tpu.pipeline_mode<synchronous>, transform_indices = @transform_5, window_bounds = array<i64: 4, 1>}, {transform_indices = @transform_6, window_bounds = array<i64: 4, 512>}]} {
    %c0 = arith.constant 0 : index
    %c0_0 = arith.constant 0 : index
    %0 = vector.load %arg2[%c0, %c0_0] : memref<4x8xf32, #tpu.memory_space<vmem>>, vector<4x8xf32>
    %c0_1 = arith.constant 0 : index
    %c0_2 = arith.constant 0 : index
    %1 = vector.load %arg1[%c0_1, %c0_2] : memref<8x512xf32, #tpu.memory_space<vmem>>, vector<8x512xf32>
    %cst = arith.constant dense<0.000000e+00> : vector<4x512xf32>
    %2 = tpu.matmul %0, %1, %cst {dimension_numbers = #tpu.dot_dimension_numbers<[1], [0], [0], [1], [0, 0, 1, 1], [], []>} : vector<4x8xf32>, vector<8x512xf32>, vector<4x512xf32> -> vector<4x512xf32>
    %c0_3 = arith.constant 0 : index
    %c0_4 = arith.constant 0 : index
    %3 = vector.load %arg3[%c0_3, %c0_4] : memref<4x1xf32, #tpu.memory_space<vmem>>, vector<4x1xf32>
    %cst_5 = arith.constant 3.906250e-03 : f32
    %4 = vector.broadcast %cst_5 : f32 to vector<4x1xf32>
    %5 = arith.mulf %3, %4 : vector<4x1xf32>
    %c0_6 = arith.constant 0 : index
    %c0_7 = arith.constant 0 : index
    %6 = vector.load %arg4[%c0_6, %c0_7] : memref<4x1xf32, #tpu.memory_space<vmem>>, vector<4x1xf32>
    %cst_8 = arith.constant 3.906250e-03 : f32
    %7 = vector.broadcast %cst_8 : f32 to vector<4x1xf32>
    %8 = arith.mulf %6, %7 : vector<4x1xf32>
    %9 = arith.mulf %5, %5 : vector<4x1xf32>
    %10 = arith.subf %8, %9 : vector<4x1xf32>
    %c0_9 = arith.constant 0 : index
    %c0_10 = arith.constant 0 : index
    %11 = vector.load %arg5[%c0_9, %c0_10] : memref<4x1xf32, #tpu.memory_space<vmem>>, vector<4x1xf32>
    %cst_11 = arith.constant 9.99999974E-6 : f32
    %12 = vector.broadcast %cst_11 : f32 to vector<4x1xf32>
    %13 = arith.addf %10, %12 : vector<4x1xf32>
    %14 = math.rsqrt %13 : vector<4x1xf32>
    %15 = arith.mulf %11, %14 : vector<4x1xf32>
    %c0_12 = arith.constant 0 : index
    %c0_13 = arith.constant 0 : index
    %16 = vector.load %arg6[%c0_12, %c0_13] : memref<4x1xf32, #tpu.memory_space<vmem>>, vector<4x1xf32>
    %17 = arith.mulf %5, %15 : vector<4x1xf32>
    %18 = arith.subf %16, %17 : vector<4x1xf32>
    %19 = vector.broadcast %15 : vector<4x1xf32> to vector<4x512xf32>
    %20 = arith.mulf %2, %19 : vector<4x512xf32>
    %21 = vector.broadcast %18 : vector<4x1xf32> to vector<4x512xf32>
    %22 = arith.addf %20, %21 : vector<4x512xf32>
    %cst_14 = arith.constant 0.000000e+00 : f32
    %23 = vector.broadcast %cst_14 : f32 to vector<4x512xf32>
    %24 = arith.maximumf %22, %23 : vector<4x512xf32>
    %c0_15 = arith.constant 0 : index
    %c0_16 = arith.constant 0 : index
    %25 = vector.load %arg7[%c0_15, %c0_16] : memref<4x512xf32, #tpu.memory_space<vmem>>, vector<4x512xf32>
    tpu.vector_store %arg7[%c0_15, %c0_16], %24 {strides = array<i32>} : memref<4x512xf32, #tpu.memory_space<vmem>>, vector<4x512xf32>,
    return
  }
  func.func @transform_0(%arg0: i32) -> (i32, i32) {
    %c0_i32 = arith.constant 0 : i32
    %c0_i32_0 = arith.constant 0 : i32
    return %c0_i32, %arg0 : i32, i32
  }
  func.func @transform_1(%arg0: i32) -> (i32, i32) {
    %c0_i32 = arith.constant 0 : i32
    %c0_i32_0 = arith.constant 0 : i32
    %c0_i32_1 = arith.constant 0 : i32
    return %c0_i32, %c0_i32_0 : i32, i32
  }
  func.func @transform_2(%arg0: i32) -> (i32, i32) {
    %c0_i32 = arith.constant 0 : i32
    %c0_i32_0 = arith.constant 0 : i32
    %c0_i32_1 = arith.constant 0 : i32
    return %c0_i32, %c0_i32_0 : i32, i32
  }
  func.func @transform_3(%arg0: i32) -> (i32, i32) {
    %c0_i32 = arith.constant 0 : i32
    %c0_i32_0 = arith.constant 0 : i32
    %c0_i32_1 = arith.constant 0 : i32
    return %c0_i32, %c0_i32_0 : i32, i32
  }
  func.func @transform_4(%arg0: i32) -> (i32, i32) {
    %c0_i32 = arith.constant 0 : i32
    %c0_i32_0 = arith.constant 0 : i32
    %c0_i32_1 = arith.constant 0 : i32
    return %c0_i32, %c0_i32_0 : i32, i32
  }
  func.func @transform_5(%arg0: i32) -> (i32, i32) {
    %c0_i32 = arith.constant 0 : i32
    %c0_i32_0 = arith.constant 0 : i32
    %c0_i32_1 = arith.constant 0 : i32
    return %c0_i32, %c0_i32_0 : i32, i32
  }
  func.func @transform_6(%arg0: i32) -> (i32, i32) {
    %c0_i32 = arith.constant 0 : i32
    %c0_i32_0 = arith.constant 0 : i32
    return %c0_i32, %arg0 : i32, i32
  }
}

module attributes {stable_mosaic.version = 11 : i64} {
  func.func @_df_out_kernel(%arg0: i32, %arg1: memref<32x128xf32, #tpu.memory_space<vmem>>, %arg2: memref<128x128xbf16, #tpu.memory_space<vmem>>, %arg3: memref<1x128xf32, #tpu.memory_space<vmem>>, %arg4: memref<4x32x16xf32, #tpu.memory_space<vmem>>, %arg5: memref<32x128xf32, #tpu.memory_space<vmem>>) attributes {dimension_semantics = [#tpu.dimension_semantics<parallel>], iteration_bounds = array<i64: 2>, scalar_prefetch = 0 : i64, scratch_operands = 0 : i64, tpu.core_type = #tpu.core_type<tc>, window_params = [{transform_indices = @transform_0, window_bounds = array<i64: 32, 128>}, {pipeline_mode = #tpu.pipeline_mode<synchronous>, transform_indices = @transform_1, window_bounds = array<i64: 128, 128>}, {pipeline_mode = #tpu.pipeline_mode<synchronous>, transform_indices = @transform_2, window_bounds = array<i64: 1, 128>}, {transform_indices = @transform_3, window_bounds = array<i64: 4, 32, 16>}, {transform_indices = @transform_4, window_bounds = array<i64: 32, 128>}]} {
    %c0 = arith.constant 0 : index
    %c0_0 = arith.constant 0 : index
    %0 = vector.load %arg1[%c0, %c0_0] : memref<32x128xf32, #tpu.memory_space<vmem>>, vector<32x128xf32>
    %1 = arith.truncf %0 : vector<32x128xf32> to vector<32x128xbf16>
    %c0_1 = arith.constant 0 : index
    %c0_2 = arith.constant 0 : index
    %2 = vector.load %arg2[%c0_1, %c0_2] : memref<128x128xbf16, #tpu.memory_space<vmem>>, vector<128x128xbf16>
    %cst = arith.constant dense<0.000000e+00> : vector<32x128xf32>
    %3 = tpu.matmul %1, %2, %cst {dimension_numbers = #tpu.dot_dimension_numbers<[1], [0], [0], [1], [0, 0, 1, 1], [], []>} : vector<32x128xbf16>, vector<128x128xbf16>, vector<32x128xf32> -> vector<32x128xf32>
    %c0_3 = arith.constant 0 : index
    %c0_4 = arith.constant 0 : index
    %4 = vector.load %arg3[%c0_3, %c0_4] : memref<1x128xf32, #tpu.memory_space<vmem>>, vector<1x128xf32>
    %5 = vector.broadcast %4 : vector<1x128xf32> to vector<32x128xf32>
    %6 = arith.addf %3, %5 : vector<32x128xf32>
    %7 = tpu.iota {dimensions = array<i32: 1>} : vector<32x128xi32>
    %c64_i32 = arith.constant 64 : i32
    %8 = vector.broadcast %c64_i32 : i32 to vector<32x128xi32>
    %9 = arith.cmpi slt, %7, %8 : vector<32x128xi32>
    %cst_5 = arith.constant 5.000000e-01 : f32
    %10 = vector.broadcast %cst_5 : f32 to vector<32x128xf32>
    %11 = arith.mulf %10, %6 : vector<32x128xf32>
    %12 = arith.select %9, %6, %11 : vector<32x128xi1>, vector<32x128xf32>
    %13 = math.tanh %12 : vector<32x128xf32>
    %cst_6 = arith.constant 5.000000e-01 : f32
    %14 = vector.broadcast %cst_6 : f32 to vector<32x128xf32>
    %15 = arith.mulf %14, %13 : vector<32x128xf32>
    %cst_7 = arith.constant 5.000000e-01 : f32
    %16 = vector.broadcast %cst_7 : f32 to vector<32x128xf32>
    %17 = arith.addf %15, %16 : vector<32x128xf32>
    %18 = arith.select %9, %13, %17 : vector<32x128xi1>, vector<32x128xf32>
    %c0_8 = arith.constant 0 : index
    %c0_9 = arith.constant 0 : index
    %c0_10 = arith.constant 0 : index
    %19 = vector.load %arg4[%c0_8, %c0_9, %c0_10] : memref<4x32x16xf32, #tpu.memory_space<vmem>>, vector<1x32x16xf32>
    %20 = vector.shape_cast %19 : vector<1x32x16xf32> to vector<32x16xf32>
    %c1 = arith.constant 1 : index
    %c0_11 = arith.constant 0 : index
    %c0_12 = arith.constant 0 : index
    %21 = vector.load %arg4[%c1, %c0_11, %c0_12] : memref<4x32x16xf32, #tpu.memory_space<vmem>>, vector<1x32x16xf32>
    %22 = vector.shape_cast %21 : vector<1x32x16xf32> to vector<32x16xf32>
    %c2 = arith.constant 2 : index
    %c0_13 = arith.constant 0 : index
    %c0_14 = arith.constant 0 : index
    %23 = vector.load %arg4[%c2, %c0_13, %c0_14] : memref<4x32x16xf32, #tpu.memory_space<vmem>>, vector<1x32x16xf32>
    %24 = vector.shape_cast %23 : vector<1x32x16xf32> to vector<32x16xf32>
    %c3 = arith.constant 3 : index
    %c0_15 = arith.constant 0 : index
    %c0_16 = arith.constant 0 : index
    %25 = vector.load %arg4[%c3, %c0_15, %c0_16] : memref<4x32x16xf32, #tpu.memory_space<vmem>>, vector<1x32x16xf32>
    %26 = vector.shape_cast %25 : vector<1x32x16xf32> to vector<32x16xf32>
    %cst_17 = arith.constant 0.000000e+00 : f32
    %27 = vector.broadcast %cst_17 : f32 to vector<32x64xf32>
    %28 = tpu.concatenate %20, %22, %24, %26, %27 in 1 : vector<32x16xf32>, vector<32x16xf32>, vector<32x16xf32>, vector<32x16xf32>, vector<32x64xf32> -> vector<32x128xf32>
    %29 = arith.addf %18, %28 : vector<32x128xf32>
    %c0_18 = arith.constant 0 : index
    %c0_19 = arith.constant 0 : index
    %30 = vector.load %arg5[%c0_18, %c0_19] : memref<32x128xf32, #tpu.memory_space<vmem>>, vector<32x128xf32>
    tpu.vector_store %arg5[%c0_18, %c0_19], %29 {strides = array<i32>} : memref<32x128xf32, #tpu.memory_space<vmem>>, vector<32x128xf32>,
    return
  }
  func.func @transform_0(%arg0: i32) -> (i32, i32) {
    %c0_i32 = arith.constant 0 : i32
    %c0_i32_0 = arith.constant 0 : i32
    return %arg0, %c0_i32 : i32, i32
  }
  func.func @transform_1(%arg0: i32) -> (i32, i32) {
    %c0_i32 = arith.constant 0 : i32
    %c0_i32_0 = arith.constant 0 : i32
    %c0_i32_1 = arith.constant 0 : i32
    return %c0_i32, %c0_i32_0 : i32, i32
  }
  func.func @transform_2(%arg0: i32) -> (i32, i32) {
    %c0_i32 = arith.constant 0 : i32
    %c0_i32_0 = arith.constant 0 : i32
    %c0_i32_1 = arith.constant 0 : i32
    return %c0_i32, %c0_i32_0 : i32, i32
  }
  func.func @transform_3(%arg0: i32) -> (i32, i32, i32) {
    %c0_i32 = arith.constant 0 : i32
    %c0_i32_0 = arith.constant 0 : i32
    %c0_i32_1 = arith.constant 0 : i32
    return %c0_i32, %arg0, %c0_i32_0 : i32, i32, i32
  }
  func.func @transform_4(%arg0: i32) -> (i32, i32) {
    %c0_i32 = arith.constant 0 : i32
    %c0_i32_0 = arith.constant 0 : i32
    return %arg0, %c0_i32 : i32, i32
  }
}

module attributes {stable_mosaic.version = 11 : i64} {
  func.func @_gru_stack_kernel(%arg0: i32, %arg1: i32, %arg2: memref<4x8x128xf32, #tpu.memory_space<vmem>>, %arg3: memref<3x128x384xbf16, #tpu.memory_space<vmem>>, %arg4: memref<3x1x384xf32, #tpu.memory_space<vmem>>, %arg5: memref<3x128x384xbf16, #tpu.memory_space<vmem>>, %arg6: memref<3x1x384xf32, #tpu.memory_space<vmem>>, %arg7: memref<4x8x128xf32, #tpu.memory_space<vmem>>, %arg8: memref<3x8x128xf32, #tpu.memory_space<vmem>>, %arg9: memref<4x8x384xf32, #tpu.memory_space<vmem>>, %arg10: memref<4x8x128xf32, #tpu.memory_space<vmem>>) attributes {dimension_semantics = [#tpu.dimension_semantics<parallel>, #tpu.dimension_semantics<arbitrary>], iteration_bounds = array<i64: 1, 2>, scalar_prefetch = 0 : i64, scratch_operands = 3 : i64, tpu.core_type = #tpu.core_type<tc>, window_params = [{transform_indices = @transform_0, window_bounds = array<i64: 4, 8, 128>}, {pipeline_mode = #tpu.pipeline_mode<synchronous>, transform_indices = @transform_1, window_bounds = array<i64: 3, 128, 384>}, {pipeline_mode = #tpu.pipeline_mode<synchronous>, transform_indices = @transform_2, window_bounds = array<i64: 3, 1, 384>}, {pipeline_mode = #tpu.pipeline_mode<synchronous>, transform_indices = @transform_3, window_bounds = array<i64: 3, 128, 384>}, {pipeline_mode = #tpu.pipeline_mode<synchronous>, transform_indices = @transform_4, window_bounds = array<i64: 3, 1, 384>}, {transform_indices = @transform_5, window_bounds = array<i64: 4, 8, 128>}]} {
    %c0_i32 = arith.constant 0 : i32
    %0 = arith.cmpi eq, %arg1, %c0_i32 : i32
    %1 = arith.extui %0 : i1 to i32
    %c0_i32_0 = arith.constant 0 : i32
    %2 = arith.cmpi ne, %1, %c0_i32_0 : i32
    scf.if %2 {
      %cst_263 = arith.constant 0.000000e+00 : f32
      %544 = vector.broadcast %cst_263 : f32 to vector<3x8x128xf32>
      %c0_264 = arith.constant 0 : index
      %c0_265 = arith.constant 0 : index
      %c0_266 = arith.constant 0 : index
      %545 = vector.load %arg8[%c0_264, %c0_265, %c0_266] : memref<3x8x128xf32, #tpu.memory_space<vmem>>, vector<3x8x128xf32>
      tpu.vector_store %arg8[%c0_264, %c0_265, %c0_266], %544 {strides = array<i32>} : memref<3x8x128xf32, #tpu.memory_space<vmem>>, vector<3x8x128xf32>,
    } else {
    }
    %c0 = arith.constant 0 : index
    %c0_1 = arith.constant 0 : index
    %c0_2 = arith.constant 0 : index
    %3 = vector.load %arg2[%c0, %c0_1, %c0_2] : memref<4x8x128xf32, #tpu.memory_space<vmem>>, vector<4x8x128xf32>
    %4 = vector.shape_cast %3 : vector<4x8x128xf32> to vector<32x128xf32>
    %5 = arith.truncf %4 : vector<32x128xf32> to vector<32x128xbf16>
    %c0_3 = arith.constant 0 : index
    %c0_4 = arith.constant 0 : index
    %c0_5 = arith.constant 0 : index
    %6 = vector.load %arg3[%c0_3, %c0_4, %c0_5] : memref<3x128x384xbf16, #tpu.memory_space<vmem>>, vector<1x128x384xbf16>
    %7 = vector.shape_cast %6 : vector<1x128x384xbf16> to vector<128x384xbf16>
    %cst = arith.constant dense<0.000000e+00> : vector<32x384xf32>
    %8 = tpu.matmul %5, %7, %cst {dimension_numbers = #tpu.dot_dimension_numbers<[1], [0], [0], [1], [0, 0, 1, 1], [], []>} : vector<32x128xbf16>, vector<128x384xbf16>, vector<32x384xf32> -> vector<32x384xf32>
    %c0_6 = arith.constant 0 : index
    %c0_7 = arith.constant 0 : index
    %c0_8 = arith.constant 0 : index
    %9 = vector.load %arg4[%c0_6, %c0_7, %c0_8] : memref<3x1x384xf32, #tpu.memory_space<vmem>>, vector<1x1x384xf32>
    %10 = vector.shape_cast %9 : vector<1x1x384xf32> to vector<1x384xf32>
    %11 = vector.broadcast %10 : vector<1x384xf32> to vector<32x384xf32>
    %12 = arith.addf %8, %11 : vector<32x384xf32>
    %13 = vector.shape_cast %12 : vector<32x384xf32> to vector<4x8x384xf32>
    %c0_9 = arith.constant 0 : index
    %c0_10 = arith.constant 0 : index
    %c0_11 = arith.constant 0 : index
    %14 = vector.load %arg9[%c0_9, %c0_10, %c0_11] : memref<4x8x384xf32, #tpu.memory_space<vmem>>, vector<4x8x384xf32>
    tpu.vector_store %arg9[%c0_9, %c0_10, %c0_11], %13 {strides = array<i32>} : memref<4x8x384xf32, #tpu.memory_space<vmem>>, vector<4x8x384xf32>,
    %c0_12 = arith.constant 0 : index
    %c0_13 = arith.constant 0 : index
    %c0_14 = arith.constant 0 : index
    %15 = vector.load %arg5[%c0_12, %c0_13, %c0_14] : memref<3x128x384xbf16, #tpu.memory_space<vmem>>, vector<1x128x384xbf16>
    %16 = vector.shape_cast %15 : vector<1x128x384xbf16> to vector<128x384xbf16>
    %c0_15 = arith.constant 0 : index
    %c0_16 = arith.constant 0 : index
    %c0_17 = arith.constant 0 : index
    %17 = vector.load %arg6[%c0_15, %c0_16, %c0_17] : memref<3x1x384xf32, #tpu.memory_space<vmem>>, vector<1x1x384xf32>
    %18 = vector.shape_cast %17 : vector<1x1x384xf32> to vector<1x384xf32>
    %c0_18 = arith.constant 0 : index
    %c0_19 = arith.constant 0 : index
    %c0_20 = arith.constant 0 : index
    %19 = vector.load %arg8[%c0_18, %c0_19, %c0_20] : memref<3x8x128xf32, #tpu.memory_space<vmem>>, vector<1x8x128xf32>
    %20 = vector.shape_cast %19 : vector<1x8x128xf32> to vector<8x128xf32>
    %c0_21 = arith.constant 0 : index
    %c0_22 = arith.constant 0 : index
    %c0_23 = arith.constant 0 : index
    %21 = vector.load %arg9[%c0_21, %c0_22, %c0_23] : memref<4x8x384xf32, #tpu.memory_space<vmem>>, vector<1x8x384xf32>
    %22 = vector.shape_cast %21 : vector<1x8x384xf32> to vector<8x384xf32>
    %23 = arith.truncf %20 : vector<8x128xf32> to vector<8x128xbf16>
    %cst_24 = arith.constant dense<0.000000e+00> : vector<8x384xf32>
    %24 = tpu.matmul %23, %16, %cst_24 {dimension_numbers = #tpu.dot_dimension_numbers<[1], [0], [0], [1], [0, 0, 1, 1], [], []>} : vector<8x128xbf16>, vector<128x384xbf16>, vector<8x384xf32> -> vector<8x384xf32>
    %25 = vector.broadcast %18 : vector<1x384xf32> to vector<8x384xf32>
    %26 = arith.addf %24, %25 : vector<8x384xf32>
    %27 = vector.extract_strided_slice %22 {offsets = [0, 0], sizes = [8, 128], strides = [1, 1]} : vector<8x384xf32> to vector<8x128xf32>
    %28 = vector.extract_strided_slice %26 {offsets = [0, 0], sizes = [8, 128], strides = [1, 1]} : vector<8x384xf32> to vector<8x128xf32>
    %29 = arith.addf %27, %28 : vector<8x128xf32>
    %cst_25 = arith.constant 5.000000e-01 : f32
    %30 = vector.broadcast %cst_25 : f32 to vector<8x128xf32>
    %31 = arith.mulf %30, %29 : vector<8x128xf32>
    %32 = math.tanh %31 : vector<8x128xf32>
    %cst_26 = arith.constant 5.000000e-01 : f32
    %33 = vector.broadcast %cst_26 : f32 to vector<8x128xf32>
    %34 = arith.mulf %33, %32 : vector<8x128xf32>
    %cst_27 = arith.constant 5.000000e-01 : f32
    %35 = vector.broadcast %cst_27 : f32 to vector<8x128xf32>
    %36 = arith.addf %34, %35 : vector<8x128xf32>
    %37 = vector.extract_strided_slice %22 {offsets = [0, 128], sizes = [8, 128], strides = [1, 1]} : vector<8x384xf32> to vector<8x128xf32>
    %38 = vector.extract_strided_slice %26 {offsets = [0, 128], sizes = [8, 128], strides = [1, 1]} : vector<8x384xf32> to vector<8x128xf32>
    %39 = arith.addf %37, %38 : vector<8x128xf32>
    %cst_28 = arith.constant 5.000000e-01 : f32
    %40 = vector.broadcast %cst_28 : f32 to vector<8x128xf32>
    %41 = arith.mulf %40, %39 : vector<8x128xf32>
    %42 = math.tanh %41 : vector<8x128xf32>
    %cst_29 = arith.constant 5.000000e-01 : f32
    %43 = vector.broadcast %cst_29 : f32 to vector<8x128xf32>
    %44 = arith.mulf %43, %42 : vector<8x128xf32>
    %cst_30 = arith.constant 5.000000e-01 : f32
    %45 = vector.broadcast %cst_30 : f32 to vector<8x128xf32>
    %46 = arith.addf %44, %45 : vector<8x128xf32>
    %47 = vector.extract_strided_slice %22 {offsets = [0, 256], sizes = [8, 128], strides = [1, 1]} : vector<8x384xf32> to vector<8x128xf32>
    %48 = vector.extract_strided_slice %26 {offsets = [0, 256], sizes = [8, 128], strides = [1, 1]} : vector<8x384xf32> to vector<8x128xf32>
    %49 = arith.mulf %36, %48 : vector<8x128xf32>
    %50 = arith.addf %47, %49 : vector<8x128xf32>
    %51 = math.tanh %50 : vector<8x128xf32>
    %cst_31 = arith.constant 1.000000e+00 : f32
    %52 = vector.broadcast %cst_31 : f32 to vector<8x128xf32>
    %53 = arith.subf %52, %46 : vector<8x128xf32>
    %54 = arith.mulf %53, %51 : vector<8x128xf32>
    %55 = arith.mulf %46, %20 : vector<8x128xf32>
    %56 = arith.addf %54, %55 : vector<8x128xf32>
    %c0_32 = arith.constant 0 : index
    %c0_33 = arith.constant 0 : index
    %c0_34 = arith.constant 0 : index
    %57 = vector.load %arg10[%c0_32, %c0_33, %c0_34] : memref<4x8x128xf32, #tpu.memory_space<vmem>>, vector<1x8x128xf32>
    %58 = vector.shape_cast %57 : vector<1x8x128xf32> to vector<8x128xf32>
    %59 = vector.shape_cast %56 : vector<8x128xf32> to vector<1x8x128xf32>
    tpu.vector_store %arg10[%c0_32, %c0_33, %c0_34], %59 {strides = array<i32>} : memref<4x8x128xf32, #tpu.memory_space<vmem>>, vector<1x8x128xf32>,
    %c1 = arith.constant 1 : index
    %c0_35 = arith.constant 0 : index
    %c0_36 = arith.constant 0 : index
    %60 = vector.load %arg9[%c1, %c0_35, %c0_36] : memref<4x8x384xf32, #tpu.memory_space<vmem>>, vector<1x8x384xf32>
    %61 = vector.shape_cast %60 : vector<1x8x384xf32> to vector<8x384xf32>
    %62 = arith.truncf %56 : vector<8x128xf32> to vector<8x128xbf16>
    %cst_37 = arith.constant dense<0.000000e+00> : vector<8x384xf32>
    %63 = tpu.matmul %62, %16, %cst_37 {dimension_numbers = #tpu.dot_dimension_numbers<[1], [0], [0], [1], [0, 0, 1, 1], [], []>} : vector<8x128xbf16>, vector<128x384xbf16>, vector<8x384xf32> -> vector<8x384xf32>
    %64 = vector.broadcast %18 : vector<1x384xf32> to vector<8x384xf32>
    %65 = arith.addf %63, %64 : vector<8x384xf32>
    %66 = vector.extract_strided_slice %61 {offsets = [0, 0], sizes = [8, 128], strides = [1, 1]} : vector<8x384xf32> to vector<8x128xf32>
    %67 = vector.extract_strided_slice %65 {offsets = [0, 0], sizes = [8, 128], strides = [1, 1]} : vector<8x384xf32> to vector<8x128xf32>
    %68 = arith.addf %66, %67 : vector<8x128xf32>
    %cst_38 = arith.constant 5.000000e-01 : f32
    %69 = vector.broadcast %cst_38 : f32 to vector<8x128xf32>
    %70 = arith.mulf %69, %68 : vector<8x128xf32>
    %71 = math.tanh %70 : vector<8x128xf32>
    %cst_39 = arith.constant 5.000000e-01 : f32
    %72 = vector.broadcast %cst_39 : f32 to vector<8x128xf32>
    %73 = arith.mulf %72, %71 : vector<8x128xf32>
    %cst_40 = arith.constant 5.000000e-01 : f32
    %74 = vector.broadcast %cst_40 : f32 to vector<8x128xf32>
    %75 = arith.addf %73, %74 : vector<8x128xf32>
    %76 = vector.extract_strided_slice %61 {offsets = [0, 128], sizes = [8, 128], strides = [1, 1]} : vector<8x384xf32> to vector<8x128xf32>
    %77 = vector.extract_strided_slice %65 {offsets = [0, 128], sizes = [8, 128], strides = [1, 1]} : vector<8x384xf32> to vector<8x128xf32>
    %78 = arith.addf %76, %77 : vector<8x128xf32>
    %cst_41 = arith.constant 5.000000e-01 : f32
    %79 = vector.broadcast %cst_41 : f32 to vector<8x128xf32>
    %80 = arith.mulf %79, %78 : vector<8x128xf32>
    %81 = math.tanh %80 : vector<8x128xf32>
    %cst_42 = arith.constant 5.000000e-01 : f32
    %82 = vector.broadcast %cst_42 : f32 to vector<8x128xf32>
    %83 = arith.mulf %82, %81 : vector<8x128xf32>
    %cst_43 = arith.constant 5.000000e-01 : f32
    %84 = vector.broadcast %cst_43 : f32 to vector<8x128xf32>
    %85 = arith.addf %83, %84 : vector<8x128xf32>
    %86 = vector.extract_strided_slice %61 {offsets = [0, 256], sizes = [8, 128], strides = [1, 1]} : vector<8x384xf32> to vector<8x128xf32>
    %87 = vector.extract_strided_slice %65 {offsets = [0, 256], sizes = [8, 128], strides = [1, 1]} : vector<8x384xf32> to vector<8x128xf32>
    %88 = arith.mulf %75, %87 : vector<8x128xf32>
    %89 = arith.addf %86, %88 : vector<8x128xf32>
    %90 = math.tanh %89 : vector<8x128xf32>
    %cst_44 = arith.constant 1.000000e+00 : f32
    %91 = vector.broadcast %cst_44 : f32 to vector<8x128xf32>
    %92 = arith.subf %91, %85 : vector<8x128xf32>
    %93 = arith.mulf %92, %90 : vector<8x128xf32>
    %94 = arith.mulf %85, %56 : vector<8x128xf32>
    %95 = arith.addf %93, %94 : vector<8x128xf32>
    %c1_45 = arith.constant 1 : index
    %c0_46 = arith.constant 0 : index
    %c0_47 = arith.constant 0 : index
    %96 = vector.load %arg10[%c1_45, %c0_46, %c0_47] : memref<4x8x128xf32, #tpu.memory_space<vmem>>, vector<1x8x128xf32>
    %97 = vector.shape_cast %96 : vector<1x8x128xf32> to vector<8x128xf32>
    %98 = vector.shape_cast %95 : vector<8x128xf32> to vector<1x8x128xf32>
    tpu.vector_store %arg10[%c1_45, %c0_46, %c0_47], %98 {strides = array<i32>} : memref<4x8x128xf32, #tpu.memory_space<vmem>>, vector<1x8x128xf32>,
    %c2 = arith.constant 2 : index
    %c0_48 = arith.constant 0 : index
    %c0_49 = arith.constant 0 : index
    %99 = vector.load %arg9[%c2, %c0_48, %c0_49] : memref<4x8x384xf32, #tpu.memory_space<vmem>>, vector<1x8x384xf32>
    %100 = vector.shape_cast %99 : vector<1x8x384xf32> to vector<8x384xf32>
    %101 = arith.truncf %95 : vector<8x128xf32> to vector<8x128xbf16>
    %cst_50 = arith.constant dense<0.000000e+00> : vector<8x384xf32>
    %102 = tpu.matmul %101, %16, %cst_50 {dimension_numbers = #tpu.dot_dimension_numbers<[1], [0], [0], [1], [0, 0, 1, 1], [], []>} : vector<8x128xbf16>, vector<128x384xbf16>, vector<8x384xf32> -> vector<8x384xf32>
    %103 = vector.broadcast %18 : vector<1x384xf32> to vector<8x384xf32>
    %104 = arith.addf %102, %103 : vector<8x384xf32>
    %105 = vector.extract_strided_slice %100 {offsets = [0, 0], sizes = [8, 128], strides = [1, 1]} : vector<8x384xf32> to vector<8x128xf32>
    %106 = vector.extract_strided_slice %104 {offsets = [0, 0], sizes = [8, 128], strides = [1, 1]} : vector<8x384xf32> to vector<8x128xf32>
    %107 = arith.addf %105, %106 : vector<8x128xf32>
    %cst_51 = arith.constant 5.000000e-01 : f32
    %108 = vector.broadcast %cst_51 : f32 to vector<8x128xf32>
    %109 = arith.mulf %108, %107 : vector<8x128xf32>
    %110 = math.tanh %109 : vector<8x128xf32>
    %cst_52 = arith.constant 5.000000e-01 : f32
    %111 = vector.broadcast %cst_52 : f32 to vector<8x128xf32>
    %112 = arith.mulf %111, %110 : vector<8x128xf32>
    %cst_53 = arith.constant 5.000000e-01 : f32
    %113 = vector.broadcast %cst_53 : f32 to vector<8x128xf32>
    %114 = arith.addf %112, %113 : vector<8x128xf32>
    %115 = vector.extract_strided_slice %100 {offsets = [0, 128], sizes = [8, 128], strides = [1, 1]} : vector<8x384xf32> to vector<8x128xf32>
    %116 = vector.extract_strided_slice %104 {offsets = [0, 128], sizes = [8, 128], strides = [1, 1]} : vector<8x384xf32> to vector<8x128xf32>
    %117 = arith.addf %115, %116 : vector<8x128xf32>
    %cst_54 = arith.constant 5.000000e-01 : f32
    %118 = vector.broadcast %cst_54 : f32 to vector<8x128xf32>
    %119 = arith.mulf %118, %117 : vector<8x128xf32>
    %120 = math.tanh %119 : vector<8x128xf32>
    %cst_55 = arith.constant 5.000000e-01 : f32
    %121 = vector.broadcast %cst_55 : f32 to vector<8x128xf32>
    %122 = arith.mulf %121, %120 : vector<8x128xf32>
    %cst_56 = arith.constant 5.000000e-01 : f32
    %123 = vector.broadcast %cst_56 : f32 to vector<8x128xf32>
    %124 = arith.addf %122, %123 : vector<8x128xf32>
    %125 = vector.extract_strided_slice %100 {offsets = [0, 256], sizes = [8, 128], strides = [1, 1]} : vector<8x384xf32> to vector<8x128xf32>
    %126 = vector.extract_strided_slice %104 {offsets = [0, 256], sizes = [8, 128], strides = [1, 1]} : vector<8x384xf32> to vector<8x128xf32>
    %127 = arith.mulf %114, %126 : vector<8x128xf32>
    %128 = arith.addf %125, %127 : vector<8x128xf32>
    %129 = math.tanh %128 : vector<8x128xf32>
    %cst_57 = arith.constant 1.000000e+00 : f32
    %130 = vector.broadcast %cst_57 : f32 to vector<8x128xf32>
    %131 = arith.subf %130, %124 : vector<8x128xf32>
    %132 = arith.mulf %131, %129 : vector<8x128xf32>
    %133 = arith.mulf %124, %95 : vector<8x128xf32>
    %134 = arith.addf %132, %133 : vector<8x128xf32>
    %c2_58 = arith.constant 2 : index
    %c0_59 = arith.constant 0 : index
    %c0_60 = arith.constant 0 : index
    %135 = vector.load %arg10[%c2_58, %c0_59, %c0_60] : memref<4x8x128xf32, #tpu.memory_space<vmem>>, vector<1x8x128xf32>
    %136 = vector.shape_cast %135 : vector<1x8x128xf32> to vector<8x128xf32>
    %137 = vector.shape_cast %134 : vector<8x128xf32> to vector<1x8x128xf32>
    tpu.vector_store %arg10[%c2_58, %c0_59, %c0_60], %137 {strides = array<i32>} : memref<4x8x128xf32, #tpu.memory_space<vmem>>, vector<1x8x128xf32>,
    %c3 = arith.constant 3 : index
    %c0_61 = arith.constant 0 : index
    %c0_62 = arith.constant 0 : index
    %138 = vector.load %arg9[%c3, %c0_61, %c0_62] : memref<4x8x384xf32, #tpu.memory_space<vmem>>, vector<1x8x384xf32>
    %139 = vector.shape_cast %138 : vector<1x8x384xf32> to vector<8x384xf32>
    %140 = arith.truncf %134 : vector<8x128xf32> to vector<8x128xbf16>
    %cst_63 = arith.constant dense<0.000000e+00> : vector<8x384xf32>
    %141 = tpu.matmul %140, %16, %cst_63 {dimension_numbers = #tpu.dot_dimension_numbers<[1], [0], [0], [1], [0, 0, 1, 1], [], []>} : vector<8x128xbf16>, vector<128x384xbf16>, vector<8x384xf32> -> vector<8x384xf32>
    %142 = vector.broadcast %18 : vector<1x384xf32> to vector<8x384xf32>
    %143 = arith.addf %141, %142 : vector<8x384xf32>
    %144 = vector.extract_strided_slice %139 {offsets = [0, 0], sizes = [8, 128], strides = [1, 1]} : vector<8x384xf32> to vector<8x128xf32>
    %145 = vector.extract_strided_slice %143 {offsets = [0, 0], sizes = [8, 128], strides = [1, 1]} : vector<8x384xf32> to vector<8x128xf32>
    %146 = arith.addf %144, %145 : vector<8x128xf32>
    %cst_64 = arith.constant 5.000000e-01 : f32
    %147 = vector.broadcast %cst_64 : f32 to vector<8x128xf32>
    %148 = arith.mulf %147, %146 : vector<8x128xf32>
    %149 = math.tanh %148 : vector<8x128xf32>
    %cst_65 = arith.constant 5.000000e-01 : f32
    %150 = vector.broadcast %cst_65 : f32 to vector<8x128xf32>
    %151 = arith.mulf %150, %149 : vector<8x128xf32>
    %cst_66 = arith.constant 5.000000e-01 : f32
    %152 = vector.broadcast %cst_66 : f32 to vector<8x128xf32>
    %153 = arith.addf %151, %152 : vector<8x128xf32>
    %154 = vector.extract_strided_slice %139 {offsets = [0, 128], sizes = [8, 128], strides = [1, 1]} : vector<8x384xf32> to vector<8x128xf32>
    %155 = vector.extract_strided_slice %143 {offsets = [0, 128], sizes = [8, 128], strides = [1, 1]} : vector<8x384xf32> to vector<8x128xf32>
    %156 = arith.addf %154, %155 : vector<8x128xf32>
    %cst_67 = arith.constant 5.000000e-01 : f32
    %157 = vector.broadcast %cst_67 : f32 to vector<8x128xf32>
    %158 = arith.mulf %157, %156 : vector<8x128xf32>
    %159 = math.tanh %158 : vector<8x128xf32>
    %cst_68 = arith.constant 5.000000e-01 : f32
    %160 = vector.broadcast %cst_68 : f32 to vector<8x128xf32>
    %161 = arith.mulf %160, %159 : vector<8x128xf32>
    %cst_69 = arith.constant 5.000000e-01 : f32
    %162 = vector.broadcast %cst_69 : f32 to vector<8x128xf32>
    %163 = arith.addf %161, %162 : vector<8x128xf32>
    %164 = vector.extract_strided_slice %139 {offsets = [0, 256], sizes = [8, 128], strides = [1, 1]} : vector<8x384xf32> to vector<8x128xf32>
    %165 = vector.extract_strided_slice %143 {offsets = [0, 256], sizes = [8, 128], strides = [1, 1]} : vector<8x384xf32> to vector<8x128xf32>
    %166 = arith.mulf %153, %165 : vector<8x128xf32>
    %167 = arith.addf %164, %166 : vector<8x128xf32>
    %168 = math.tanh %167 : vector<8x128xf32>
    %cst_70 = arith.constant 1.000000e+00 : f32
    %169 = vector.broadcast %cst_70 : f32 to vector<8x128xf32>
    %170 = arith.subf %169, %163 : vector<8x128xf32>
    %171 = arith.mulf %170, %168 : vector<8x128xf32>
    %172 = arith.mulf %163, %134 : vector<8x128xf32>
    %173 = arith.addf %171, %172 : vector<8x128xf32>
    %c3_71 = arith.constant 3 : index
    %c0_72 = arith.constant 0 : index
    %c0_73 = arith.constant 0 : index
    %174 = vector.load %arg10[%c3_71, %c0_72, %c0_73] : memref<4x8x128xf32, #tpu.memory_space<vmem>>, vector<1x8x128xf32>
    %175 = vector.shape_cast %174 : vector<1x8x128xf32> to vector<8x128xf32>
    %176 = vector.shape_cast %173 : vector<8x128xf32> to vector<1x8x128xf32>
    tpu.vector_store %arg10[%c3_71, %c0_72, %c0_73], %176 {strides = array<i32>} : memref<4x8x128xf32, #tpu.memory_space<vmem>>, vector<1x8x128xf32>,
    %c0_74 = arith.constant 0 : index
    %c0_75 = arith.constant 0 : index
    %c0_76 = arith.constant 0 : index
    %177 = vector.load %arg8[%c0_74, %c0_75, %c0_76] : memref<3x8x128xf32, #tpu.memory_space<vmem>>, vector<1x8x128xf32>
    %178 = vector.shape_cast %177 : vector<1x8x128xf32> to vector<8x128xf32>
    %179 = vector.shape_cast %173 : vector<8x128xf32> to vector<1x8x128xf32>
    tpu.vector_store %arg8[%c0_74, %c0_75, %c0_76], %179 {strides = array<i32>} : memref<3x8x128xf32, #tpu.memory_space<vmem>>, vector<1x8x128xf32>,
    %c0_77 = arith.constant 0 : index
    %c0_78 = arith.constant 0 : index
    %c0_79 = arith.constant 0 : index
    %180 = vector.load %arg10[%c0_77, %c0_78, %c0_79] : memref<4x8x128xf32, #tpu.memory_space<vmem>>, vector<4x8x128xf32>
    %c0_80 = arith.constant 0 : index
    %c0_81 = arith.constant 0 : index
    %c0_82 = arith.constant 0 : index
    %181 = vector.load %arg7[%c0_80, %c0_81, %c0_82] : memref<4x8x128xf32, #tpu.memory_space<vmem>>, vector<4x8x128xf32>
    tpu.vector_store %arg7[%c0_80, %c0_81, %c0_82], %180 {strides = array<i32>} : memref<4x8x128xf32, #tpu.memory_space<vmem>>, vector<4x8x128xf32>,
    %c0_83 = arith.constant 0 : index
    %c0_84 = arith.constant 0 : index
    %c0_85 = arith.constant 0 : index
    %182 = vector.load %arg10[%c0_83, %c0_84, %c0_85] : memref<4x8x128xf32, #tpu.memory_space<vmem>>, vector<4x8x128xf32>
    %183 = vector.shape_cast %182 : vector<4x8x128xf32> to vector<32x128xf32>
    %184 = arith.truncf %183 : vector<32x128xf32> to vector<32x128xbf16>
    %c1_86 = arith.constant 1 : index
    %c0_87 = arith.constant 0 : index
    %c0_88 = arith.constant 0 : index
    %185 = vector.load %arg3[%c1_86, %c0_87, %c0_88] : memref<3x128x384xbf16, #tpu.memory_space<vmem>>, vector<1x128x384xbf16>
    %186 = vector.shape_cast %185 : vector<1x128x384xbf16> to vector<128x384xbf16>
    %cst_89 = arith.constant dense<0.000000e+00> : vector<32x384xf32>
    %187 = tpu.matmul %184, %186, %cst_89 {dimension_numbers = #tpu.dot_dimension_numbers<[1], [0], [0], [1], [0, 0, 1, 1], [], []>} : vector<32x128xbf16>, vector<128x384xbf16>, vector<32x384xf32> -> vector<32x384xf32>
    %c1_90 = arith.constant 1 : index
    %c0_91 = arith.constant 0 : index
    %c0_92 = arith.constant 0 : index
    %188 = vector.load %arg4[%c1_90, %c0_91, %c0_92] : memref<3x1x384xf32, #tpu.memory_space<vmem>>, vector<1x1x384xf32>
    %189 = vector.shape_cast %188 : vector<1x1x384xf32> to vector<1x384xf32>
    %190 = vector.broadcast %189 : vector<1x384xf32> to vector<32x384xf32>
    %191 = arith.addf %187, %190 : vector<32x384xf32>
    %192 = vector.shape_cast %191 : vector<32x384xf32> to vector<4x8x384xf32>
    %c0_93 = arith.constant 0 : index
    %c0_94 = arith.constant 0 : index
    %c0_95 = arith.constant 0 : index
    %193 = vector.load %arg9[%c0_93, %c0_94, %c0_95] : memref<4x8x384xf32, #tpu.memory_space<vmem>>, vector<4x8x384xf32>
    tpu.vector_store %arg9[%c0_93, %c0_94, %c0_95], %192 {strides = array<i32>} : memref<4x8x384xf32, #tpu.memory_space<vmem>>, vector<4x8x384xf32>,
    %c1_96 = arith.constant 1 : index
    %c0_97 = arith.constant 0 : index
    %c0_98 = arith.constant 0 : index
    %194 = vector.load %arg5[%c1_96, %c0_97, %c0_98] : memref<3x128x384xbf16, #tpu.memory_space<vmem>>, vector<1x128x384xbf16>
    %195 = vector.shape_cast %194 : vector<1x128x384xbf16> to vector<128x384xbf16>
    %c1_99 = arith.constant 1 : index
    %c0_100 = arith.constant 0 : index
    %c0_101 = arith.constant 0 : index
    %196 = vector.load %arg6[%c1_99, %c0_100, %c0_101] : memref<3x1x384xf32, #tpu.memory_space<vmem>>, vector<1x1x384xf32>
    %197 = vector.shape_cast %196 : vector<1x1x384xf32> to vector<1x384xf32>
    %c1_102 = arith.constant 1 : index
    %c0_103 = arith.constant 0 : index
    %c0_104 = arith.constant 0 : index
    %198 = vector.load %arg8[%c1_102, %c0_103, %c0_104] : memref<3x8x128xf32, #tpu.memory_space<vmem>>, vector<1x8x128xf32>
    %199 = vector.shape_cast %198 : vector<1x8x128xf32> to vector<8x128xf32>
    %c0_105 = arith.constant 0 : index
    %c0_106 = arith.constant 0 : index
    %c0_107 = arith.constant 0 : index
    %200 = vector.load %arg9[%c0_105, %c0_106, %c0_107] : memref<4x8x384xf32, #tpu.memory_space<vmem>>, vector<1x8x384xf32>
    %201 = vector.shape_cast %200 : vector<1x8x384xf32> to vector<8x384xf32>
    %202 = arith.truncf %199 : vector<8x128xf32> to vector<8x128xbf16>
    %cst_108 = arith.constant dense<0.000000e+00> : vector<8x384xf32>
    %203 = tpu.matmul %202, %195, %cst_108 {dimension_numbers = #tpu.dot_dimension_numbers<[1], [0], [0], [1], [0, 0, 1, 1], [], []>} : vector<8x128xbf16>, vector<128x384xbf16>, vector<8x384xf32> -> vector<8x384xf32>
    %204 = vector.broadcast %197 : vector<1x384xf32> to vector<8x384xf32>
    %205 = arith.addf %203, %204 : vector<8x384xf32>
    %206 = vector.extract_strided_slice %201 {offsets = [0, 0], sizes = [8, 128], strides = [1, 1]} : vector<8x384xf32> to vector<8x128xf32>
    %207 = vector.extract_strided_slice %205 {offsets = [0, 0], sizes = [8, 128], strides = [1, 1]} : vector<8x384xf32> to vector<8x128xf32>
    %208 = arith.addf %206, %207 : vector<8x128xf32>
    %cst_109 = arith.constant 5.000000e-01 : f32
    %209 = vector.broadcast %cst_109 : f32 to vector<8x128xf32>
    %210 = arith.mulf %209, %208 : vector<8x128xf32>
    %211 = math.tanh %210 : vector<8x128xf32>
    %cst_110 = arith.constant 5.000000e-01 : f32
    %212 = vector.broadcast %cst_110 : f32 to vector<8x128xf32>
    %213 = arith.mulf %212, %211 : vector<8x128xf32>
    %cst_111 = arith.constant 5.000000e-01 : f32
    %214 = vector.broadcast %cst_111 : f32 to vector<8x128xf32>
    %215 = arith.addf %213, %214 : vector<8x128xf32>
    %216 = vector.extract_strided_slice %201 {offsets = [0, 128], sizes = [8, 128], strides = [1, 1]} : vector<8x384xf32> to vector<8x128xf32>
    %217 = vector.extract_strided_slice %205 {offsets = [0, 128], sizes = [8, 128], strides = [1, 1]} : vector<8x384xf32> to vector<8x128xf32>
    %218 = arith.addf %216, %217 : vector<8x128xf32>
    %cst_112 = arith.constant 5.000000e-01 : f32
    %219 = vector.broadcast %cst_112 : f32 to vector<8x128xf32>
    %220 = arith.mulf %219, %218 : vector<8x128xf32>
    %221 = math.tanh %220 : vector<8x128xf32>
    %cst_113 = arith.constant 5.000000e-01 : f32
    %222 = vector.broadcast %cst_113 : f32 to vector<8x128xf32>
    %223 = arith.mulf %222, %221 : vector<8x128xf32>
    %cst_114 = arith.constant 5.000000e-01 : f32
    %224 = vector.broadcast %cst_114 : f32 to vector<8x128xf32>
    %225 = arith.addf %223, %224 : vector<8x128xf32>
    %226 = vector.extract_strided_slice %201 {offsets = [0, 256], sizes = [8, 128], strides = [1, 1]} : vector<8x384xf32> to vector<8x128xf32>
    %227 = vector.extract_strided_slice %205 {offsets = [0, 256], sizes = [8, 128], strides = [1, 1]} : vector<8x384xf32> to vector<8x128xf32>
    %228 = arith.mulf %215, %227 : vector<8x128xf32>
    %229 = arith.addf %226, %228 : vector<8x128xf32>
    %230 = math.tanh %229 : vector<8x128xf32>
    %cst_115 = arith.constant 1.000000e+00 : f32
    %231 = vector.broadcast %cst_115 : f32 to vector<8x128xf32>
    %232 = arith.subf %231, %225 : vector<8x128xf32>
    %233 = arith.mulf %232, %230 : vector<8x128xf32>
    %234 = arith.mulf %225, %199 : vector<8x128xf32>
    %235 = arith.addf %233, %234 : vector<8x128xf32>
    %c0_116 = arith.constant 0 : index
    %c0_117 = arith.constant 0 : index
    %c0_118 = arith.constant 0 : index
    %236 = vector.load %arg10[%c0_116, %c0_117, %c0_118] : memref<4x8x128xf32, #tpu.memory_space<vmem>>, vector<1x8x128xf32>
    %237 = vector.shape_cast %236 : vector<1x8x128xf32> to vector<8x128xf32>
    %238 = vector.shape_cast %235 : vector<8x128xf32> to vector<1x8x128xf32>
    tpu.vector_store %arg10[%c0_116, %c0_117, %c0_118], %238 {strides = array<i32>} : memref<4x8x128xf32, #tpu.memory_space<vmem>>, vector<1x8x128xf32>,
    %c1_119 = arith.constant 1 : index
    %c0_120 = arith.constant 0 : index
    %c0_121 = arith.constant 0 : index
    %239 = vector.load %arg9[%c1_119, %c0_120, %c0_121] : memref<4x8x384xf32, #tpu.memory_space<vmem>>, vector<1x8x384xf32>
    %240 = vector.shape_cast %239 : vector<1x8x384xf32> to vector<8x384xf32>
    %241 = arith.truncf %235 : vector<8x128xf32> to vector<8x128xbf16>
    %cst_122 = arith.constant dense<0.000000e+00> : vector<8x384xf32>
    %242 = tpu.matmul %241, %195, %cst_122 {dimension_numbers = #tpu.dot_dimension_numbers<[1], [0], [0], [1], [0, 0, 1, 1], [], []>} : vector<8x128xbf16>, vector<128x384xbf16>, vector<8x384xf32> -> vector<8x384xf32>
    %243 = vector.broadcast %197 : vector<1x384xf32> to vector<8x384xf32>
    %244 = arith.addf %242, %243 : vector<8x384xf32>
    %245 = vector.extract_strided_slice %240 {offsets = [0, 0], sizes = [8, 128], strides = [1, 1]} : vector<8x384xf32> to vector<8x128xf32>
    %246 = vector.extract_strided_slice %244 {offsets = [0, 0], sizes = [8, 128], strides = [1, 1]} : vector<8x384xf32> to vector<8x128xf32>
    %247 = arith.addf %245, %246 : vector<8x128xf32>
    %cst_123 = arith.constant 5.000000e-01 : f32
    %248 = vector.broadcast %cst_123 : f32 to vector<8x128xf32>
    %249 = arith.mulf %248, %247 : vector<8x128xf32>
    %250 = math.tanh %249 : vector<8x128xf32>
    %cst_124 = arith.constant 5.000000e-01 : f32
    %251 = vector.broadcast %cst_124 : f32 to vector<8x128xf32>
    %252 = arith.mulf %251, %250 : vector<8x128xf32>
    %cst_125 = arith.constant 5.000000e-01 : f32
    %253 = vector.broadcast %cst_125 : f32 to vector<8x128xf32>
    %254 = arith.addf %252, %253 : vector<8x128xf32>
    %255 = vector.extract_strided_slice %240 {offsets = [0, 128], sizes = [8, 128], strides = [1, 1]} : vector<8x384xf32> to vector<8x128xf32>
    %256 = vector.extract_strided_slice %244 {offsets = [0, 128], sizes = [8, 128], strides = [1, 1]} : vector<8x384xf32> to vector<8x128xf32>
    %257 = arith.addf %255, %256 : vector<8x128xf32>
    %cst_126 = arith.constant 5.000000e-01 : f32
    %258 = vector.broadcast %cst_126 : f32 to vector<8x128xf32>
    %259 = arith.mulf %258, %257 : vector<8x128xf32>
    %260 = math.tanh %259 : vector<8x128xf32>
    %cst_127 = arith.constant 5.000000e-01 : f32
    %261 = vector.broadcast %cst_127 : f32 to vector<8x128xf32>
    %262 = arith.mulf %261, %260 : vector<8x128xf32>
    %cst_128 = arith.constant 5.000000e-01 : f32
    %263 = vector.broadcast %cst_128 : f32 to vector<8x128xf32>
    %264 = arith.addf %262, %263 : vector<8x128xf32>
    %265 = vector.extract_strided_slice %240 {offsets = [0, 256], sizes = [8, 128], strides = [1, 1]} : vector<8x384xf32> to vector<8x128xf32>
    %266 = vector.extract_strided_slice %244 {offsets = [0, 256], sizes = [8, 128], strides = [1, 1]} : vector<8x384xf32> to vector<8x128xf32>
    %267 = arith.mulf %254, %266 : vector<8x128xf32>
    %268 = arith.addf %265, %267 : vector<8x128xf32>
    %269 = math.tanh %268 : vector<8x128xf32>
    %cst_129 = arith.constant 1.000000e+00 : f32
    %270 = vector.broadcast %cst_129 : f32 to vector<8x128xf32>
    %271 = arith.subf %270, %264 : vector<8x128xf32>
    %272 = arith.mulf %271, %269 : vector<8x128xf32>
    %273 = arith.mulf %264, %235 : vector<8x128xf32>
    %274 = arith.addf %272, %273 : vector<8x128xf32>
    %c1_130 = arith.constant 1 : index
    %c0_131 = arith.constant 0 : index
    %c0_132 = arith.constant 0 : index
    %275 = vector.load %arg10[%c1_130, %c0_131, %c0_132] : memref<4x8x128xf32, #tpu.memory_space<vmem>>, vector<1x8x128xf32>
    %276 = vector.shape_cast %275 : vector<1x8x128xf32> to vector<8x128xf32>
    %277 = vector.shape_cast %274 : vector<8x128xf32> to vector<1x8x128xf32>
    tpu.vector_store %arg10[%c1_130, %c0_131, %c0_132], %277 {strides = array<i32>} : memref<4x8x128xf32, #tpu.memory_space<vmem>>, vector<1x8x128xf32>,
    %c2_133 = arith.constant 2 : index
    %c0_134 = arith.constant 0 : index
    %c0_135 = arith.constant 0 : index
    %278 = vector.load %arg9[%c2_133, %c0_134, %c0_135] : memref<4x8x384xf32, #tpu.memory_space<vmem>>, vector<1x8x384xf32>
    %279 = vector.shape_cast %278 : vector<1x8x384xf32> to vector<8x384xf32>
    %280 = arith.truncf %274 : vector<8x128xf32> to vector<8x128xbf16>
    %cst_136 = arith.constant dense<0.000000e+00> : vector<8x384xf32>
    %281 = tpu.matmul %280, %195, %cst_136 {dimension_numbers = #tpu.dot_dimension_numbers<[1], [0], [0], [1], [0, 0, 1, 1], [], []>} : vector<8x128xbf16>, vector<128x384xbf16>, vector<8x384xf32> -> vector<8x384xf32>
    %282 = vector.broadcast %197 : vector<1x384xf32> to vector<8x384xf32>
    %283 = arith.addf %281, %282 : vector<8x384xf32>
    %284 = vector.extract_strided_slice %279 {offsets = [0, 0], sizes = [8, 128], strides = [1, 1]} : vector<8x384xf32> to vector<8x128xf32>
    %285 = vector.extract_strided_slice %283 {offsets = [0, 0], sizes = [8, 128], strides = [1, 1]} : vector<8x384xf32> to vector<8x128xf32>
    %286 = arith.addf %284, %285 : vector<8x128xf32>
    %cst_137 = arith.constant 5.000000e-01 : f32
    %287 = vector.broadcast %cst_137 : f32 to vector<8x128xf32>
    %288 = arith.mulf %287, %286 : vector<8x128xf32>
    %289 = math.tanh %288 : vector<8x128xf32>
    %cst_138 = arith.constant 5.000000e-01 : f32
    %290 = vector.broadcast %cst_138 : f32 to vector<8x128xf32>
    %291 = arith.mulf %290, %289 : vector<8x128xf32>
    %cst_139 = arith.constant 5.000000e-01 : f32
    %292 = vector.broadcast %cst_139 : f32 to vector<8x128xf32>
    %293 = arith.addf %291, %292 : vector<8x128xf32>
    %294 = vector.extract_strided_slice %279 {offsets = [0, 128], sizes = [8, 128], strides = [1, 1]} : vector<8x384xf32> to vector<8x128xf32>
    %295 = vector.extract_strided_slice %283 {offsets = [0, 128], sizes = [8, 128], strides = [1, 1]} : vector<8x384xf32> to vector<8x128xf32>
    %296 = arith.addf %294, %295 : vector<8x128xf32>
    %cst_140 = arith.constant 5.000000e-01 : f32
    %297 = vector.broadcast %cst_140 : f32 to vector<8x128xf32>
    %298 = arith.mulf %297, %296 : vector<8x128xf32>
    %299 = math.tanh %298 : vector<8x128xf32>
    %cst_141 = arith.constant 5.000000e-01 : f32
    %300 = vector.broadcast %cst_141 : f32 to vector<8x128xf32>
    %301 = arith.mulf %300, %299 : vector<8x128xf32>
    %cst_142 = arith.constant 5.000000e-01 : f32
    %302 = vector.broadcast %cst_142 : f32 to vector<8x128xf32>
    %303 = arith.addf %301, %302 : vector<8x128xf32>
    %304 = vector.extract_strided_slice %279 {offsets = [0, 256], sizes = [8, 128], strides = [1, 1]} : vector<8x384xf32> to vector<8x128xf32>
    %305 = vector.extract_strided_slice %283 {offsets = [0, 256], sizes = [8, 128], strides = [1, 1]} : vector<8x384xf32> to vector<8x128xf32>
    %306 = arith.mulf %293, %305 : vector<8x128xf32>
    %307 = arith.addf %304, %306 : vector<8x128xf32>
    %308 = math.tanh %307 : vector<8x128xf32>
    %cst_143 = arith.constant 1.000000e+00 : f32
    %309 = vector.broadcast %cst_143 : f32 to vector<8x128xf32>
    %310 = arith.subf %309, %303 : vector<8x128xf32>
    %311 = arith.mulf %310, %308 : vector<8x128xf32>
    %312 = arith.mulf %303, %274 : vector<8x128xf32>
    %313 = arith.addf %311, %312 : vector<8x128xf32>
    %c2_144 = arith.constant 2 : index
    %c0_145 = arith.constant 0 : index
    %c0_146 = arith.constant 0 : index
    %314 = vector.load %arg10[%c2_144, %c0_145, %c0_146] : memref<4x8x128xf32, #tpu.memory_space<vmem>>, vector<1x8x128xf32>
    %315 = vector.shape_cast %314 : vector<1x8x128xf32> to vector<8x128xf32>
    %316 = vector.shape_cast %313 : vector<8x128xf32> to vector<1x8x128xf32>
    tpu.vector_store %arg10[%c2_144, %c0_145, %c0_146], %316 {strides = array<i32>} : memref<4x8x128xf32, #tpu.memory_space<vmem>>, vector<1x8x128xf32>,
    %c3_147 = arith.constant 3 : index
    %c0_148 = arith.constant 0 : index
    %c0_149 = arith.constant 0 : index
    %317 = vector.load %arg9[%c3_147, %c0_148, %c0_149] : memref<4x8x384xf32, #tpu.memory_space<vmem>>, vector<1x8x384xf32>
    %318 = vector.shape_cast %317 : vector<1x8x384xf32> to vector<8x384xf32>
    %319 = arith.truncf %313 : vector<8x128xf32> to vector<8x128xbf16>
    %cst_150 = arith.constant dense<0.000000e+00> : vector<8x384xf32>
    %320 = tpu.matmul %319, %195, %cst_150 {dimension_numbers = #tpu.dot_dimension_numbers<[1], [0], [0], [1], [0, 0, 1, 1], [], []>} : vector<8x128xbf16>, vector<128x384xbf16>, vector<8x384xf32> -> vector<8x384xf32>
    %321 = vector.broadcast %197 : vector<1x384xf32> to vector<8x384xf32>
    %322 = arith.addf %320, %321 : vector<8x384xf32>
    %323 = vector.extract_strided_slice %318 {offsets = [0, 0], sizes = [8, 128], strides = [1, 1]} : vector<8x384xf32> to vector<8x128xf32>
    %324 = vector.extract_strided_slice %322 {offsets = [0, 0], sizes = [8, 128], strides = [1, 1]} : vector<8x384xf32> to vector<8x128xf32>
    %325 = arith.addf %323, %324 : vector<8x128xf32>
    %cst_151 = arith.constant 5.000000e-01 : f32
    %326 = vector.broadcast %cst_151 : f32 to vector<8x128xf32>
    %327 = arith.mulf %326, %325 : vector<8x128xf32>
    %328 = math.tanh %327 : vector<8x128xf32>
    %cst_152 = arith.constant 5.000000e-01 : f32
    %329 = vector.broadcast %cst_152 : f32 to vector<8x128xf32>
    %330 = arith.mulf %329, %328 : vector<8x128xf32>
    %cst_153 = arith.constant 5.000000e-01 : f32
    %331 = vector.broadcast %cst_153 : f32 to vector<8x128xf32>
    %332 = arith.addf %330, %331 : vector<8x128xf32>
    %333 = vector.extract_strided_slice %318 {offsets = [0, 128], sizes = [8, 128], strides = [1, 1]} : vector<8x384xf32> to vector<8x128xf32>
    %334 = vector.extract_strided_slice %322 {offsets = [0, 128], sizes = [8, 128], strides = [1, 1]} : vector<8x384xf32> to vector<8x128xf32>
    %335 = arith.addf %333, %334 : vector<8x128xf32>
    %cst_154 = arith.constant 5.000000e-01 : f32
    %336 = vector.broadcast %cst_154 : f32 to vector<8x128xf32>
    %337 = arith.mulf %336, %335 : vector<8x128xf32>
    %338 = math.tanh %337 : vector<8x128xf32>
    %cst_155 = arith.constant 5.000000e-01 : f32
    %339 = vector.broadcast %cst_155 : f32 to vector<8x128xf32>
    %340 = arith.mulf %339, %338 : vector<8x128xf32>
    %cst_156 = arith.constant 5.000000e-01 : f32
    %341 = vector.broadcast %cst_156 : f32 to vector<8x128xf32>
    %342 = arith.addf %340, %341 : vector<8x128xf32>
    %343 = vector.extract_strided_slice %318 {offsets = [0, 256], sizes = [8, 128], strides = [1, 1]} : vector<8x384xf32> to vector<8x128xf32>
    %344 = vector.extract_strided_slice %322 {offsets = [0, 256], sizes = [8, 128], strides = [1, 1]} : vector<8x384xf32> to vector<8x128xf32>
    %345 = arith.mulf %332, %344 : vector<8x128xf32>
    %346 = arith.addf %343, %345 : vector<8x128xf32>
    %347 = math.tanh %346 : vector<8x128xf32>
    %cst_157 = arith.constant 1.000000e+00 : f32
    %348 = vector.broadcast %cst_157 : f32 to vector<8x128xf32>
    %349 = arith.subf %348, %342 : vector<8x128xf32>
    %350 = arith.mulf %349, %347 : vector<8x128xf32>
    %351 = arith.mulf %342, %313 : vector<8x128xf32>
    %352 = arith.addf %350, %351 : vector<8x128xf32>
    %c3_158 = arith.constant 3 : index
    %c0_159 = arith.constant 0 : index
    %c0_160 = arith.constant 0 : index
    %353 = vector.load %arg10[%c3_158, %c0_159, %c0_160] : memref<4x8x128xf32, #tpu.memory_space<vmem>>, vector<1x8x128xf32>
    %354 = vector.shape_cast %353 : vector<1x8x128xf32> to vector<8x128xf32>
    %355 = vector.shape_cast %352 : vector<8x128xf32> to vector<1x8x128xf32>
    tpu.vector_store %arg10[%c3_158, %c0_159, %c0_160], %355 {strides = array<i32>} : memref<4x8x128xf32, #tpu.memory_space<vmem>>, vector<1x8x128xf32>,
    %c1_161 = arith.constant 1 : index
    %c0_162 = arith.constant 0 : index
    %c0_163 = arith.constant 0 : index
    %356 = vector.load %arg8[%c1_161, %c0_162, %c0_163] : memref<3x8x128xf32, #tpu.memory_space<vmem>>, vector<1x8x128xf32>
    %357 = vector.shape_cast %356 : vector<1x8x128xf32> to vector<8x128xf32>
    %358 = vector.shape_cast %352 : vector<8x128xf32> to vector<1x8x128xf32>
    tpu.vector_store %arg8[%c1_161, %c0_162, %c0_163], %358 {strides = array<i32>} : memref<3x8x128xf32, #tpu.memory_space<vmem>>, vector<1x8x128xf32>,
    %c0_164 = arith.constant 0 : index
    %c0_165 = arith.constant 0 : index
    %c0_166 = arith.constant 0 : index
    %359 = vector.load %arg7[%c0_164, %c0_165, %c0_166] : memref<4x8x128xf32, #tpu.memory_space<vmem>>, vector<4x8x128xf32>
    %c0_167 = arith.constant 0 : index
    %c0_168 = arith.constant 0 : index
    %c0_169 = arith.constant 0 : index
    %360 = vector.load %arg10[%c0_167, %c0_168, %c0_169] : memref<4x8x128xf32, #tpu.memory_space<vmem>>, vector<4x8x128xf32>
    %361 = arith.addf %359, %360 : vector<4x8x128xf32>
    %c0_170 = arith.constant 0 : index
    %c0_171 = arith.constant 0 : index
    %c0_172 = arith.constant 0 : index
    %362 = vector.load %arg7[%c0_170, %c0_171, %c0_172] : memref<4x8x128xf32, #tpu.memory_space<vmem>>, vector<4x8x128xf32>
    tpu.vector_store %arg7[%c0_170, %c0_171, %c0_172], %361 {strides = array<i32>} : memref<4x8x128xf32, #tpu.memory_space<vmem>>, vector<4x8x128xf32>,
    %c0_173 = arith.constant 0 : index
    %c0_174 = arith.constant 0 : index
    %c0_175 = arith.constant 0 : index
    %363 = vector.load %arg10[%c0_173, %c0_174, %c0_175] : memref<4x8x128xf32, #tpu.memory_space<vmem>>, vector<4x8x128xf32>
    %364 = vector.shape_cast %363 : vector<4x8x128xf32> to vector<32x128xf32>
    %365 = arith.truncf %364 : vector<32x128xf32> to vector<32x128xbf16>
    %c2_176 = arith.constant 2 : index
    %c0_177 = arith.constant 0 : index
    %c0_178 = arith.constant 0 : index
    %366 = vector.load %arg3[%c2_176, %c0_177, %c0_178] : memref<3x128x384xbf16, #tpu.memory_space<vmem>>, vector<1x128x384xbf16>
    %367 = vector.shape_cast %366 : vector<1x128x384xbf16> to vector<128x384xbf16>
    %cst_179 = arith.constant dense<0.000000e+00> : vector<32x384xf32>
    %368 = tpu.matmul %365, %367, %cst_179 {dimension_numbers = #tpu.dot_dimension_numbers<[1], [0], [0], [1], [0, 0, 1, 1], [], []>} : vector<32x128xbf16>, vector<128x384xbf16>, vector<32x384xf32> -> vector<32x384xf32>
    %c2_180 = arith.constant 2 : index
    %c0_181 = arith.constant 0 : index
    %c0_182 = arith.constant 0 : index
    %369 = vector.load %arg4[%c2_180, %c0_181, %c0_182] : memref<3x1x384xf32, #tpu.memory_space<vmem>>, vector<1x1x384xf32>
    %370 = vector.shape_cast %369 : vector<1x1x384xf32> to vector<1x384xf32>
    %371 = vector.broadcast %370 : vector<1x384xf32> to vector<32x384xf32>
    %372 = arith.addf %368, %371 : vector<32x384xf32>
    %373 = vector.shape_cast %372 : vector<32x384xf32> to vector<4x8x384xf32>
    %c0_183 = arith.constant 0 : index
    %c0_184 = arith.constant 0 : index
    %c0_185 = arith.constant 0 : index
    %374 = vector.load %arg9[%c0_183, %c0_184, %c0_185] : memref<4x8x384xf32, #tpu.memory_space<vmem>>, vector<4x8x384xf32>
    tpu.vector_store %arg9[%c0_183, %c0_184, %c0_185], %373 {strides = array<i32>} : memref<4x8x384xf32, #tpu.memory_space<vmem>>, vector<4x8x384xf32>,
    %c2_186 = arith.constant 2 : index
    %c0_187 = arith.constant 0 : index
    %c0_188 = arith.constant 0 : index
    %375 = vector.load %arg5[%c2_186, %c0_187, %c0_188] : memref<3x128x384xbf16, #tpu.memory_space<vmem>>, vector<1x128x384xbf16>
    %376 = vector.shape_cast %375 : vector<1x128x384xbf16> to vector<128x384xbf16>
    %c2_189 = arith.constant 2 : index
    %c0_190 = arith.constant 0 : index
    %c0_191 = arith.constant 0 : index
    %377 = vector.load %arg6[%c2_189, %c0_190, %c0_191] : memref<3x1x384xf32, #tpu.memory_space<vmem>>, vector<1x1x384xf32>
    %378 = vector.shape_cast %377 : vector<1x1x384xf32> to vector<1x384xf32>
    %c2_192 = arith.constant 2 : index
    %c0_193 = arith.constant 0 : index
    %c0_194 = arith.constant 0 : index
    %379 = vector.load %arg8[%c2_192, %c0_193, %c0_194] : memref<3x8x128xf32, #tpu.memory_space<vmem>>, vector<1x8x128xf32>
    %380 = vector.shape_cast %379 : vector<1x8x128xf32> to vector<8x128xf32>
    %c0_195 = arith.constant 0 : index
    %c0_196 = arith.constant 0 : index
    %c0_197 = arith.constant 0 : index
    %381 = vector.load %arg9[%c0_195, %c0_196, %c0_197] : memref<4x8x384xf32, #tpu.memory_space<vmem>>, vector<1x8x384xf32>
    %382 = vector.shape_cast %381 : vector<1x8x384xf32> to vector<8x384xf32>
    %383 = arith.truncf %380 : vector<8x128xf32> to vector<8x128xbf16>
    %cst_198 = arith.constant dense<0.000000e+00> : vector<8x384xf32>
    %384 = tpu.matmul %383, %376, %cst_198 {dimension_numbers = #tpu.dot_dimension_numbers<[1], [0], [0], [1], [0, 0, 1, 1], [], []>} : vector<8x128xbf16>, vector<128x384xbf16>, vector<8x384xf32> -> vector<8x384xf32>
    %385 = vector.broadcast %378 : vector<1x384xf32> to vector<8x384xf32>
    %386 = arith.addf %384, %385 : vector<8x384xf32>
    %387 = vector.extract_strided_slice %382 {offsets = [0, 0], sizes = [8, 128], strides = [1, 1]} : vector<8x384xf32> to vector<8x128xf32>
    %388 = vector.extract_strided_slice %386 {offsets = [0, 0], sizes = [8, 128], strides = [1, 1]} : vector<8x384xf32> to vector<8x128xf32>
    %389 = arith.addf %387, %388 : vector<8x128xf32>
    %cst_199 = arith.constant 5.000000e-01 : f32
    %390 = vector.broadcast %cst_199 : f32 to vector<8x128xf32>
    %391 = arith.mulf %390, %389 : vector<8x128xf32>
    %392 = math.tanh %391 : vector<8x128xf32>
    %cst_200 = arith.constant 5.000000e-01 : f32
    %393 = vector.broadcast %cst_200 : f32 to vector<8x128xf32>
    %394 = arith.mulf %393, %392 : vector<8x128xf32>
    %cst_201 = arith.constant 5.000000e-01 : f32
    %395 = vector.broadcast %cst_201 : f32 to vector<8x128xf32>
    %396 = arith.addf %394, %395 : vector<8x128xf32>
    %397 = vector.extract_strided_slice %382 {offsets = [0, 128], sizes = [8, 128], strides = [1, 1]} : vector<8x384xf32> to vector<8x128xf32>
    %398 = vector.extract_strided_slice %386 {offsets = [0, 128], sizes = [8, 128], strides = [1, 1]} : vector<8x384xf32> to vector<8x128xf32>
    %399 = arith.addf %397, %398 : vector<8x128xf32>
    %cst_202 = arith.constant 5.000000e-01 : f32
    %400 = vector.broadcast %cst_202 : f32 to vector<8x128xf32>
    %401 = arith.mulf %400, %399 : vector<8x128xf32>
    %402 = math.tanh %401 : vector<8x128xf32>
    %cst_203 = arith.constant 5.000000e-01 : f32
    %403 = vector.broadcast %cst_203 : f32 to vector<8x128xf32>
    %404 = arith.mulf %403, %402 : vector<8x128xf32>
    %cst_204 = arith.constant 5.000000e-01 : f32
    %405 = vector.broadcast %cst_204 : f32 to vector<8x128xf32>
    %406 = arith.addf %404, %405 : vector<8x128xf32>
    %407 = vector.extract_strided_slice %382 {offsets = [0, 256], sizes = [8, 128], strides = [1, 1]} : vector<8x384xf32> to vector<8x128xf32>
    %408 = vector.extract_strided_slice %386 {offsets = [0, 256], sizes = [8, 128], strides = [1, 1]} : vector<8x384xf32> to vector<8x128xf32>
    %409 = arith.mulf %396, %408 : vector<8x128xf32>
    %410 = arith.addf %407, %409 : vector<8x128xf32>
    %411 = math.tanh %410 : vector<8x128xf32>
    %cst_205 = arith.constant 1.000000e+00 : f32
    %412 = vector.broadcast %cst_205 : f32 to vector<8x128xf32>
    %413 = arith.subf %412, %406 : vector<8x128xf32>
    %414 = arith.mulf %413, %411 : vector<8x128xf32>
    %415 = arith.mulf %406, %380 : vector<8x128xf32>
    %416 = arith.addf %414, %415 : vector<8x128xf32>
    %c0_206 = arith.constant 0 : index
    %c0_207 = arith.constant 0 : index
    %c0_208 = arith.constant 0 : index
    %417 = vector.load %arg10[%c0_206, %c0_207, %c0_208] : memref<4x8x128xf32, #tpu.memory_space<vmem>>, vector<1x8x128xf32>
    %418 = vector.shape_cast %417 : vector<1x8x128xf32> to vector<8x128xf32>
    %419 = vector.shape_cast %416 : vector<8x128xf32> to vector<1x8x128xf32>
    tpu.vector_store %arg10[%c0_206, %c0_207, %c0_208], %419 {strides = array<i32>} : memref<4x8x128xf32, #tpu.memory_space<vmem>>, vector<1x8x128xf32>,
    %c1_209 = arith.constant 1 : index
    %c0_210 = arith.constant 0 : index
    %c0_211 = arith.constant 0 : index
    %420 = vector.load %arg9[%c1_209, %c0_210, %c0_211] : memref<4x8x384xf32, #tpu.memory_space<vmem>>, vector<1x8x384xf32>
    %421 = vector.shape_cast %420 : vector<1x8x384xf32> to vector<8x384xf32>
    %422 = arith.truncf %416 : vector<8x128xf32> to vector<8x128xbf16>
    %cst_212 = arith.constant dense<0.000000e+00> : vector<8x384xf32>
    %423 = tpu.matmul %422, %376, %cst_212 {dimension_numbers = #tpu.dot_dimension_numbers<[1], [0], [0], [1], [0, 0, 1, 1], [], []>} : vector<8x128xbf16>, vector<128x384xbf16>, vector<8x384xf32> -> vector<8x384xf32>
    %424 = vector.broadcast %378 : vector<1x384xf32> to vector<8x384xf32>
    %425 = arith.addf %423, %424 : vector<8x384xf32>
    %426 = vector.extract_strided_slice %421 {offsets = [0, 0], sizes = [8, 128], strides = [1, 1]} : vector<8x384xf32> to vector<8x128xf32>
    %427 = vector.extract_strided_slice %425 {offsets = [0, 0], sizes = [8, 128], strides = [1, 1]} : vector<8x384xf32> to vector<8x128xf32>
    %428 = arith.addf %426, %427 : vector<8x128xf32>
    %cst_213 = arith.constant 5.000000e-01 : f32
    %429 = vector.broadcast %cst_213 : f32 to vector<8x128xf32>
    %430 = arith.mulf %429, %428 : vector<8x128xf32>
    %431 = math.tanh %430 : vector<8x128xf32>
    %cst_214 = arith.constant 5.000000e-01 : f32
    %432 = vector.broadcast %cst_214 : f32 to vector<8x128xf32>
    %433 = arith.mulf %432, %431 : vector<8x128xf32>
    %cst_215 = arith.constant 5.000000e-01 : f32
    %434 = vector.broadcast %cst_215 : f32 to vector<8x128xf32>
    %435 = arith.addf %433, %434 : vector<8x128xf32>
    %436 = vector.extract_strided_slice %421 {offsets = [0, 128], sizes = [8, 128], strides = [1, 1]} : vector<8x384xf32> to vector<8x128xf32>
    %437 = vector.extract_strided_slice %425 {offsets = [0, 128], sizes = [8, 128], strides = [1, 1]} : vector<8x384xf32> to vector<8x128xf32>
    %438 = arith.addf %436, %437 : vector<8x128xf32>
    %cst_216 = arith.constant 5.000000e-01 : f32
    %439 = vector.broadcast %cst_216 : f32 to vector<8x128xf32>
    %440 = arith.mulf %439, %438 : vector<8x128xf32>
    %441 = math.tanh %440 : vector<8x128xf32>
    %cst_217 = arith.constant 5.000000e-01 : f32
    %442 = vector.broadcast %cst_217 : f32 to vector<8x128xf32>
    %443 = arith.mulf %442, %441 : vector<8x128xf32>
    %cst_218 = arith.constant 5.000000e-01 : f32
    %444 = vector.broadcast %cst_218 : f32 to vector<8x128xf32>
    %445 = arith.addf %443, %444 : vector<8x128xf32>
    %446 = vector.extract_strided_slice %421 {offsets = [0, 256], sizes = [8, 128], strides = [1, 1]} : vector<8x384xf32> to vector<8x128xf32>
    %447 = vector.extract_strided_slice %425 {offsets = [0, 256], sizes = [8, 128], strides = [1, 1]} : vector<8x384xf32> to vector<8x128xf32>
    %448 = arith.mulf %435, %447 : vector<8x128xf32>
    %449 = arith.addf %446, %448 : vector<8x128xf32>
    %450 = math.tanh %449 : vector<8x128xf32>
    %cst_219 = arith.constant 1.000000e+00 : f32
    %451 = vector.broadcast %cst_219 : f32 to vector<8x128xf32>
    %452 = arith.subf %451, %445 : vector<8x128xf32>
    %453 = arith.mulf %452, %450 : vector<8x128xf32>
    %454 = arith.mulf %445, %416 : vector<8x128xf32>
    %455 = arith.addf %453, %454 : vector<8x128xf32>
    %c1_220 = arith.constant 1 : index
    %c0_221 = arith.constant 0 : index
    %c0_222 = arith.constant 0 : index
    %456 = vector.load %arg10[%c1_220, %c0_221, %c0_222] : memref<4x8x128xf32, #tpu.memory_space<vmem>>, vector<1x8x128xf32>
    %457 = vector.shape_cast %456 : vector<1x8x128xf32> to vector<8x128xf32>
    %458 = vector.shape_cast %455 : vector<8x128xf32> to vector<1x8x128xf32>
    tpu.vector_store %arg10[%c1_220, %c0_221, %c0_222], %458 {strides = array<i32>} : memref<4x8x128xf32, #tpu.memory_space<vmem>>, vector<1x8x128xf32>,
    %c2_223 = arith.constant 2 : index
    %c0_224 = arith.constant 0 : index
    %c0_225 = arith.constant 0 : index
    %459 = vector.load %arg9[%c2_223, %c0_224, %c0_225] : memref<4x8x384xf32, #tpu.memory_space<vmem>>, vector<1x8x384xf32>
    %460 = vector.shape_cast %459 : vector<1x8x384xf32> to vector<8x384xf32>
    %461 = arith.truncf %455 : vector<8x128xf32> to vector<8x128xbf16>
    %cst_226 = arith.constant dense<0.000000e+00> : vector<8x384xf32>
    %462 = tpu.matmul %461, %376, %cst_226 {dimension_numbers = #tpu.dot_dimension_numbers<[1], [0], [0], [1], [0, 0, 1, 1], [], []>} : vector<8x128xbf16>, vector<128x384xbf16>, vector<8x384xf32> -> vector<8x384xf32>
    %463 = vector.broadcast %378 : vector<1x384xf32> to vector<8x384xf32>
    %464 = arith.addf %462, %463 : vector<8x384xf32>
    %465 = vector.extract_strided_slice %460 {offsets = [0, 0], sizes = [8, 128], strides = [1, 1]} : vector<8x384xf32> to vector<8x128xf32>
    %466 = vector.extract_strided_slice %464 {offsets = [0, 0], sizes = [8, 128], strides = [1, 1]} : vector<8x384xf32> to vector<8x128xf32>
    %467 = arith.addf %465, %466 : vector<8x128xf32>
    %cst_227 = arith.constant 5.000000e-01 : f32
    %468 = vector.broadcast %cst_227 : f32 to vector<8x128xf32>
    %469 = arith.mulf %468, %467 : vector<8x128xf32>
    %470 = math.tanh %469 : vector<8x128xf32>
    %cst_228 = arith.constant 5.000000e-01 : f32
    %471 = vector.broadcast %cst_228 : f32 to vector<8x128xf32>
    %472 = arith.mulf %471, %470 : vector<8x128xf32>
    %cst_229 = arith.constant 5.000000e-01 : f32
    %473 = vector.broadcast %cst_229 : f32 to vector<8x128xf32>
    %474 = arith.addf %472, %473 : vector<8x128xf32>
    %475 = vector.extract_strided_slice %460 {offsets = [0, 128], sizes = [8, 128], strides = [1, 1]} : vector<8x384xf32> to vector<8x128xf32>
    %476 = vector.extract_strided_slice %464 {offsets = [0, 128], sizes = [8, 128], strides = [1, 1]} : vector<8x384xf32> to vector<8x128xf32>
    %477 = arith.addf %475, %476 : vector<8x128xf32>
    %cst_230 = arith.constant 5.000000e-01 : f32
    %478 = vector.broadcast %cst_230 : f32 to vector<8x128xf32>
    %479 = arith.mulf %478, %477 : vector<8x128xf32>
    %480 = math.tanh %479 : vector<8x128xf32>
    %cst_231 = arith.constant 5.000000e-01 : f32
    %481 = vector.broadcast %cst_231 : f32 to vector<8x128xf32>
    %482 = arith.mulf %481, %480 : vector<8x128xf32>
    %cst_232 = arith.constant 5.000000e-01 : f32
    %483 = vector.broadcast %cst_232 : f32 to vector<8x128xf32>
    %484 = arith.addf %482, %483 : vector<8x128xf32>
    %485 = vector.extract_strided_slice %460 {offsets = [0, 256], sizes = [8, 128], strides = [1, 1]} : vector<8x384xf32> to vector<8x128xf32>
    %486 = vector.extract_strided_slice %464 {offsets = [0, 256], sizes = [8, 128], strides = [1, 1]} : vector<8x384xf32> to vector<8x128xf32>
    %487 = arith.mulf %474, %486 : vector<8x128xf32>
    %488 = arith.addf %485, %487 : vector<8x128xf32>
    %489 = math.tanh %488 : vector<8x128xf32>
    %cst_233 = arith.constant 1.000000e+00 : f32
    %490 = vector.broadcast %cst_233 : f32 to vector<8x128xf32>
    %491 = arith.subf %490, %484 : vector<8x128xf32>
    %492 = arith.mulf %491, %489 : vector<8x128xf32>
    %493 = arith.mulf %484, %455 : vector<8x128xf32>
    %494 = arith.addf %492, %493 : vector<8x128xf32>
    %c2_234 = arith.constant 2 : index
    %c0_235 = arith.constant 0 : index
    %c0_236 = arith.constant 0 : index
    %495 = vector.load %arg10[%c2_234, %c0_235, %c0_236] : memref<4x8x128xf32, #tpu.memory_space<vmem>>, vector<1x8x128xf32>
    %496 = vector.shape_cast %495 : vector<1x8x128xf32> to vector<8x128xf32>
    %497 = vector.shape_cast %494 : vector<8x128xf32> to vector<1x8x128xf32>
    tpu.vector_store %arg10[%c2_234, %c0_235, %c0_236], %497 {strides = array<i32>} : memref<4x8x128xf32, #tpu.memory_space<vmem>>, vector<1x8x128xf32>,
    %c3_237 = arith.constant 3 : index
    %c0_238 = arith.constant 0 : index
    %c0_239 = arith.constant 0 : index
    %498 = vector.load %arg9[%c3_237, %c0_238, %c0_239] : memref<4x8x384xf32, #tpu.memory_space<vmem>>, vector<1x8x384xf32>
    %499 = vector.shape_cast %498 : vector<1x8x384xf32> to vector<8x384xf32>
    %500 = arith.truncf %494 : vector<8x128xf32> to vector<8x128xbf16>
    %cst_240 = arith.constant dense<0.000000e+00> : vector<8x384xf32>
    %501 = tpu.matmul %500, %376, %cst_240 {dimension_numbers = #tpu.dot_dimension_numbers<[1], [0], [0], [1], [0, 0, 1, 1], [], []>} : vector<8x128xbf16>, vector<128x384xbf16>, vector<8x384xf32> -> vector<8x384xf32>
    %502 = vector.broadcast %378 : vector<1x384xf32> to vector<8x384xf32>
    %503 = arith.addf %501, %502 : vector<8x384xf32>
    %504 = vector.extract_strided_slice %499 {offsets = [0, 0], sizes = [8, 128], strides = [1, 1]} : vector<8x384xf32> to vector<8x128xf32>
    %505 = vector.extract_strided_slice %503 {offsets = [0, 0], sizes = [8, 128], strides = [1, 1]} : vector<8x384xf32> to vector<8x128xf32>
    %506 = arith.addf %504, %505 : vector<8x128xf32>
    %cst_241 = arith.constant 5.000000e-01 : f32
    %507 = vector.broadcast %cst_241 : f32 to vector<8x128xf32>
    %508 = arith.mulf %507, %506 : vector<8x128xf32>
    %509 = math.tanh %508 : vector<8x128xf32>
    %cst_242 = arith.constant 5.000000e-01 : f32
    %510 = vector.broadcast %cst_242 : f32 to vector<8x128xf32>
    %511 = arith.mulf %510, %509 : vector<8x128xf32>
    %cst_243 = arith.constant 5.000000e-01 : f32
    %512 = vector.broadcast %cst_243 : f32 to vector<8x128xf32>
    %513 = arith.addf %511, %512 : vector<8x128xf32>
    %514 = vector.extract_strided_slice %499 {offsets = [0, 128], sizes = [8, 128], strides = [1, 1]} : vector<8x384xf32> to vector<8x128xf32>
    %515 = vector.extract_strided_slice %503 {offsets = [0, 128], sizes = [8, 128], strides = [1, 1]} : vector<8x384xf32> to vector<8x128xf32>
    %516 = arith.addf %514, %515 : vector<8x128xf32>
    %cst_244 = arith.constant 5.000000e-01 : f32
    %517 = vector.broadcast %cst_244 : f32 to vector<8x128xf32>
    %518 = arith.mulf %517, %516 : vector<8x128xf32>
    %519 = math.tanh %518 : vector<8x128xf32>
    %cst_245 = arith.constant 5.000000e-01 : f32
    %520 = vector.broadcast %cst_245 : f32 to vector<8x128xf32>
    %521 = arith.mulf %520, %519 : vector<8x128xf32>
    %cst_246 = arith.constant 5.000000e-01 : f32
    %522 = vector.broadcast %cst_246 : f32 to vector<8x128xf32>
    %523 = arith.addf %521, %522 : vector<8x128xf32>
    %524 = vector.extract_strided_slice %499 {offsets = [0, 256], sizes = [8, 128], strides = [1, 1]} : vector<8x384xf32> to vector<8x128xf32>
    %525 = vector.extract_strided_slice %503 {offsets = [0, 256], sizes = [8, 128], strides = [1, 1]} : vector<8x384xf32> to vector<8x128xf32>
    %526 = arith.mulf %513, %525 : vector<8x128xf32>
    %527 = arith.addf %524, %526 : vector<8x128xf32>
    %528 = math.tanh %527 : vector<8x128xf32>
    %cst_247 = arith.constant 1.000000e+00 : f32
    %529 = vector.broadcast %cst_247 : f32 to vector<8x128xf32>
    %530 = arith.subf %529, %523 : vector<8x128xf32>
    %531 = arith.mulf %530, %528 : vector<8x128xf32>
    %532 = arith.mulf %523, %494 : vector<8x128xf32>
    %533 = arith.addf %531, %532 : vector<8x128xf32>
    %c3_248 = arith.constant 3 : index
    %c0_249 = arith.constant 0 : index
    %c0_250 = arith.constant 0 : index
    %534 = vector.load %arg10[%c3_248, %c0_249, %c0_250] : memref<4x8x128xf32, #tpu.memory_space<vmem>>, vector<1x8x128xf32>
    %535 = vector.shape_cast %534 : vector<1x8x128xf32> to vector<8x128xf32>
    %536 = vector.shape_cast %533 : vector<8x128xf32> to vector<1x8x128xf32>
    tpu.vector_store %arg10[%c3_248, %c0_249, %c0_250], %536 {strides = array<i32>} : memref<4x8x128xf32, #tpu.memory_space<vmem>>, vector<1x8x128xf32>,
    %c2_251 = arith.constant 2 : index
    %c0_252 = arith.constant 0 : index
    %c0_253 = arith.constant 0 : index
    %537 = vector.load %arg8[%c2_251, %c0_252, %c0_253] : memref<3x8x128xf32, #tpu.memory_space<vmem>>, vector<1x8x128xf32>
    %538 = vector.shape_cast %537 : vector<1x8x128xf32> to vector<8x128xf32>
    %539 = vector.shape_cast %533 : vector<8x128xf32> to vector<1x8x128xf32>
    tpu.vector_store %arg8[%c2_251, %c0_252, %c0_253], %539 {strides = array<i32>} : memref<3x8x128xf32, #tpu.memory_space<vmem>>, vector<1x8x128xf32>,
    %c0_254 = arith.constant 0 : index
    %c0_255 = arith.constant 0 : index
    %c0_256 = arith.constant 0 : index
    %540 = vector.load %arg7[%c0_254, %c0_255, %c0_256] : memref<4x8x128xf32, #tpu.memory_space<vmem>>, vector<4x8x128xf32>
    %c0_257 = arith.constant 0 : index
    %c0_258 = arith.constant 0 : index
    %c0_259 = arith.constant 0 : index
    %541 = vector.load %arg10[%c0_257, %c0_258, %c0_259] : memref<4x8x128xf32, #tpu.memory_space<vmem>>, vector<4x8x128xf32>
    %542 = arith.addf %540, %541 : vector<4x8x128xf32>
    %c0_260 = arith.constant 0 : index
    %c0_261 = arith.constant 0 : index
    %c0_262 = arith.constant 0 : index
    %543 = vector.load %arg7[%c0_260, %c0_261, %c0_262] : memref<4x8x128xf32, #tpu.memory_space<vmem>>, vector<4x8x128xf32>
    tpu.vector_store %arg7[%c0_260, %c0_261, %c0_262], %542 {strides = array<i32>} : memref<4x8x128xf32, #tpu.memory_space<vmem>>, vector<4x8x128xf32>,
    return
  }
  func.func @transform_0(%arg0: i32, %arg1: i32) -> (i32, i32, i32) {
    %c0_i32 = arith.constant 0 : i32
    %c0_i32_0 = arith.constant 0 : i32
    return %arg1, %arg0, %c0_i32 : i32, i32, i32
  }
  func.func @transform_1(%arg0: i32, %arg1: i32) -> (i32, i32, i32) {
    %c0_i32 = arith.constant 0 : i32
    %c0_i32_0 = arith.constant 0 : i32
    %c0_i32_1 = arith.constant 0 : i32
    %c0_i32_2 = arith.constant 0 : i32
    return %c0_i32, %c0_i32_0, %c0_i32_1 : i32, i32, i32
  }
  func.func @transform_2(%arg0: i32, %arg1: i32) -> (i32, i32, i32) {
    %c0_i32 = arith.constant 0 : i32
    %c0_i32_0 = arith.constant 0 : i32
    %c0_i32_1 = arith.constant 0 : i32
    %c0_i32_2 = arith.constant 0 : i32
    return %c0_i32, %c0_i32_0, %c0_i32_1 : i32, i32, i32
  }
  func.func @transform_3(%arg0: i32, %arg1: i32) -> (i32, i32, i32) {
    %c0_i32 = arith.constant 0 : i32
    %c0_i32_0 = arith.constant 0 : i32
    %c0_i32_1 = arith.constant 0 : i32
    %c0_i32_2 = arith.constant 0 : i32
    return %c0_i32, %c0_i32_0, %c0_i32_1 : i32, i32, i32
  }
  func.func @transform_4(%arg0: i32, %arg1: i32) -> (i32, i32, i32) {
    %c0_i32 = arith.constant 0 : i32
    %c0_i32_0 = arith.constant 0 : i32
    %c0_i32_1 = arith.constant 0 : i32
    %c0_i32_2 = arith.constant 0 : i32
    return %c0_i32, %c0_i32_0, %c0_i32_1 : i32, i32, i32
  }
  func.func @transform_5(%arg0: i32, %arg1: i32) -> (i32, i32, i32) {
    %c0_i32 = arith.constant 0 : i32
    %c0_i32_0 = arith.constant 0 : i32
    return %arg1, %arg0, %c0_i32 : i32, i32, i32
  }
}

</mosaic_0001>

<llo_original>
// kernel: df_decoder_forward.5
$region0: #{df_decoder_forward.5}
  #allocation0 [shape = 'u32[]', space=smem, size = 0x4, offset = 0x4, fixed_abs, tag = 'smem constant byte address 0x4 - core index']
  #allocation1 [shape = 'u32[144,128]{1,0:T(1,128)}', space=vmem, size = 0x12000, scoped, tag = 'internal scratch']
  %s0 = inlined_call_operand.vmem [shape: f32[8,1024], index: 0, kind: input, shape index: {}]
  %s1 = inlined_call_operand.vmem [shape: f32[4,8], index: 1, kind: input, shape index: {}]
  %s2 = inlined_call_operand.vmem [shape: f32[4,1], index: 2, kind: output, shape index: {0}]
  %s3 = inlined_call_operand.vmem [shape: f32[4,1], index: 3, kind: output, shape index: {1}]
  %4 = xla_tuple %s2, %s3
  %s5 = sld [smem:[#allocation0]]
  $region53: #{df_decoder_forward.5} parent=0
    _
  %s7 = ssub.s32 1, %s5
  %s8 = scalar_select 0, %s7, %s5
  loop: start=0, step=1, limit=4
  $region2: #{df_decoder_forward.5} parent=0 // loop_pre_header
    _
  $region3: #{df_decoder_forward.5} parent=0 // loop_header
    %s10 = sphi 0, %s14
    %p11 = scmp.ge.s32.totalorder %s10, 4
    %s20 = sphi 0, %s22
    %s23 = sphi 0, %s20
    %s24 = sphi 0, %s23
    %s40 = sphi 0, %s24
    %s44 = sphi 0, %s44
    %s46 = sphi 0, %s44
    %s47 = sphi 0, %s46
    %s61 = sphi 0, %s47
    %s65 = sphi 0, %s65
    %s67 = sphi 0, %s65
    %s68 = sphi 0, %s67
    %s82 = sphi 0, %s68
    %s86 = sphi 0, %s86
    %s88 = sphi 0, %s86
    %s89 = sphi 0, %s88
    %s103 = sphi 0, %s89
  $region4: #{df_decoder_forward.5} parent=0 // loop_header_branch
    %13 = sbr.rel (%p11) target = $region8
  $region5: #{df_decoder_forward.5} parent=0 // loop_body
    %s15 = ssub.s32 %s10, 1
    %s16 = ssub.s32 %s10, 2
    %s17 = sadd.s32 %s10, 1
    %s18 = ssub.s32 %s10, %s17
    %p19 = scmp.eq.s32.totalorder %s18, 0
    %s21 = sadd.s32 %s20, 1
    %s22 = scalar_select %p19, %s20, %s21
    %p25 = pneg %p19
    %p26 = scmp.eq.s32.totalorder %s10, 1
    %p27 = por %p25, %p26
    %p28 = scmp.ne.s32.totalorder %s20, %s23
    %p29 = scmp.eq.s32.totalorder %s10, 0
    %p30 = por %p28, %p29
    %p31 = scmp.ne.s32.totalorder %s20, %s23
    %p32 = scmp.eq.s32.totalorder %s15, 1
    %p33 = por %p31, %p32
    %p34 = scmp.ne.s32.totalorder %s23, %s24
    %p35 = scmp.eq.s32.totalorder %s15, 0
    %p36 = por %p34, %p35
    %p37 = scmp.ne.s32.totalorder %s23, %s24
    %p38 = scmp.eq.s32.totalorder %s16, 1
    %p39 = por %p37, %p38
    %p41 = scmp.ne.s32.totalorder %s24, %s40
    %p42 = scmp.eq.s32.totalorder %s16, 0
    %p43 = por %p41, %p42
    %s45 = sadd.s32 %s44, 1
    %p48 = scmp.eq.s32.totalorder %s10, 1
    %p49 = scmp.ne.s32.totalorder %s44, %s46
    %p50 = scmp.eq.s32.totalorder %s10, 0
    %p51 = por %p49, %p50
    %p52 = scmp.ne.s32.totalorder %s44, %s46
    %p53 = scmp.eq.s32.totalorder %s15, 1
    %p54 = por %p52, %p53
    %p55 = scmp.ne.s32.totalorder %s46, %s47
    %p56 = scmp.eq.s32.totalorder %s15, 0
    %p57 = por %p55, %p56
    %p58 = scmp.ne.s32.totalorder %s46, %s47
    %p59 = scmp.eq.s32.totalorder %s16, 1
    %p60 = por %p58, %p59
    %p62 = scmp.ne.s32.totalorder %s47, %s61
    %p63 = scmp.eq.s32.totalorder %s16, 0
    %p64 = por %p62, %p63
    %s66 = sadd.s32 %s65, 1
    %p69 = scmp.eq.s32.totalorder %s10, 1
    %p70 = scmp.ne.s32.totalorder %s65, %s67
    %p71 = scmp.eq.s32.totalorder %s10, 0
    %p72 = por %p70, %p71
    %p73 = scmp.ne.s32.totalorder %s65, %s67
    %p74 = scmp.eq.s32.totalorder %s15, 1
    %p75 = por %p73, %p74
    %p76 = scmp.ne.s32.totalorder %s67, %s68
    %p77 = scmp.eq.s32.totalorder %s15, 0
    %p78 = por %p76, %p77
    %p79 = scmp.ne.s32.totalorder %s67, %s68
    %p80 = scmp.eq.s32.totalorder %s16, 1
    %p81 = por %p79, %p80
    %p83 = scmp.ne.s32.totalorder %s68, %s82
    %p84 = scmp.eq.s32.totalorder %s16, 0
    %p85 = por %p83, %p84
    %s87 = sadd.s32 %s86, 1
    %p90 = scmp.eq.s32.totalorder %s10, 1
    %p91 = scmp.ne.s32.totalorder %s86, %s88
    %p92 = scmp.eq.s32.totalorder %s10, 0
    %p93 = por %p91, %p92
    %p94 = scmp.ne.s32.totalorder %s86, %s88
    %p95 = scmp.eq.s32.totalorder %s15, 1
    %p96 = por %p94, %p95
    %p97 = scmp.ne.s32.totalorder %s88, %s89
    %p98 = scmp.eq.s32.totalorder %s15, 0
    %p99 = por %p97, %p98
    %p100 = scmp.ne.s32.totalorder %s88, %s89
    %p101 = scmp.eq.s32.totalorder %s16, 1
    %p102 = por %p100, %p101
    %p104 = scmp.ne.s32.totalorder %s89, %s103
    %p105 = scmp.eq.s32.totalorder %s16, 0
    %p106 = por %p104, %p105
    %p107 = scmp.le.s32.totalorder 1, %s10
    %p108 = scmp.lt.s32.totalorder %s10, 3
    %p109 = pnand %p107, %p108
    %p110 = pneg %p109
    // Predicated region
    $region9: #{df_decoder_forward.5} parent=5 // pred_check
      _
    $region10: #{df_decoder_forward.5} parent=5 // pred_check_branch
      %112 = sbr.rel (%p109) target = $region12
    $region11: #{df_decoder_forward.5} parent=5 // pred_region
      %s113 = ssub.s32 %s10, 1
      // Predicated region
      $region13: #{df_decoder_forward.5} parent=11 // pred_check
        %p114 = pneg %p57
      $region14: #{df_decoder_forward.5} parent=11 // pred_check_branch
        %116 = sbr.rel (%p114) target = $region16
      $region15: #{df_decoder_forward.5} parent=11 // pred_region
        _
      $region16: #{df_decoder_forward.5} parent=11 // pred_fallthru
        _
    $region12: #{df_decoder_forward.5} parent=5 // pred_fallthru
      _
    %p117 = scmp.lt.s32.totalorder %s10, 2
    // Predicated region
    $region17: #{df_decoder_forward.5} parent=5 // pred_check
      %p118 = pneg %p117
    $region18: #{df_decoder_forward.5} parent=5 // pred_check_branch
      %120 = sbr.rel (%p118) target = $region20
    $region19: #{df_decoder_forward.5} parent=5 // pred_region
      // Predicated region
      $region21: #{df_decoder_forward.5} parent=19 // pred_check
        %p121 = pneg %p30
      $region22: #{df_decoder_forward.5} parent=19 // pred_check_branch
        %123 = sbr.rel (%p121) target = $region24
      $region23: #{df_decoder_forward.5} parent=19 // pred_region
        %s124 = smul.u32 4, %s10
        %p125 = scmp.lt.s32.totalorder %s124, 7
        %s126 = scalar_select %p125, %s124, 7
        %s127 = smul.addr %s126, 8
        %s128 = scalar_lea.vmem %s0, %s127
        %s129 = smul.u32 4, %s10
      $region24: #{df_decoder_forward.5} parent=19 // pred_fallthru
        _
    $region20: #{df_decoder_forward.5} parent=5 // pred_fallthru
      _
    %p130 = scmp.le.s32.totalorder 1, %s10
    %p131 = scmp.lt.s32.totalorder %s10, 3
    %p132 = pnand %p130, %p131
    %p133 = pneg %p132
    // Predicated region
    $region25: #{df_decoder_forward.5} parent=5 // pred_check
      _
    $region26: #{df_decoder_forward.5} parent=5 // pred_check_branch
      %135 = sbr.rel (%p132) target = $region28
    $region27: #{df_decoder_forward.5} parent=5 // pred_region
      %s136 = ssub.s32 %s10, 1
      %s137 = smul.u32 4, %s15
      %p138 = scmp.lt.s32.totalorder %s137, 7
      %s139 = scalar_select %p138, %s137, 7
      %s140 = smul.addr %s139, 8
      %s141 = scalar_lea.vmem %s0, %s140
      %p142 = pneg %p36
      %p143 = pneg %p33
      %p144 = pneg %p57
      %p145 = pneg %p54
      %p146 = pneg %p78
      %p147 = pneg %p75
      %p148 = pneg %p99
      %p149 = pneg %p96
      %s150 = smul.u32 4, %s15
      %p151 = scmp.lt.s32.totalorder %s150, 7
      %s152 = scalar_select %p151, %s150, 7
      %s153 = smul.addr %s152, 8
      %s154 = scalar_lea.vmem %s0, %s153
      %s155 = smul.u32 4, %s15
      %p156 = scmp.eq.s32.totalorder %s15, 0
      // Predicated region
      $region29: #{df_decoder_forward.5} parent=27 // pred_check
        %p157 = pneg %p156
      $region30: #{df_decoder_forward.5} parent=27 // pred_check_branch
        %159 = sbr.rel (%p157) target = $region32
      $region31: #{df_decoder_forward.5} parent=27 // pred_region
        %vm160 = vcmask 3072
        %161 = vst.msk [vmem:[%s2] sm:$0xf] %vm160, 0.0
        %162 = vst.msk [vmem:[%s3] sm:$0xf] %vm160, 0.0
      $region32: #{df_decoder_forward.5} parent=27 // pred_fallthru
        _
      %v163 = vld [vmem:[%s1] sm:$0xf]
      %v164 = vld [vmem:[%s154] sm:$0xff]
      %v165 = vld [vmem:[%s154 + $0x8] sm:$0xff]
      %v166 = vld [vmem:[%s154 + $0x10] sm:$0xff]
      %v167 = vld [vmem:[%s154 + $0x18] sm:$0xff]
      %vm168 = vcmask 64512
      %v170 = vsel %vm168, %v163, 0
      %172 = vmatprep.subr.mxu0 %v165
      %173 = vmatpush1.msra.mxu0 %v164
      %174 = vmatprep.subr.mxu0 0.0
      %175 = vmatpush1.msra.mxu0 0.0
      %176 = vmatprep.subr.mxu0 0.0
      %177 = vmatpush1.msra.mxu0 0.0
      %178 = vmatprep.subr.mxu0 0.0
      %179 = vmatpush1.msra.mxu0 0.0
      %180 = vmatprep.subr.mxu0 0.0
      %181 = vmatpush1.msra.mxu0 0.0
      %182 = vmatprep.subr.mxu0 0.0
      %183 = vmatpush1.msra.mxu0 0.0
      %184 = vmatprep.subr.mxu0 0.0
      %185 = vmatpush1.msra.mxu0 0.0
      %186 = vmatprep.subr.mxu0 0.0
      %187 = vmatpush1.msra.mxu0 0.0
      %188 = vmatprep.subr.mxu0 0.0
      %189 = vmatpush1.msra.mxu0 0.0
      %190 = vmatprep.subr.mxu0 0.0
      %191 = vmatpush1.msra.mxu0 0.0
      %192 = vmatprep.subr.mxu0 0.0
      %193 = vmatpush1.msra.mxu0 0.0
      %194 = vmatprep.subr.mxu0 0.0
      %195 = vmatpush1.msra.mxu0 0.0
      %196 = vmatprep.subr.mxu0 0.0
      %197 = vmatpush1.msra.mxu0 0.0
      %198 = vmatprep.subr.mxu0 0.0
      %199 = vmatpush1.msra.mxu0 0.0
      %200 = vmatprep.subr.mxu0 0.0
      %201 = vmatpush1.msra.mxu0 0.0
      %202 = vmatprep.subr.mxu0 0.0
      %203 = vmatpush1.msra.mxu0 0.0
      %204 = vmatprep.subr.mxu0 0.0
      %205 = vmatpush1.msra.mxu0 0.0
      %206 = vmatprep.subr.mxu0 0.0
      %207 = vmatpush1.msra.mxu0 0.0
      %208 = vmatprep.subr.mxu0 0.0
      %209 = vmatpush1.msra.mxu0 0.0
      %210 = vmatprep.subr.mxu0 0.0
      %211 = vmatpush1.msra.mxu0 0.0
      %212 = vmatprep.subr.mxu0 0.0
      %213 = vmatpush1.msra.mxu0 0.0
      %214 = vmatprep.subr.mxu0 0.0
      %215 = vmatpush1.msra.mxu0 0.0
      %216 = vmatprep.subr.mxu0 0.0
      %217 = vmatpush1.msra.mxu0 0.0
      %218 = vmatprep.subr.mxu0 0.0
      %219 = vmatpush1.msra.mxu0 0.0
      %220 = vmatprep.subr.mxu0 0.0
      %221 = vmatpush1.msra.mxu0 0.0
      %222 = vmatprep.subr.mxu0 0.0
      %223 = vmatpush1.msra.mxu0 0.0
      %224 = vmatprep.subr.mxu0 0.0
      %225 = vmatpush1.msra.mxu0 0.0
      %226 = vmatprep.subr.mxu0 0.0
      %227 = vmatpush1.msra.mxu0 0.0
      %228 = vmatprep.subr.mxu0 0.0
      %229 = vmatpush1.msra.mxu0 0.0
      %230 = vmatprep.subr.mxu0 0.0
      %231 = vmatpush1.msra.mxu0 0.0
      %232 = vmatprep.subr.mxu0 0.0
      %233 = vmatpush1.msra.mxu0 0.0
      %234 = vmatprep.subr.mxu0 0.0
      %235 = vmatpush1.msra.mxu0 0.0
      %236 = vmatprep.mubr.f32.mxu0 0.0
      %237 = vmatmul.mubr.f32.gmra.mrb[0].mxu0 %v170
      %v238 = vpop.f32.mrb[0].mxu0
      %v239 = vadd.f32 0.0, %v238
      %v240 = vpop.f32.mrb[0].mxu0
      %v241 = vadd.f32 0.0, %v240
      %242 = vdwg.mxu0
      %243 = vmatprep.subr.mxu0 %v167
      %244 = vmatpush1.msra.mxu0 %v166
      %245 = vmatprep.subr.mxu0 0.0
      %246 = vmatpush1.msra.mxu0 0.0
      %247 = vmatprep.subr.mxu0 0.0
      %248 = vmatpush1.msra.mxu0 0.0
      %249 = vmatprep.subr.mxu0 0.0
      %250 = vmatpush1.msra.mxu0 0.0
      %251 = vmatprep.subr.mxu0 0.0
      %252 = vmatpush1.msra.mxu0 0.0
      %253 = vmatprep.subr.mxu0 0.0
      %254 = vmatpush1.msra.mxu0 0.0
      %255 = vmatprep.subr.mxu0 0.0
      %256 = vmatpush1.msra.mxu0 0.0
      %257 = vmatprep.subr.mxu0 0.0
      %258 = vmatpush1.msra.mxu0 0.0
      %259 = vmatprep.subr.mxu0 0.0
      %260 = vmatpush1.msra.mxu0 0.0
      %261 = vmatprep.subr.mxu0 0.0
      %262 = vmatpush1.msra.mxu0 0.0
      %263 = vmatprep.subr.mxu0 0.0
      %264 = vmatpush1.msra.mxu0 0.0
      %265 = vmatprep.subr.mxu0 0.0
      %266 = vmatpush1.msra.mxu0 0.0
      %267 = vmatprep.subr.mxu0 0.0
      %268 = vmatpush1.msra.mxu0 0.0
      %269 = vmatprep.subr.mxu0 0.0
      %270 = vmatpush1.msra.mxu0 0.0
      %271 = vmatprep.subr.mxu0 0.0
      %272 = vmatpush1.msra.mxu0 0.0
      %273 = vmatprep.subr.mxu0 0.0
      %274 = vmatpush1.msra.mxu0 0.0
      %275 = vmatprep.subr.mxu0 0.0
      %276 = vmatpush1.msra.mxu0 0.0
      %277 = vmatprep.subr.mxu0 0.0
      %278 = vmatpush1.msra.mxu0 0.0
      %279 = vmatprep.subr.mxu0 0.0
      %280 = vmatpush1.msra.mxu0 0.0
      %281 = vmatprep.subr.mxu0 0.0
      %282 = vmatpush1.msra.mxu0 0.0
      %283 = vmatprep.subr.mxu0 0.0
      %284 = vmatpush1.msra.mxu0 0.0
      %285 = vmatprep.subr.mxu0 0.0
      %286 = vmatpush1.msra.mxu0 0.0
      %287 = vmatprep.subr.mxu0 0.0
      %288 = vmatpush1.msra.mxu0 0.0
      %289 = vmatprep.subr.mxu0 0.0
      %290 = vmatpush1.msra.mxu0 0.0
      %291 = vmatprep.subr.mxu0 0.0
      %292 = vmatpush1.msra.mxu0 0.0
      %293 = vmatprep.subr.mxu0 0.0
      %294 = vmatpush1.msra.mxu0 0.0
      %295 = vmatprep.subr.mxu0 0.0
      %296 = vmatpush1.msra.mxu0 0.0
      %297 = vmatprep.subr.mxu0 0.0
      %298 = vmatpush1.msra.mxu0 0.0
      %299 = vmatprep.subr.mxu0 0.0
      %300 = vmatpush1.msra.mxu0 0.0
      %301 = vmatprep.subr.mxu0 0.0
      %302 = vmatpush1.msra.mxu0 0.0
      %303 = vmatprep.subr.mxu0 0.0
      %304 = vmatpush1.msra.mxu0 0.0
      %305 = vmatprep.subr.mxu0 0.0
      %306 = vmatpush1.msra.mxu0 0.0
      %307 = vmatprep.mubr.f32.mxu0 0.0
      %308 = vmatmul.mubr.f32.gmra.mrb[0].mxu0 %v170
      %v309 = vpop.f32.mrb[0].mxu0
      %v310 = vadd.f32 0.0, %v309
      %v311 = vpop.f32.mrb[0].mxu0
      %v312 = vadd.f32 0.0, %v311
      %313 = vdwg.mxu0
      %v314 = vld [vmem:[%s2] sm:$0xf]
      %vm315 = vcmask 1043456
      %v316 = vsel %vm315, %v239, 0.0
      %v317 = vsel %vm315, %v241, 0.0
      %v318 = vadd.f32 %v316, %v317
      %v319 = vsel %vm315, %v310, 0.0
      %v320 = vadd.f32 %v318, %v319
      %v321 = vsel %vm315, %v312, 0.0
      %v322 = vadd.f32 %v320, %v321
      %323 = vadd.xlane.f32.xlu0 %v322
      %v324 = vpop.xlane.xlu0 %323
      %v325 = vadd.f32 %v314, %v324
      %vm326 = vcmask 3072
      %327 = vst.msk [vmem:[%s2] sm:$0xf] %vm326, %v325
      %v328 = vld [vmem:[%s3] sm:$0xf]
      %v329 = vmul.f32 %v239, %v239
      %v330 = vmul.f32 %v241, %v241
      %v331 = vmul.f32 %v310, %v310
      %v332 = vmul.f32 %v312, %v312
      %v333 = vsel %vm315, %v329, 0.0
      %v334 = vsel %vm315, %v330, 0.0
      %v335 = vadd.f32 %v333, %v334
      %v336 = vsel %vm315, %v331, 0.0
      %v337 = vadd.f32 %v335, %v336
      %v338 = vsel %vm315, %v332, 0.0
      %v339 = vadd.f32 %v337, %v338
      %340 = vadd.xlane.f32.xlu0 %v339
      %v341 = vpop.xlane.xlu0 %340
      %v342 = vadd.f32 %v328, %v341
      %343 = vst.msk [vmem:[%s3] sm:$0xf] %vm326, %v342
      // Predicated region
      $region33: #{df_decoder_forward.5} parent=27 // pred_check
        %p344 = pneg %p75
      $region34: #{df_decoder_forward.5} parent=27 // pred_check_branch
        %346 = sbr.rel (%p344) target = $region36
      $region35: #{df_decoder_forward.5} parent=27 // pred_region
        _
      $region36: #{df_decoder_forward.5} parent=27 // pred_fallthru
        _
      // Predicated region
      $region37: #{df_decoder_forward.5} parent=27 // pred_check
        %p347 = pneg %p96
      $region38: #{df_decoder_forward.5} parent=27 // pred_check_branch
        %349 = sbr.rel (%p347) target = $region40
      $region39: #{df_decoder_forward.5} parent=27 // pred_region
        _
      $region40: #{df_decoder_forward.5} parent=27 // pred_fallthru
        _
      // Predicated region
      $region41: #{df_decoder_forward.5} parent=27 // pred_check
        %p350 = pneg %p75
      $region42: #{df_decoder_forward.5} parent=27 // pred_check_branch
        %352 = sbr.rel (%p350) target = $region44
      $region43: #{df_decoder_forward.5} parent=27 // pred_region
        _
      $region44: #{df_decoder_forward.5} parent=27 // pred_fallthru
        _
      // Predicated region
      $region45: #{df_decoder_forward.5} parent=27 // pred_check
        %p353 = pneg %p96
      $region46: #{df_decoder_forward.5} parent=27 // pred_check_branch
        %355 = sbr.rel (%p353) target = $region48
      $region47: #{df_decoder_forward.5} parent=27 // pred_region
        _
      $region48: #{df_decoder_forward.5} parent=27 // pred_fallthru
        _
    $region28: #{df_decoder_forward.5} parent=5 // pred_fallthru
      _
    %p356 = scmp.le.s32.totalorder 2, %s10
    // Predicated region
    $region49: #{df_decoder_forward.5} parent=5 // pred_check
      %p357 = pneg %p356
    $region50: #{df_decoder_forward.5} parent=5 // pred_check_branch
      %359 = sbr.rel (%p357) target = $region52
    $region51: #{df_decoder_forward.5} parent=5 // pred_region
      %s360 = ssub.s32 %s10, 2
    $region52: #{df_decoder_forward.5} parent=5 // pred_fallthru
      _
  $region6: #{df_decoder_forward.5} parent=0 // loop_footer
    %s14 = sadd.s32 1, %s10
  $region7: #{df_decoder_forward.5} parent=0 // loop_footer_branch
    %9 = sbr.rel target = $region3
  $region8: #{df_decoder_forward.5} parent=0 // loop_exit
    _

// kernel: df_decoder_forward.6
$region0: #{df_decoder_forward.6}
  #allocation0 [shape = 'u32[]', space=smem, size = 0x4, offset = 0x4, fixed_abs, tag = 'smem constant byte address 0x4 - core index']
  #allocation1 [shape = 'u32[144,128]{1,0:T(1,128)}', space=vmem, size = 0x12000, scoped, tag = 'internal scratch']
  %s0 = inlined_call_operand.vmem [shape: f32[8,1024], index: 0, kind: input, shape index: {}]
  %s1 = inlined_call_operand.vmem [shape: f32[4,8], index: 1, kind: input, shape index: {}]
  %s2 = inlined_call_operand.vmem [shape: f32[4,1], index: 2, kind: input, shape index: {}]
  %s3 = inlined_call_operand.vmem [shape: f32[4,1], index: 3, kind: input, shape index: {}]
  %s4 = inlined_call_operand.vmem [shape: f32[4,1], index: 4, kind: input, shape index: {}]
  %s5 = inlined_call_operand.vmem [shape: f32[4,1], index: 5, kind: input, shape index: {}]
  %s6 = inlined_call_operand.vmem [shape: f32[4,1024], index: 6, kind: output, shape index: {}]
  %s7 = sld [smem:[#allocation0]]
  $region57: #{df_decoder_forward.6} parent=0
    _
  %s9 = ssub.s32 1, %s7
  %s10 = scalar_select 0, %s9, %s7
  loop: start=0, step=1, limit=4
  $region2: #{df_decoder_forward.6} parent=0 // loop_pre_header
    _
  $region3: #{df_decoder_forward.6} parent=0 // loop_header
    %s12 = sphi 0, %s16
    %p13 = scmp.ge.s32.totalorder %s12, 4
    %s22 = sphi 0, %s24
    %s25 = sphi 0, %s22
    %s26 = sphi 0, %s25
    %s42 = sphi 0, %s26
    %s46 = sphi 0, %s46
    %s48 = sphi 0, %s46
    %s49 = sphi 0, %s48
    %s63 = sphi 0, %s49
    %s67 = sphi 0, %s67
    %s69 = sphi 0, %s67
    %s70 = sphi 0, %s69
    %s84 = sphi 0, %s70
    %s88 = sphi 0, %s88
    %s90 = sphi 0, %s88
    %s91 = sphi 0, %s90
    %s105 = sphi 0, %s91
    %s109 = sphi 0, %s109
    %s111 = sphi 0, %s109
    %s112 = sphi 0, %s111
    %s126 = sphi 0, %s112
    %s130 = sphi 0, %s130
    %s132 = sphi 0, %s130
    %s133 = sphi 0, %s132
    %s147 = sphi 0, %s133
    %s153 = sphi 0, %s155
    %s156 = sphi 0, %s153
    %s157 = sphi 0, %s156
    %s173 = sphi 0, %s157
  $region4: #{df_decoder_forward.6} parent=0 // loop_header_branch
    %15 = sbr.rel (%p13) target = $region8
  $region5: #{df_decoder_forward.6} parent=0 // loop_body
    %s17 = ssub.s32 %s12, 1
    %s18 = ssub.s32 %s12, 2
    %s19 = sadd.s32 %s12, 1
    %s20 = ssub.s32 %s12, %s19
    %p21 = scmp.eq.s32.totalorder %s20, 0
    %s23 = sadd.s32 %s22, 1
    %s24 = scalar_select %p21, %s22, %s23
    %p27 = pneg %p21
    %p28 = scmp.eq.s32.totalorder %s12, 1
    %p29 = por %p27, %p28
    %p30 = scmp.ne.s32.totalorder %s22, %s25
    %p31 = scmp.eq.s32.totalorder %s12, 0
    %p32 = por %p30, %p31
    %p33 = scmp.ne.s32.totalorder %s22, %s25
    %p34 = scmp.eq.s32.totalorder %s17, 1
    %p35 = por %p33, %p34
    %p36 = scmp.ne.s32.totalorder %s25, %s26
    %p37 = scmp.eq.s32.totalorder %s17, 0
    %p38 = por %p36, %p37
    %p39 = scmp.ne.s32.totalorder %s25, %s26
    %p40 = scmp.eq.s32.totalorder %s18, 1
    %p41 = por %p39, %p40
    %p43 = scmp.ne.s32.totalorder %s26, %s42
    %p44 = scmp.eq.s32.totalorder %s18, 0
    %p45 = por %p43, %p44
    %s47 = sadd.s32 %s46, 1
    %p50 = scmp.eq.s32.totalorder %s12, 1
    %p51 = scmp.ne.s32.totalorder %s46, %s48
    %p52 = scmp.eq.s32.totalorder %s12, 0
    %p53 = por %p51, %p52
    %p54 = scmp.ne.s32.totalorder %s46, %s48
    %p55 = scmp.eq.s32.totalorder %s17, 1
    %p56 = por %p54, %p55
    %p57 = scmp.ne.s32.totalorder %s48, %s49
    %p58 = scmp.eq.s32.totalorder %s17, 0
    %p59 = por %p57, %p58
    %p60 = scmp.ne.s32.totalorder %s48, %s49
    %p61 = scmp.eq.s32.totalorder %s18, 1
    %p62 = por %p60, %p61
    %p64 = scmp.ne.s32.totalorder %s49, %s63
    %p65 = scmp.eq.s32.totalorder %s18, 0
    %p66 = por %p64, %p65
    %s68 = sadd.s32 %s67, 1
    %p71 = scmp.eq.s32.totalorder %s12, 1
    %p72 = scmp.ne.s32.totalorder %s67, %s69
    %p73 = scmp.eq.s32.totalorder %s12, 0
    %p74 = por %p72, %p73
    %p75 = scmp.ne.s32.totalorder %s67, %s69
    %p76 = scmp.eq.s32.totalorder %s17, 1
    %p77 = por %p75, %p76
    %p78 = scmp.ne.s32.totalorder %s69, %s70
    %p79 = scmp.eq.s32.totalorder %s17, 0
    %p80 = por %p78, %p79
    %p81 = scmp.ne.s32.totalorder %s69, %s70
    %p82 = scmp.eq.s32.totalorder %s18, 1
    %p83 = por %p81, %p82
    %p85 = scmp.ne.s32.totalorder %s70, %s84
    %p86 = scmp.eq.s32.totalorder %s18, 0
    %p87 = por %p85, %p86
    %s89 = sadd.s32 %s88, 1
    %p92 = scmp.eq.s32.totalorder %s12, 1
    %p93 = scmp.ne.s32.totalorder %s88, %s90
    %p94 = scmp.eq.s32.totalorder %s12, 0
    %p95 = por %p93, %p94
    %p96 = scmp.ne.s32.totalorder %s88, %s90
    %p97 = scmp.eq.s32.totalorder %s17, 1
    %p98 = por %p96, %p97
    %p99 = scmp.ne.s32.totalorder %s90, %s91
    %p100 = scmp.eq.s32.totalorder %s17, 0
    %p101 = por %p99, %p100
    %p102 = scmp.ne.s32.totalorder %s90, %s91
    %p103 = scmp.eq.s32.totalorder %s18, 1
    %p104 = por %p102, %p103
    %p106 = scmp.ne.s32.totalorder %s91, %s105
    %p107 = scmp.eq.s32.totalorder %s18, 0
    %p108 = por %p106, %p107
    %s110 = sadd.s32 %s109, 1
    %p113 = scmp.eq.s32.totalorder %s12, 1
    %p114 = scmp.ne.s32.totalorder %s109, %s111
    %p115 = scmp.eq.s32.totalorder %s12, 0
    %p116 = por %p114, %p115
    %p117 = scmp.ne.s32.totalorder %s109, %s111
    %p118 = scmp.eq.s32.totalorder %s17, 1
    %p119 = por %p117, %p118
    %p120 = scmp.ne.s32.totalorder %s111, %s112
    %p121 = scmp.eq.s32.totalorder %s17, 0
    %p122 = por %p120, %p121
    %p123 = scmp.ne.s32.totalorder %s111, %s112
    %p124 = scmp.eq.s32.totalorder %s18, 1
    %p125 = por %p123, %p124
    %p127 = scmp.ne.s32.totalorder %s112, %s126
    %p128 = scmp.eq.s32.totalorder %s18, 0
    %p129 = por %p127, %p128
    %s131 = sadd.s32 %s130, 1
    %p134 = scmp.eq.s32.totalorder %s12, 1
    %p135 = scmp.ne.s32.totalorder %s130, %s132
    %p136 = scmp.eq.s32.totalorder %s12, 0
    %p137 = por %p135, %p136
    %p138 = scmp.ne.s32.totalorder %s130, %s132
    %p139 = scmp.eq.s32.totalorder %s17, 1
    %p140 = por %p138, %p139
    %p141 = scmp.ne.s32.totalorder %s132, %s133
    %p142 = scmp.eq.s32.totalorder %s17, 0
    %p143 = por %p141, %p142
    %p144 = scmp.ne.s32.totalorder %s132, %s133
    %p145 = scmp.eq.s32.totalorder %s18, 1
    %p146 = por %p144, %p145
    %p148 = scmp.ne.s32.totalorder %s133, %s147
    %p149 = scmp.eq.s32.totalorder %s18, 0
    %p150 = por %p148, %p149
    %s151 = ssub.s32 %s12, %s19
    %p152 = scmp.eq.s32.totalorder %s151, 0
    %s154 = sadd.s32 %s153, 1
    %s155 = scalar_select %p152, %s153, %s154
    %p158 = pneg %p152
    %p159 = scmp.eq.s32.totalorder %s12, 1
    %p160 = por %p158, %p159
    %p161 = scmp.ne.s32.totalorder %s153, %s156
    %p162 = scmp.eq.s32.totalorder %s12, 0
    %p163 = por %p161, %p162
    %p164 = scmp.ne.s32.totalorder %s153, %s156
    %p165 = scmp.eq.s32.totalorder %s17, 1
    %p166 = por %p164, %p165
    %p167 = scmp.ne.s32.totalorder %s156, %s157
    %p168 = scmp.eq.s32.totalorder %s17, 0
    %p169 = por %p167, %p168
    %p170 = scmp.ne.s32.totalorder %s156, %s157
    %p171 = scmp.eq.s32.totalorder %s18, 1
    %p172 = por %p170, %p171
    %p174 = scmp.ne.s32.totalorder %s157, %s173
    %p175 = scmp.eq.s32.totalorder %s18, 0
    %p176 = por %p174, %p175
    %p177 = scmp.le.s32.totalorder 1, %s12
    %p178 = scmp.lt.s32.totalorder %s12, 3
    %p179 = pnand %p177, %p178
    %p180 = pneg %p179
    // Predicated region
    $region9: #{df_decoder_forward.6} parent=5 // pred_check
      _
    $region10: #{df_decoder_forward.6} parent=5 // pred_check_branch
      %182 = sbr.rel (%p179) target = $region12
    $region11: #{df_decoder_forward.6} parent=5 // pred_region
      %s183 = ssub.s32 %s12, 1
      // Predicated region
      $region13: #{df_decoder_forward.6} parent=11 // pred_check
        %p184 = pneg %p59
      $region14: #{df_decoder_forward.6} parent=11 // pred_check_branch
        %186 = sbr.rel (%p184) target = $region16
      $region15: #{df_decoder_forward.6} parent=11 // pred_region
        _
      $region16: #{df_decoder_forward.6} parent=11 // pred_fallthru
        _
      // Predicated region
      $region17: #{df_decoder_forward.6} parent=11 // pred_check
        %p187 = pneg %p80
      $region18: #{df_decoder_forward.6} parent=11 // pred_check_branch
        %189 = sbr.rel (%p187) target = $region20
      $region19: #{df_decoder_forward.6} parent=11 // pred_region
        _
      $region20: #{df_decoder_forward.6} parent=11 // pred_fallthru
        _
      // Predicated region
      $region21: #{df_decoder_forward.6} parent=11 // pred_check
        %p190 = pneg %p101
      $region22: #{df_decoder_forward.6} parent=11 // pred_check_branch
        %192 = sbr.rel (%p190) target = $region24
      $region23: #{df_decoder_forward.6} parent=11 // pred_region
        _
      $region24: #{df_decoder_forward.6} parent=11 // pred_fallthru
        _
      // Predicated region
      $region25: #{df_decoder_forward.6} parent=11 // pred_check
        %p193 = pneg %p122
      $region26: #{df_decoder_forward.6} parent=11 // pred_check_branch
        %195 = sbr.rel (%p193) target = $region28
      $region27: #{df_decoder_forward.6} parent=11 // pred_region
        _
      $region28: #{df_decoder_forward.6} parent=11 // pred_fallthru
        _
      // Predicated region
      $region29: #{df_decoder_forward.6} parent=11 // pred_check
        %p196 = pneg %p143
      $region30: #{df_decoder_forward.6} parent=11 // pred_check_branch
        %198 = sbr.rel (%p196) target = $region32
      $region31: #{df_decoder_forward.6} parent=11 // pred_region
        _
      $region32: #{df_decoder_forward.6} parent=11 // pred_fallthru
        _
    $region12: #{df_decoder_forward.6} parent=5 // pred_fallthru
      _
    %p199 = scmp.lt.s32.totalorder %s12, 2
    // Predicated region
    $region33: #{df_decoder_forward.6} parent=5 // pred_check
      %p200 = pneg %p199
    $region34: #{df_decoder_forward.6} parent=5 // pred_check_branch
      %202 = sbr.rel (%p200) target = $region36
    $region35: #{df_decoder_forward.6} parent=5 // pred_region
      // Predicated region
      $region37: #{df_decoder_forward.6} parent=35 // pred_check
        %p203 = pneg %p32
      $region38: #{df_decoder_forward.6} parent=35 // pred_check_branch
        %205 = sbr.rel (%p203) target = $region40
      $region39: #{df_decoder_forward.6} parent=35 // pred_region
        %s206 = smul.u32 4, %s12
        %p207 = scmp.lt.s32.totalorder %s206, 7
        %s208 = scalar_select %p207, %s206, 7
        %s209 = smul.addr %s208, 8
        %s210 = scalar_lea.vmem %s0, %s209
        %s211 = smul.u32 4, %s12
      $region40: #{df_decoder_forward.6} parent=35 // pred_fallthru
        _
    $region36: #{df_decoder_forward.6} parent=5 // pred_fallthru
      _
    %p212 = scmp.le.s32.totalorder 1, %s12
    %p213 = scmp.lt.s32.totalorder %s12, 3
    %p214 = pnand %p212, %p213
    %p215 = pneg %p214
    // Predicated region
    $region41: #{df_decoder_forward.6} parent=5 // pred_check
      _
    $region42: #{df_decoder_forward.6} parent=5 // pred_check_branch
      %217 = sbr.rel (%p214) target = $region44
    $region43: #{df_decoder_forward.6} parent=5 // pred_region
      %s218 = ssub.s32 %s12, 1
      %s219 = smul.u32 4, %s17
      %p220 = scmp.lt.s32.totalorder %s219, 7
      %s221 = scalar_select %p220, %s219, 7
      %s222 = smul.addr %s221, 8
      %s223 = scalar_lea.vmem %s0, %s222
      %p224 = pneg %p38
      %p225 = pneg %p35
      %p226 = pneg %p59
      %p227 = pneg %p56
      %p228 = pneg %p80
      %p229 = pneg %p77
      %p230 = pneg %p101
      %p231 = pneg %p98
      %p232 = pneg %p122
      %p233 = pneg %p119
      %p234 = pneg %p143
      %p235 = pneg %p140
      %p236 = pneg %p169
      %p237 = pneg %p166
      %s238 = smul.u32 4, %s17
      %p239 = scmp.lt.s32.totalorder %s238, 7
      %s240 = scalar_select %p239, %s238, 7
      %s241 = smul.addr %s240, 4
      %s242 = scalar_lea.vmem %s6, %s241
      %s243 = smul.u32 4, %s17
      %p244 = scmp.lt.s32.totalorder %s243, 7
      %s245 = scalar_select %p244, %s243, 7
      %s246 = smul.addr %s245, 8
      %s247 = scalar_lea.vmem %s0, %s246
      %s248 = smul.u32 4, %s17
      %s249 = smul.u32 4, %s17
      %p250 = scmp.lt.s32.totalorder %s249, 7
      %s251 = scalar_select %p250, %s249, 7
      %s252 = smul.addr %s251, 4
      %s253 = scalar_lea.vmem %s6, %s252
      %s254 = smul.u32 4, %s17
      %v255 = vld [vmem:[%s1] sm:$0xf]
      %v256 = vld [vmem:[%s247] sm:$0xff]
      %v257 = vld [vmem:[%s247 + $0x8] sm:$0xff]
      %v258 = vld [vmem:[%s247 + $0x10] sm:$0xff]
      %v259 = vld [vmem:[%s247 + $0x18] sm:$0xff]
      %vm260 = vcmask 64512
      %v262 = vsel %vm260, %v255, 0
      %264 = vmatprep.subr.mxu0 %v257
      %265 = vmatpush1.msra.mxu0 %v256
      %266 = vmatprep.subr.mxu0 0.0
      %267 = vmatpush1.msra.mxu0 0.0
      %268 = vmatprep.subr.mxu0 0.0
      %269 = vmatpush1.msra.mxu0 0.0
      %270 = vmatprep.subr.mxu0 0.0
      %271 = vmatpush1.msra.mxu0 0.0
      %272 = vmatprep.subr.mxu0 0.0
      %273 = vmatpush1.msra.mxu0 0.0
      %274 = vmatprep.subr.mxu0 0.0
      %275 = vmatpush1.msra.mxu0 0.0
      %276 = vmatprep.subr.mxu0 0.0
      %277 = vmatpush1.msra.mxu0 0.0
      %278 = vmatprep.subr.mxu0 0.0
      %279 = vmatpush1.msra.mxu0 0.0
      %280 = vmatprep.subr.mxu0 0.0
      %281 = vmatpush1.msra.mxu0 0.0
      %282 = vmatprep.subr.mxu0 0.0
      %283 = vmatpush1.msra.mxu0 0.0
      %284 = vmatprep.subr.mxu0 0.0
      %285 = vmatpush1.msra.mxu0 0.0
      %286 = vmatprep.subr.mxu0 0.0
      %287 = vmatpush1.msra.mxu0 0.0
      %288 = vmatprep.subr.mxu0 0.0
      %289 = vmatpush1.msra.mxu0 0.0
      %290 = vmatprep.subr.mxu0 0.0
      %291 = vmatpush1.msra.mxu0 0.0
      %292 = vmatprep.subr.mxu0 0.0
      %293 = vmatpush1.msra.mxu0 0.0
      %294 = vmatprep.subr.mxu0 0.0
      %295 = vmatpush1.msra.mxu0 0.0
      %296 = vmatprep.subr.mxu0 0.0
      %297 = vmatpush1.msra.mxu0 0.0
      %298 = vmatprep.subr.mxu0 0.0
      %299 = vmatpush1.msra.mxu0 0.0
      %300 = vmatprep.subr.mxu0 0.0
      %301 = vmatpush1.msra.mxu0 0.0
      %302 = vmatprep.subr.mxu0 0.0
      %303 = vmatpush1.msra.mxu0 0.0
      %304 = vmatprep.subr.mxu0 0.0
      %305 = vmatpush1.msra.mxu0 0.0
      %306 = vmatprep.subr.mxu0 0.0
      %307 = vmatpush1.msra.mxu0 0.0
      %308 = vmatprep.subr.mxu0 0.0
      %309 = vmatpush1.msra.mxu0 0.0
      %310 = vmatprep.subr.mxu0 0.0
      %311 = vmatpush1.msra.mxu0 0.0
      %312 = vmatprep.subr.mxu0 0.0
      %313 = vmatpush1.msra.mxu0 0.0
      %314 = vmatprep.subr.mxu0 0.0
      %315 = vmatpush1.msra.mxu0 0.0
      %316 = vmatprep.subr.mxu0 0.0
      %317 = vmatpush1.msra.mxu0 0.0
      %318 = vmatprep.subr.mxu0 0.0
      %319 = vmatpush1.msra.mxu0 0.0
      %320 = vmatprep.subr.mxu0 0.0
      %321 = vmatpush1.msra.mxu0 0.0
      %322 = vmatprep.subr.mxu0 0.0
      %323 = vmatpush1.msra.mxu0 0.0
      %324 = vmatprep.subr.mxu0 0.0
      %325 = vmatpush1.msra.mxu0 0.0
      %326 = vmatprep.subr.mxu0 0.0
      %327 = vmatpush1.msra.mxu0 0.0
      %328 = vmatprep.mubr.f32.mxu0 0.0
      %329 = vmatmul.mubr.f32.gmra.mrb[0].mxu0 %v262
      %v330 = vpop.f32.mrb[0].mxu0
      %v331 = vadd.f32 0.0, %v330
      %v332 = vpop.f32.mrb[0].mxu0
      %v333 = vadd.f32 0.0, %v332
      %334 = vdwg.mxu0
      %335 = vmatprep.subr.mxu0 %v259
      %336 = vmatpush1.msra.mxu0 %v258
      %337 = vmatprep.subr.mxu0 0.0
      %338 = vmatpush1.msra.mxu0 0.0
      %339 = vmatprep.subr.mxu0 0.0
      %340 = vmatpush1.msra.mxu0 0.0
      %341 = vmatprep.subr.mxu0 0.0
      %342 = vmatpush1.msra.mxu0 0.0
      %343 = vmatprep.subr.mxu0 0.0
      %344 = vmatpush1.msra.mxu0 0.0
      %345 = vmatprep.subr.mxu0 0.0
      %346 = vmatpush1.msra.mxu0 0.0
      %347 = vmatprep.subr.mxu0 0.0
      %348 = vmatpush1.msra.mxu0 0.0
      %349 = vmatprep.subr.mxu0 0.0
      %350 = vmatpush1.msra.mxu0 0.0
      %351 = vmatprep.subr.mxu0 0.0
      %352 = vmatpush1.msra.mxu0 0.0
      %353 = vmatprep.subr.mxu0 0.0
      %354 = vmatpush1.msra.mxu0 0.0
      %355 = vmatprep.subr.mxu0 0.0
      %356 = vmatpush1.msra.mxu0 0.0
      %357 = vmatprep.subr.mxu0 0.0
      %358 = vmatpush1.msra.mxu0 0.0
      %359 = vmatprep.subr.mxu0 0.0
      %360 = vmatpush1.msra.mxu0 0.0
      %361 = vmatprep.subr.mxu0 0.0
      %362 = vmatpush1.msra.mxu0 0.0
      %363 = vmatprep.subr.mxu0 0.0
      %364 = vmatpush1.msra.mxu0 0.0
      %365 = vmatprep.subr.mxu0 0.0
      %366 = vmatpush1.msra.mxu0 0.0
      %367 = vmatprep.subr.mxu0 0.0
      %368 = vmatpush1.msra.mxu0 0.0
      %369 = vmatprep.subr.mxu0 0.0
      %370 = vmatpush1.msra.mxu0 0.0
      %371 = vmatprep.subr.mxu0 0.0
      %372 = vmatpush1.msra.mxu0 0.0
      %373 = vmatprep.subr.mxu0 0.0
      %374 = vmatpush1.msra.mxu0 0.0
      %375 = vmatprep.subr.mxu0 0.0
      %376 = vmatpush1.msra.mxu0 0.0
      %377 = vmatprep.subr.mxu0 0.0
      %378 = vmatpush1.msra.mxu0 0.0
      %379 = vmatprep.subr.mxu0 0.0
      %380 = vmatpush1.msra.mxu0 0.0
      %381 = vmatprep.subr.mxu0 0.0
      %382 = vmatpush1.msra.mxu0 0.0
      %383 = vmatprep.subr.mxu0 0.0
      %384 = vmatpush1.msra.mxu0 0.0
      %385 = vmatprep.subr.mxu0 0.0
      %386 = vmatpush1.msra.mxu0 0.0
      %387 = vmatprep.subr.mxu0 0.0
      %388 = vmatpush1.msra.mxu0 0.0
      %389 = vmatprep.subr.mxu0 0.0
      %390 = vmatpush1.msra.mxu0 0.0
      %391 = vmatprep.subr.mxu0 0.0
      %392 = vmatpush1.msra.mxu0 0.0
      %393 = vmatprep.subr.mxu0 0.0
      %394 = vmatpush1.msra.mxu0 0.0
      %395 = vmatprep.subr.mxu0 0.0
      %396 = vmatpush1.msra.mxu0 0.0
      %397 = vmatprep.subr.mxu0 0.0
      %398 = vmatpush1.msra.mxu0 0.0
      %399 = vmatprep.mubr.f32.mxu0 0.0
      %400 = vmatmul.mubr.f32.gmra.mrb[0].mxu0 %v262
      %v401 = vpop.f32.mrb[0].mxu0
      %v402 = vadd.f32 0.0, %v401
      %v403 = vpop.f32.mrb[0].mxu0
      %v404 = vadd.f32 0.0, %v403
      %405 = vdwg.mxu0
      %v406 = vld [vmem:[%s2] sm:$0xf]
      %v407 = vmul.f32 %v406, 0.00390625
      %v408 = vld [vmem:[%s3] sm:$0xf]
      %v409 = vmul.f32 %v408, 0.00390625
      %v410 = vmul.f32 %v407, %v407
      %v411 = vsub.f32 %v409, %v410
      %v412 = vld [vmem:[%s4] sm:$0xf]
      %v413 = vadd.f32 %v411, 1e-05
      %v414 = vrsqrt.pop %v413
      %v415 = vmul.f32 %v412, %v414
      %v416 = vld [vmem:[%s5] sm:$0xf]
      %v417 = vmul.f32 %v407, %v415
      %v418 = vsub.f32 %v416, %v417
      %420 = vset.pattern.permute.xlu0 0
      %421 = vperm.xlu0 %420, %v415
      %v422 = vpop.permute.xlu0 %421
      %v424 = vmul.f32 %v331, %v422
      %v425 = vmul.f32 %v333, %v422
      %v426 = vmul.f32 %v402, %v422
      %v427 = vmul.f32 %v404, %v422
      %429 = vset.pattern.permute.xlu0 0
      %430 = vperm.xlu0 %429, %v418
      %v431 = vpop.permute.xlu0 %430
      %v433 = vadd.f32 %v424, %v431
      %v434 = vadd.f32 %v425, %v431
      %v435 = vadd.f32 %v426, %v431
      %v436 = vadd.f32 %v427, %v431
      %v437 = vmax.f32 %v433, 0.0
      %v438 = vmax.f32 %v434, 0.0
      %v439 = vmax.f32 %v435, 0.0
      %v440 = vmax.f32 %v436, 0.0
      %v445 = vcombine.low %v437, %v438
      %v446 = vcombine.low %v439, %v440
      %449 = vst [vmem:[%s253] sm:$0xff] %v445
      %450 = vst [vmem:[%s253 + $0x8] sm:$0xff] %v446
      %s451 = smul.u32 4, %s17
      %p452 = scmp.lt.s32.totalorder %s451, 7
      %s453 = scalar_select %p452, %s451, 7
      %s454 = smul.addr %s453, 4
      %s455 = scalar_lea.vmem %s6, %s454
      // Predicated region
      $region45: #{df_decoder_forward.6} parent=43 // pred_check
        %p456 = pneg %p166
      $region46: #{df_decoder_forward.6} parent=43 // pred_check_branch
        %458 = sbr.rel (%p456) target = $region48
      $region47: #{df_decoder_forward.6} parent=43 // pred_region
        %s459 = smul.u32 4, %s17
      $region48: #{df_decoder_forward.6} parent=43 // pred_fallthru
        _
    $region44: #{df_decoder_forward.6} parent=5 // pred_fallthru
      _
    %p460 = scmp.le.s32.totalorder 2, %s12
    // Predicated region
    $region49: #{df_decoder_forward.6} parent=5 // pred_check
      %p461 = pneg %p460
    $region50: #{df_decoder_forward.6} parent=5 // pred_check_branch
      %463 = sbr.rel (%p461) target = $region52
    $region51: #{df_decoder_forward.6} parent=5 // pred_region
      %s464 = ssub.s32 %s12, 2
      // Predicated region
      $region53: #{df_decoder_forward.6} parent=51 // pred_check
        %p465 = pneg %p172
      $region54: #{df_decoder_forward.6} parent=51 // pred_check_branch
        %467 = sbr.rel (%p465) target = $region56
      $region55: #{df_decoder_forward.6} parent=51 // pred_region
        %s468 = smul.u32 4, %s18
        %p469 = scmp.lt.s32.totalorder %s468, 7
        %s470 = scalar_select %p469, %s468, 7
        %s471 = smul.addr %s470, 4
        %s472 = scalar_lea.vmem %s6, %s471
      $region56: #{df_decoder_forward.6} parent=51 // pred_fallthru
        _
    $region52: #{df_decoder_forward.6} parent=5 // pred_fallthru
      _
  $region6: #{df_decoder_forward.6} parent=0 // loop_footer
    %s16 = sadd.s32 1, %s12
  $region7: #{df_decoder_forward.6} parent=0 // loop_footer_branch
    %11 = sbr.rel target = $region3
  $region8: #{df_decoder_forward.6} parent=0 // loop_exit
    _

// kernel: df_decoder_forward.7
$region0: #{df_decoder_forward.7}
  #allocation0 [shape = 'u32[]', space=smem, size = 0x4, offset = 0x4, fixed_abs, tag = 'smem constant byte address 0x4 - core index']
  #allocation1 [shape = 'u32[144,128]{1,0:T(1,128)}', space=vmem, size = 0x12000, scoped, tag = 'internal scratch']
  %s0 = inlined_call_operand.vmem [shape: f32[64,128], index: 0, kind: input, shape index: {}]
  %s1 = inlined_call_operand.vmem [shape: bf16[128,128], index: 1, kind: input, shape index: {}]
  %s2 = inlined_call_operand.vmem [shape: f32[1,128], index: 2, kind: input, shape index: {}]
  %s3 = inlined_call_operand.vmem [shape: f32[4,64,16], index: 3, kind: input, shape index: {}]
  %s4 = inlined_call_operand.vmem [shape: f32[64,128], index: 4, kind: output, shape index: {}]
  %s5 = sld [smem:[#allocation0]]
  $region87: #{df_decoder_forward.7} parent=0
    _
  %s7 = ssub.s32 1, %s5
  %s8 = scalar_select 0, %s7, %s5
  $region1: #{df_decoder_forward.7} parent=0
    #allocation2 [shape = 'u8[131072]{0}', space=vmem, size = 0x20000, scoped, tag = 'input window, operand 3']
    loop: start=0, step=1, limit=4
    $region2: #{df_decoder_forward.7} parent=1 // loop_pre_header
      _
    $region3: #{df_decoder_forward.7} parent=1 // loop_header
      %s10 = sphi 0, %s14
      %p11 = scmp.ge.s32.totalorder %s10, 4
      %s20 = sphi 0, %s22
      %s23 = sphi 0, %s20
      %s24 = sphi 0, %s23
      %s40 = sphi 0, %s24
      %s44 = sphi 0, %s44
      %s46 = sphi 0, %s44
      %s47 = sphi 0, %s46
      %s61 = sphi 0, %s47
      %s65 = sphi 0, %s65
      %s67 = sphi 0, %s65
      %s68 = sphi 0, %s67
      %s82 = sphi 0, %s68
      %s88 = sphi 0, %s90
      %s91 = sphi 0, %s88
      %s92 = sphi 0, %s91
      %s108 = sphi 0, %s92
      %s114 = sphi 0, %s116
      %s117 = sphi 0, %s114
      %s118 = sphi 0, %s117
      %s134 = sphi 0, %s118
    $region4: #{df_decoder_forward.7} parent=1 // loop_header_branch
      %13 = sbr.rel (%p11) target = $region8
    $region5: #{df_decoder_forward.7} parent=1 // loop_body
      %s15 = ssub.s32 %s10, 1
      %s16 = ssub.s32 %s10, 2
      %s17 = sadd.s32 %s10, 1
      %s18 = ssub.s32 %s10, %s17
      %p19 = scmp.eq.s32.totalorder %s18, 0
      %s21 = sadd.s32 %s20, 1
      %s22 = scalar_select %p19, %s20, %s21
      %p25 = pneg %p19
      %p26 = scmp.eq.s32.totalorder %s10, 1
      %p27 = por %p25, %p26
      %p28 = scmp.ne.s32.totalorder %s20, %s23
      %p29 = scmp.eq.s32.totalorder %s10, 0
      %p30 = por %p28, %p29
      %p31 = scmp.ne.s32.totalorder %s20, %s23
      %p32 = scmp.eq.s32.totalorder %s15, 1
      %p33 = por %p31, %p32
      %p34 = scmp.ne.s32.totalorder %s23, %s24
      %p35 = scmp.eq.s32.totalorder %s15, 0
      %p36 = por %p34, %p35
      %p37 = scmp.ne.s32.totalorder %s23, %s24
      %p38 = scmp.eq.s32.totalorder %s16, 1
      %p39 = por %p37, %p38
      %p41 = scmp.ne.s32.totalorder %s24, %s40
      %p42 = scmp.eq.s32.totalorder %s16, 0
      %p43 = por %p41, %p42
      %s45 = sadd.s32 %s44, 1
      %p48 = scmp.eq.s32.totalorder %s10, 1
      %p49 = scmp.ne.s32.totalorder %s44, %s46
      %p50 = scmp.eq.s32.totalorder %s10, 0
      %p51 = por %p49, %p50
      %p52 = scmp.ne.s32.totalorder %s44, %s46
      %p53 = scmp.eq.s32.totalorder %s15, 1
      %p54 = por %p52, %p53
      %p55 = scmp.ne.s32.totalorder %s46, %s47
      %p56 = scmp.eq.s32.totalorder %s15, 0
      %p57 = por %p55, %p56
      %p58 = scmp.ne.s32.totalorder %s46, %s47
      %p59 = scmp.eq.s32.totalorder %s16, 1
      %p60 = por %p58, %p59
      %p62 = scmp.ne.s32.totalorder %s47, %s61
      %p63 = scmp.eq.s32.totalorder %s16, 0
      %p64 = por %p62, %p63
      %s66 = sadd.s32 %s65, 1
      %p69 = scmp.eq.s32.totalorder %s10, 1
      %p70 = scmp.ne.s32.totalorder %s65, %s67
      %p71 = scmp.eq.s32.totalorder %s10, 0
      %p72 = por %p70, %p71
      %p73 = scmp.ne.s32.totalorder %s65, %s67
      %p74 = scmp.eq.s32.totalorder %s15, 1
      %p75 = por %p73, %p74
      %p76 = scmp.ne.s32.totalorder %s67, %s68
      %p77 = scmp.eq.s32.totalorder %s15, 0
      %p78 = por %p76, %p77
      %p79 = scmp.ne.s32.totalorder %s67, %s68
      %p80 = scmp.eq.s32.totalorder %s16, 1
      %p81 = por %p79, %p80
      %p83 = scmp.ne.s32.totalorder %s68, %s82
      %p84 = scmp.eq.s32.totalorder %s16, 0
      %p85 = por %p83, %p84
      %s86 = ssub.s32 %s10, %s17
      %p87 = scmp.eq.s32.totalorder %s86, 0
      %s89 = sadd.s32 %s88, 1
      %s90 = scalar_select %p87, %s88, %s89
      %p93 = pneg %p87
      %p94 = scmp.eq.s32.totalorder %s10, 1
      %p95 = por %p93, %p94
      %p96 = scmp.ne.s32.totalorder %s88, %s91
      %p97 = scmp.eq.s32.totalorder %s10, 0
      %p98 = por %p96, %p97
      %p99 = scmp.ne.s32.totalorder %s88, %s91
      %p100 = scmp.eq.s32.totalorder %s15, 1
      %p101 = por %p99, %p100
      %p102 = scmp.ne.s32.totalorder %s91, %s92
      %p103 = scmp.eq.s32.totalorder %s15, 0
      %p104 = por %p102, %p103
      %p105 = scmp.ne.s32.totalorder %s91, %s92
      %p106 = scmp.eq.s32.totalorder %s16, 1
      %p107 = por %p105, %p106
      %p109 = scmp.ne.s32.totalorder %s92, %s108
      %p110 = scmp.eq.s32.totalorder %s16, 0
      %p111 = por %p109, %p110
      %s112 = ssub.s32 %s10, %s17
      %p113 = scmp.eq.s32.totalorder %s112, 0
      %s115 = sadd.s32 %s114, 1
      %s116 = scalar_select %p113, %s114, %s115
      %p119 = pneg %p113
      %p120 = scmp.eq.s32.totalorder %s10, 1
      %p121 = por %p119, %p120
      %p122 = scmp.ne.s32.totalorder %s114, %s117
      %p123 = scmp.eq.s32.totalorder %s10, 0
      %p124 = por %p122, %p123
      %p125 = scmp.ne.s32.totalorder %s114, %s117
      %p126 = scmp.eq.s32.totalorder %s15, 1
      %p127 = por %p125, %p126
      %p128 = scmp.ne.s32.totalorder %s117, %s118
      %p129 = scmp.eq.s32.totalorder %s15, 0
      %p130 = por %p128, %p129
      %p131 = scmp.ne.s32.totalorder %s117, %s118
      %p132 = scmp.eq.s32.totalorder %s16, 1
      %p133 = por %p131, %p132
      %p135 = scmp.ne.s32.totalorder %s118, %s134
      %p136 = scmp.eq.s32.totalorder %s16, 0
      %p137 = por %p135, %p136
      %p138 = scmp.le.s32.totalorder 1, %s10
      %p139 = scmp.lt.s32.totalorder %s10, 3
      %p140 = pnand %p138, %p139
      %p141 = pneg %p140
      // Predicated region
      $region9: #{df_decoder_forward.7} parent=5 // pred_check
        _
      $region10: #{df_decoder_forward.7} parent=5 // pred_check_branch
        %143 = sbr.rel (%p140) target = $region12
      $region11: #{df_decoder_forward.7} parent=5 // pred_region
        %s144 = ssub.s32 %s10, 1
        // Predicated region
        $region13: #{df_decoder_forward.7} parent=11 // pred_check
          %p145 = pneg %p57
        $region14: #{df_decoder_forward.7} parent=11 // pred_check_branch
          %147 = sbr.rel (%p145) target = $region16
        $region15: #{df_decoder_forward.7} parent=11 // pred_region
          _
        $region16: #{df_decoder_forward.7} parent=11 // pred_fallthru
          _
        // Predicated region
        $region17: #{df_decoder_forward.7} parent=11 // pred_check
          %p148 = pneg %p78
        $region18: #{df_decoder_forward.7} parent=11 // pred_check_branch
          %150 = sbr.rel (%p148) target = $region20
        $region19: #{df_decoder_forward.7} parent=11 // pred_region
          _
        $region20: #{df_decoder_forward.7} parent=11 // pred_fallthru
          _
      $region12: #{df_decoder_forward.7} parent=5 // pred_fallthru
        _
      %p151 = scmp.lt.s32.totalorder %s10, 2
      // Predicated region
      $region21: #{df_decoder_forward.7} parent=5 // pred_check
        %p152 = pneg %p151
      $region22: #{df_decoder_forward.7} parent=5 // pred_check_branch
        %154 = sbr.rel (%p152) target = $region24
      $region23: #{df_decoder_forward.7} parent=5 // pred_region
        // Predicated region
        $region25: #{df_decoder_forward.7} parent=23 // pred_check
          %p155 = pneg %p30
        $region26: #{df_decoder_forward.7} parent=23 // pred_check_branch
          %157 = sbr.rel (%p155) target = $region28
        $region27: #{df_decoder_forward.7} parent=23 // pred_region
          %s158 = smul.u32 4, %s10
          %p159 = scmp.lt.s32.totalorder %s158, 7
          %s160 = scalar_select %p159, %s158, 7
          %s161 = smul.addr %s160, 8
          %s162 = scalar_lea.vmem %s0, %s161
          %s163 = smul.u32 4, %s10
        $region28: #{df_decoder_forward.7} parent=23 // pred_fallthru
          _
        // Predicated region
        $region29: #{df_decoder_forward.7} parent=23 // pred_check
          %p164 = pneg %p98
        $region30: #{df_decoder_forward.7} parent=23 // pred_check_branch
          %166 = sbr.rel (%p164) target = $region32
        $region31: #{df_decoder_forward.7} parent=23 // pred_region
          %s167 = sand.u32 %s88, 1
          %s168 = sand.u32 %s88, 1
          %s169 = smul.addr %s168, 128
          %s170 = scalar_lea.vmem [#allocation2], %s169
          %s171 = smul.u32 4, %s10
          %s172 = smul.addr %s171, 8
          %s173 = scalar_lea.vmem %s3, %s172
          // Predicated region
          $region33: #{df_decoder_forward.7} parent=31 // pred_check
            _
          $region34: #{df_decoder_forward.7} parent=31 // pred_check_branch
            %175 = sbr.rel (0) target = $region36
          $region35: #{df_decoder_forward.7} parent=31 // pred_region
            // Predicated region
            $region37: #{df_decoder_forward.7} parent=35 // pred_check
              _
            $region38: #{df_decoder_forward.7} parent=35 // pred_check_branch
              %177 = sbr.rel (0) target = $region40
            $region39: #{df_decoder_forward.7} parent=35 // pred_region
              // Predicated region
              $region52: #{df_decoder_forward.7} parent=39 // pred_check
                _
              $region53: #{df_decoder_forward.7} parent=39 // pred_check_branch
                %222 = sbr.rel (0) target = $region55
              $region54: #{df_decoder_forward.7} parent=39 // pred_region
                loop: start=0, step=1, limit=1
                $region56: #{df_decoder_forward.7} parent=54 // loop_pre_header
                  _
                $region57: #{df_decoder_forward.7} parent=54 // loop_header
                  %s224 = sphi 0, %s228
                  %p225 = scmp.ge.s32.totalorder %s224, 1
                  %s229 = sphi %s173, %s173
                  %s230 = sphi %s170, %s170
                $region58: #{df_decoder_forward.7} parent=54 // loop_header_branch
                  %227 = sbr.rel (%p225) target = $region62
                $region59: #{df_decoder_forward.7} parent=54 // loop_body
                  %v231 = vld [vmem:[%s229] sm:$0xff]
                  %232 = vst [vmem:[%s230] sm:$0xff] %v231
                  %v233 = vld [vmem:[%s229 + $0x8] sm:$0xff]
                  %234 = vst [vmem:[%s230 + $0x8] sm:$0xff] %v233
                  %v235 = vld [vmem:[%s229 + $0x10] sm:$0xff]
                  %236 = vst [vmem:[%s230 + $0x10] sm:$0xff] %v235
                  %v237 = vld [vmem:[%s229 + $0x18] sm:$0xff]
                  %238 = vst [vmem:[%s230 + $0x18] sm:$0xff] %v237
                  %v239 = vld [vmem:[%s229 + $0x40] sm:$0xff]
                  %240 = vst [vmem:[%s230 + $0x20] sm:$0xff] %v239
                  %v241 = vld [vmem:[%s229 + $0x48] sm:$0xff]
                  %242 = vst [vmem:[%s230 + $0x28] sm:$0xff] %v241
                  %v243 = vld [vmem:[%s229 + $0x50] sm:$0xff]
                  %244 = vst [vmem:[%s230 + $0x30] sm:$0xff] %v243
                  %v245 = vld [vmem:[%s229 + $0x58] sm:$0xff]
                  %246 = vst [vmem:[%s230 + $0x38] sm:$0xff] %v245
                  %v247 = vld [vmem:[%s229 + $0x80] sm:$0xff]
                  %248 = vst [vmem:[%s230 + $0x40] sm:$0xff] %v247
                  %v249 = vld [vmem:[%s229 + $0x88] sm:$0xff]
                  %250 = vst [vmem:[%s230 + $0x48] sm:$0xff] %v249
                  %v251 = vld [vmem:[%s229 + $0x90] sm:$0xff]
                  %252 = vst [vmem:[%s230 + $0x50] sm:$0xff] %v251
                  %v253 = vld [vmem:[%s229 + $0x98] sm:$0xff]
                  %254 = vst [vmem:[%s230 + $0x58] sm:$0xff] %v253
                  %v255 = vld [vmem:[%s229 + $0xc0] sm:$0xff]
                  %256 = vst [vmem:[%s230 + $0x60] sm:$0xff] %v255
                  %v257 = vld [vmem:[%s229 + $0xc8] sm:$0xff]
                  %258 = vst [vmem:[%s230 + $0x68] sm:$0xff] %v257
                  %v259 = vld [vmem:[%s229 + $0xd0] sm:$0xff]
                  %260 = vst [vmem:[%s230 + $0x70] sm:$0xff] %v259
                  %v261 = vld [vmem:[%s229 + $0xd8] sm:$0xff]
                  %262 = vst [vmem:[%s230 + $0x78] sm:$0xff] %v261
                $region60: #{df_decoder_forward.7} parent=54 // loop_footer
                  %s228 = sadd.s32 1, %s224
                $region61: #{df_decoder_forward.7} parent=54 // loop_footer_branch
                  %223 = sbr.rel target = $region57
                $region62: #{df_decoder_forward.7} parent=54 // loop_exit
                  _
              $region55: #{df_decoder_forward.7} parent=39 // pred_fallthru
                _
              // Predicated region
              $region63: #{df_decoder_forward.7} parent=39 // pred_check
                _
              $region64: #{df_decoder_forward.7} parent=39 // pred_check_branch
                %264 = sbr.rel target = $region66
              $region65: #{df_decoder_forward.7} parent=39 // pred_region
                _
              $region66: #{df_decoder_forward.7} parent=39 // pred_fallthru
                _
            $region40: #{df_decoder_forward.7} parent=35 // pred_fallthru
              _
            // Predicated region
            $region41: #{df_decoder_forward.7} parent=35 // pred_check
              _
            $region42: #{df_decoder_forward.7} parent=35 // pred_check_branch
              %179 = sbr.rel target = $region44
            $region43: #{df_decoder_forward.7} parent=35 // pred_region
              loop: start=0, step=1, limit=1
              $region45: #{df_decoder_forward.7} parent=43 // loop_pre_header
                _
              $region46: #{df_decoder_forward.7} parent=43 // loop_header
                %s182 = sphi 0, %s186
                %p183 = scmp.ge.s32.totalorder %s182, 1
                %s187 = sphi %s173, %s173
                %s188 = sphi %s170, %s170
              $region47: #{df_decoder_forward.7} parent=43 // loop_header_branch
                %185 = sbr.rel (%p183) target = $region51
              $region48: #{df_decoder_forward.7} parent=43 // loop_body
                %v189 = vld [vmem:[%s187] sm:$0xff]
                %190 = vst [vmem:[%s188] sm:$0xff] %v189
                %v191 = vld [vmem:[%s187 + $0x8] sm:$0xff]
                %192 = vst [vmem:[%s188 + $0x8] sm:$0xff] %v191
                %v193 = vld [vmem:[%s187 + $0x10] sm:$0xff]
                %194 = vst [vmem:[%s188 + $0x10] sm:$0xff] %v193
                %v195 = vld [vmem:[%s187 + $0x18] sm:$0xff]
                %196 = vst [vmem:[%s188 + $0x18] sm:$0xff] %v195
                %v197 = vld [vmem:[%s187 + $0x40] sm:$0xff]
                %198 = vst [vmem:[%s188 + $0x20] sm:$0xff] %v197
                %v199 = vld [vmem:[%s187 + $0x48] sm:$0xff]
                %200 = vst [vmem:[%s188 + $0x28] sm:$0xff] %v199
                %v201 = vld [vmem:[%s187 + $0x50] sm:$0xff]
                %202 = vst [vmem:[%s188 + $0x30] sm:$0xff] %v201
                %v203 = vld [vmem:[%s187 + $0x58] sm:$0xff]
                %204 = vst [vmem:[%s188 + $0x38] sm:$0xff] %v203
                %v205 = vld [vmem:[%s187 + $0x80] sm:$0xff]
                %206 = vst [vmem:[%s188 + $0x40] sm:$0xff] %v205
                %v207 = vld [vmem:[%s187 + $0x88] sm:$0xff]
                %208 = vst [vmem:[%s188 + $0x48] sm:$0xff] %v207
                %v209 = vld [vmem:[%s187 + $0x90] sm:$0xff]
                %210 = vst [vmem:[%s188 + $0x50] sm:$0xff] %v209
                %v211 = vld [vmem:[%s187 + $0x98] sm:$0xff]
                %212 = vst [vmem:[%s188 + $0x58] sm:$0xff] %v211
                %v213 = vld [vmem:[%s187 + $0xc0] sm:$0xff]
                %214 = vst [vmem:[%s188 + $0x60] sm:$0xff] %v213
                %v215 = vld [vmem:[%s187 + $0xc8] sm:$0xff]
                %216 = vst [vmem:[%s188 + $0x68] sm:$0xff] %v215
                %v217 = vld [vmem:[%s187 + $0xd0] sm:$0xff]
                %218 = vst [vmem:[%s188 + $0x70] sm:$0xff] %v217
                %v219 = vld [vmem:[%s187 + $0xd8] sm:$0xff]
                %220 = vst [vmem:[%s188 + $0x78] sm:$0xff] %v219
              $region49: #{df_decoder_forward.7} parent=43 // loop_footer
                %s186 = sadd.s32 1, %s182
              $region50: #{df_decoder_forward.7} parent=43 // loop_footer_branch
                %181 = sbr.rel target = $region46
              $region51: #{df_decoder_forward.7} parent=43 // loop_exit
                _
            $region44: #{df_decoder_forward.7} parent=35 // pred_fallthru
              _
          $region36: #{df_decoder_forward.7} parent=31 // pred_fallthru
            _
          %265 = vnop
        $region32: #{df_decoder_forward.7} parent=23 // pred_fallthru
          _
      $region24: #{df_decoder_forward.7} parent=5 // pred_fallthru
        _
      %p266 = scmp.le.s32.totalorder 1, %s10
      %p267 = scmp.lt.s32.totalorder %s10, 3
      %p268 = pnand %p266, %p267
      %p269 = pneg %p268
      // Predicated region
      $region67: #{df_decoder_forward.7} parent=5 // pred_check
        _
      $region68: #{df_decoder_forward.7} parent=5 // pred_check_branch
        %271 = sbr.rel (%p268) target = $region70
      $region69: #{df_decoder_forward.7} parent=5 // pred_region
        %s272 = ssub.s32 %s10, 1
        %s273 = sand.u32 %s91, 1
        %s274 = sand.u32 %s91, 1
        %s275 = smul.addr %s274, 128
        %s276 = scalar_lea.vmem [#allocation2], %s275
        // Predicated region
        $region71: #{df_decoder_forward.7} parent=69 // pred_check
          %p277 = pneg %p104
        $region72: #{df_decoder_forward.7} parent=69 // pred_check_branch
          %279 = sbr.rel (%p277) target = $region74
        $region73: #{df_decoder_forward.7} parent=69 // pred_region
          _
        $region74: #{df_decoder_forward.7} parent=69 // pred_fallthru
          _
        %s280 = smul.u32 4, %s15
        %p281 = scmp.lt.s32.totalorder %s280, 7
        %s282 = scalar_select %p281, %s280, 7
        %s283 = smul.addr %s282, 8
        %s284 = scalar_lea.vmem %s0, %s283
        %p285 = pneg %p36
        %p286 = pneg %p33
        %p287 = pneg %p57
        %p288 = pneg %p54
        %p289 = pneg %p78
        %p290 = pneg %p75
        %s291 = sand.u32 %s91, 1
        %s292 = sand.u32 %s91, 1
        %s293 = smul.addr %s292, 128
        %s294 = scalar_lea.vmem [#allocation2], %s293
        %p295 = pneg %p104
        %p296 = pneg %p101
        %p297 = pneg %p130
        %p298 = pneg %p127
        %s299 = smul.u32 4, %s15
        %p300 = scmp.lt.s32.totalorder %s299, 7
        %s301 = scalar_select %p300, %s299, 7
        %s302 = smul.addr %s301, 8
        %s303 = scalar_lea.vmem %s4, %s302
        %s304 = smul.u32 4, %s15
        %p305 = scmp.lt.s32.totalorder %s304, 7
        %s306 = scalar_select %p305, %s304, 7
        %s307 = smul.addr %s306, 8
        %s308 = scalar_lea.vmem %s0, %s307
        %s309 = smul.u32 4, %s15
        %s310 = smul.u32 4, %s15
        %s311 = smul.u32 4, %s15
        %p312 = scmp.lt.s32.totalorder %s311, 7
        %s313 = scalar_select %p312, %s311, 7
        %s314 = smul.addr %s313, 8
        %s315 = scalar_lea.vmem %s4, %s314
        %s316 = smul.u32 4, %s15
        %v318 = vld [vmem:[%s308] sm:$0xff]
        %v319 = vld [vmem:[%s308 + $0x8] sm:$0xff]
        %v320 = vld [vmem:[%s308 + $0x10] sm:$0xff]
        %v321 = vld [vmem:[%s308 + $0x18] sm:$0xff]
        %v322 = vpack.c.bf16 %v319, %v318
        %v323 = vpack.c.bf16 %v321, %v320
        %v324 = vld [vmem:[%s1] sm:$0xf]
        %v325 = vld [vmem:[%s1 + $0x4] sm:$0xf]
        %v326 = vld [vmem:[%s1 + $0x8] sm:$0xf]
        %v327 = vld [vmem:[%s1 + $0xc] sm:$0xf]
        %v328 = vld [vmem:[%s1 + $0x10] sm:$0xf]
        %v329 = vld [vmem:[%s1 + $0x14] sm:$0xf]
        %v330 = vld [vmem:[%s1 + $0x18] sm:$0xf]
        %v331 = vld [vmem:[%s1 + $0x1c] sm:$0xf]
        %v332 = vld [vmem:[%s1 + $0x20] sm:$0xf]
        %v333 = vld [vmem:[%s1 + $0x24] sm:$0xf]
        %v334 = vld [vmem:[%s1 + $0x28] sm:$0xf]
        %v335 = vld [vmem:[%s1 + $0x2c] sm:$0xf]
        %v336 = vld [vmem:[%s1 + $0x30] sm:$0xf]
        %v337 = vld [vmem:[%s1 + $0x34] sm:$0xf]
        %v338 = vld [vmem:[%s1 + $0x38] sm:$0xf]
        %v339 = vld [vmem:[%s1 + $0x3c] sm:$0xf]
        %v340 = vld [vmem:[%s2] sm:$0x1]
        %v342 = vlaneseq
        %v343 = vshrl.u32 %v342, 7
        %v344 = vsub.s32 0, %v343
        %v345 = vrot.slane %v340, %v344
        %v363 = vunpack.c.l.b16 %v324
        %v364 = vunpack.c.l.b16 %v325
        %v365 = vunpack.c.l.b16 %v326
        %v366 = vunpack.c.l.b16 %v327
        %v367 = vunpack.c.l.b16 %v328
        %v368 = vunpack.c.l.b16 %v329
        %v369 = vunpack.c.l.b16 %v330
        %v370 = vunpack.c.l.b16 %v331
        %v371 = vunpack.c.l.b16 %v332
        %v372 = vunpack.c.l.b16 %v333
        %v373 = vunpack.c.l.b16 %v334
        %v374 = vunpack.c.l.b16 %v335
        %v375 = vunpack.c.l.b16 %v336
        %v376 = vunpack.c.l.b16 %v337
        %v377 = vunpack.c.l.b16 %v338
        %v378 = vunpack.c.l.b16 %v339
        %v379 = vpack.c.b16 %v364, %v363
        %v380 = vpack.c.b16 %v366, %v365
        %v381 = vpack.c.b16 %v368, %v367
        %v382 = vpack.c.b16 %v370, %v369
        %v383 = vpack.c.b16 %v372, %v371
        %v384 = vpack.c.b16 %v374, %v373
        %v385 = vpack.c.b16 %v376, %v375
        %v386 = vpack.c.b16 %v378, %v377
        %395 = vmatprep.subr.bf16.mxu0 0
        %396 = vmatpush1.bf16.msra.mxu0 %v379
        %397 = vmatprep.subr.bf16.mxu0 0
        %398 = vmatpush1.bf16.msra.mxu0 %v380
        %399 = vmatprep.subr.bf16.mxu0 0
        %400 = vmatpush1.bf16.msra.mxu0 %v381
        %401 = vmatprep.subr.bf16.mxu0 0
        %402 = vmatpush1.bf16.msra.mxu0 %v382
        %403 = vmatprep.subr.bf16.mxu0 0
        %404 = vmatpush1.bf16.msra.mxu0 %v383
        %405 = vmatprep.subr.bf16.mxu0 0
        %406 = vmatpush1.bf16.msra.mxu0 %v384
        %407 = vmatprep.subr.bf16.mxu0 0
        %408 = vmatpush1.bf16.msra.mxu0 %v385
        %409 = vmatprep.subr.bf16.mxu0 0
        %410 = vmatpush1.bf16.msra.mxu0 %v386
        %411 = vmatprep.subr.bf16.mxu0 0
        %412 = vmatpush1.bf16.msra.mxu0 0
        %413 = vmatprep.subr.bf16.mxu0 0
        %414 = vmatpush1.bf16.msra.mxu0 0
        %415 = vmatprep.subr.bf16.mxu0 0
        %416 = vmatpush1.bf16.msra.mxu0 0
        %417 = vmatprep.subr.bf16.mxu0 0
        %418 = vmatpush1.bf16.msra.mxu0 0
        %419 = vmatprep.subr.bf16.mxu0 0
        %420 = vmatpush1.bf16.msra.mxu0 0
        %421 = vmatprep.subr.bf16.mxu0 0
        %422 = vmatpush1.bf16.msra.mxu0 0
        %423 = vmatprep.subr.bf16.mxu0 0
        %424 = vmatpush1.bf16.msra.mxu0 0
        %425 = vmatprep.subr.bf16.mxu0 0
        %426 = vmatpush1.bf16.msra.mxu0 0
        %427 = vmatprep.mubr.bf16.mxu0 0
        %428 = vmatmul.mubr.bf16.gmra.mrb[0].mxu0 %v322
        %v429 = vpop.f32.mrb[0].mxu0
        %v430 = vadd.f32 %v345, %v429
        %v431 = vpop.f32.mrb[0].mxu0
        %v432 = vpop.f32.mrb[0].mxu0
        %v433 = vadd.f32 %v345, %v432
        %v434 = vpop.f32.mrb[0].mxu0
        %435 = vmatprep.mubr.bf16.mxu0 0
        %436 = vmatmul.mubr.bf16.gmra.mrb[0].mxu0 %v323
        %v437 = vpop.f32.mrb[0].mxu0
        %v438 = vadd.f32 %v345, %v437
        %v439 = vpop.f32.mrb[0].mxu0
        %v440 = vpop.f32.mrb[0].mxu0
        %v441 = vadd.f32 %v345, %v440
        %v442 = vpop.f32.mrb[0].mxu0
        %443 = vdwg.mxu0
        %v444 = vlaneseq
        %v445 = vand.u32 %v444, 127
        %vm446 = vcmp.lt.s32.totalorder %v445, 64
        %v447 = vmul.f32 %v430, 0.5
        %v448 = vmul.f32 %v433, 0.5
        %v449 = vmul.f32 %v438, 0.5
        %v450 = vmul.f32 %v441, 0.5
        %v451 = vsel %vm446, %v430, %v447
        %v452 = vsel %vm446, %v433, %v448
        %v453 = vsel %vm446, %v438, %v449
        %v454 = vsel %vm446, %v441, %v450
        %v455 = vtanh.pop %v451
        %v456 = vtanh.pop %v452
        %v457 = vtanh.pop %v453
        %v458 = vtanh.pop %v454
        %v459 = vmul.f32 %v455, 0.5
        %v460 = vmul.f32 %v456, 0.5
        %v461 = vmul.f32 %v457, 0.5
        %v462 = vmul.f32 %v458, 0.5
        %v463 = vadd.f32 %v459, 0.5
        %v464 = vadd.f32 %v460, 0.5
        %v465 = vadd.f32 %v461, 0.5
        %v466 = vadd.f32 %v462, 0.5
        %v467 = vsel %vm446, %v455, %v463
        %v468 = vsel %vm446, %v456, %v464
        %v469 = vsel %vm446, %v457, %v465
        %v470 = vsel %vm446, %v458, %v466
        %v471 = vld [vmem:[%s276] sm:$0xff]
        %v472 = vld [vmem:[%s276 + $0x8] sm:$0xff]
        %v473 = vld [vmem:[%s276 + $0x10] sm:$0xff]
        %v474 = vld [vmem:[%s276 + $0x18] sm:$0xff]
        %s475 = scalar_lea.vmem %s276, 32 [#allocation2]
        %v476 = vld [vmem:[%s475] sm:$0xff]
        %v477 = vld [vmem:[%s475 + $0x8] sm:$0xff]
        %v478 = vld [vmem:[%s475 + $0x10] sm:$0xff]
        %v479 = vld [vmem:[%s475 + $0x18] sm:$0xff]
        %s480 = scalar_lea.vmem %s276, 64 [#allocation2]
        %v481 = vld [vmem:[%s480] sm:$0xff]
        %v482 = vld [vmem:[%s480 + $0x8] sm:$0xff]
        %v483 = vld [vmem:[%s480 + $0x10] sm:$0xff]
        %v484 = vld [vmem:[%s480 + $0x18] sm:$0xff]
        %s485 = scalar_lea.vmem %s276, 96 [#allocation2]
        %v486 = vld [vmem:[%s485] sm:$0xff]
        %v487 = vld [vmem:[%s485 + $0x8] sm:$0xff]
        %v488 = vld [vmem:[%s485 + $0x10] sm:$0xff]
        %v489 = vld [vmem:[%s485 + $0x18] sm:$0xff]
        %494 = vrot.lane.b32.xlu0 %v476, 16
        %v495 = vpop.permute.xlu0 %494
        %496 = vrot.lane.b32.xlu0 %v477, 16
        %v497 = vpop.permute.xlu0 %496
        %498 = vrot.lane.b32.xlu0 %v478, 16
        %v499 = vpop.permute.xlu0 %498
        %500 = vrot.lane.b32.xlu0 %v479, 16
        %v501 = vpop.permute.xlu0 %500
        %510 = vrot.lane.b32.xlu0 %v481, 32
        %v511 = vpop.permute.xlu0 %510
        %512 = vrot.lane.b32.xlu0 %v482, 32
        %v513 = vpop.permute.xlu0 %512
        %514 = vrot.lane.b32.xlu0 %v483, 32
        %v515 = vpop.permute.xlu0 %514
        %516 = vrot.lane.b32.xlu0 %v484, 32
        %v517 = vpop.permute.xlu0 %516
        %526 = vrot.lane.b32.xlu0 %v486, 48
        %v527 = vpop.permute.xlu0 %526
        %528 = vrot.lane.b32.xlu0 %v487, 48
        %v529 = vpop.permute.xlu0 %528
        %530 = vrot.lane.b32.xlu0 %v488, 48
        %v531 = vpop.permute.xlu0 %530
        %532 = vrot.lane.b32.xlu0 %v489, 48
        %v533 = vpop.permute.xlu0 %532
        %vm538 = vcmask 130048
        %v539 = vsel %vm538, %v471, %v495
        %v540 = vsel %vm538, %v472, %v497
        %v541 = vsel %vm538, %v473, %v499
        %v542 = vsel %vm538, %v474, %v501
        %vm543 = vcmask 261120
        %v544 = vsel %vm543, %v539, %v511
        %v545 = vsel %vm543, %v540, %v513
        %v546 = vsel %vm543, %v541, %v515
        %v547 = vsel %vm543, %v542, %v517
        %vm548 = vcmask 392192
        %v549 = vsel %vm548, %v544, %v527
        %v550 = vsel %vm548, %v545, %v529
        %v551 = vsel %vm548, %v546, %v531
        %v552 = vsel %vm548, %v547, %v533
        %vm553 = vcmask 523264
        %v554 = vsel %vm553, %v549, 0.0
        %v555 = vsel %vm553, %v550, 0.0
        %v556 = vsel %vm553, %v551, 0.0
        %v557 = vsel %vm553, %v552, 0.0
        %v558 = vadd.f32 %v467, %v554
        %v559 = vadd.f32 %v468, %v555
        %v560 = vadd.f32 %v469, %v556
        %v561 = vadd.f32 %v470, %v557
        %562 = vst [vmem:[%s315] sm:$0xff] %v558
        %563 = vst [vmem:[%s315 + $0x8] sm:$0xff] %v559
        %564 = vst [vmem:[%s315 + $0x10] sm:$0xff] %v560
        %565 = vst [vmem:[%s315 + $0x18] sm:$0xff] %v561
        %s566 = smul.u32 4, %s15
        %p567 = scmp.lt.s32.totalorder %s566, 7
        %s568 = scalar_select %p567, %s566, 7
        %s569 = smul.addr %s568, 8
        %s570 = scalar_lea.vmem %s4, %s569
        // Predicated region
        $region75: #{df_decoder_forward.7} parent=69 // pred_check
          %p571 = pneg %p127
        $region76: #{df_decoder_forward.7} parent=69 // pred_check_branch
          %573 = sbr.rel (%p571) target = $region78
        $region77: #{df_decoder_forward.7} parent=69 // pred_region
          %s574 = smul.u32 4, %s15
        $region78: #{df_decoder_forward.7} parent=69 // pred_fallthru
          _
      $region70: #{df_decoder_forward.7} parent=5 // pred_fallthru
        _
      %p575 = scmp.le.s32.totalorder 2, %s10
      // Predicated region
      $region79: #{df_decoder_forward.7} parent=5 // pred_check
        %p576 = pneg %p575
      $region80: #{df_decoder_forward.7} parent=5 // pred_check_branch
        %578 = sbr.rel (%p576) target = $region82
      $region81: #{df_decoder_forward.7} parent=5 // pred_region
        %s579 = ssub.s32 %s10, 2
        // Predicated region
        $region83: #{df_decoder_forward.7} parent=81 // pred_check
          %p580 = pneg %p133
        $region84: #{df_decoder_forward.7} parent=81 // pred_check_branch
          %582 = sbr.rel (%p580) target = $region86
        $region85: #{df_decoder_forward.7} parent=81 // pred_region
          %s583 = smul.u32 4, %s16
          %p584 = scmp.lt.s32.totalorder %s583, 7
          %s585 = scalar_select %p584, %s583, 7
          %s586 = smul.addr %s585, 8
          %s587 = scalar_lea.vmem %s4, %s586
        $region86: #{df_decoder_forward.7} parent=81 // pred_fallthru
          _
      $region82: #{df_decoder_forward.7} parent=5 // pred_fallthru
        _
    $region6: #{df_decoder_forward.7} parent=1 // loop_footer
      %s14 = sadd.s32 1, %s10
    $region7: #{df_decoder_forward.7} parent=1 // loop_footer_branch
      %9 = sbr.rel target = $region3
    $region8: #{df_decoder_forward.7} parent=1 // loop_exit
      _

// kernel: df_decoder_forward.4
$region0: #{df_decoder_forward.4}
  #allocation0 [shape = 'u32[]', space=smem, size = 0x4, offset = 0x4, fixed_abs, tag = 'smem constant byte address 0x4 - core index']
  #allocation1 [shape = 'u32[144,128]{1,0:T(1,128)}', space=vmem, size = 0x12000, scoped, tag = 'internal scratch']
  #allocation2 [shape = 'f32[3,8,128]{2,1,0:T(8,128)}', space=vmem, size = 0x3000, scoped, tag = 'scratch operand']
  #allocation3 [shape = 'f32[4,8,384]{2,1,0:T(8,128)}', space=vmem, size = 0xc000, scoped, tag = 'scratch operand']
  #allocation4 [shape = 'f32[4,8,128]{2,1,0:T(8,128)}', space=vmem, size = 0x4000, scoped, tag = 'scratch operand']
  %s0 = inlined_call_operand.vmem [shape: f32[8,8,128], index: 0, kind: input, shape index: {}]
  %s1 = inlined_call_operand.vmem [shape: bf16[3,128,384], index: 1, kind: input, shape index: {}]
  %s2 = inlined_call_operand.vmem [shape: f32[3,1,384], index: 2, kind: input, shape index: {}]
  %s3 = inlined_call_operand.vmem [shape: bf16[3,128,384], index: 3, kind: input, shape index: {}]
  %s4 = inlined_call_operand.vmem [shape: f32[3,1,384], index: 4, kind: input, shape index: {}]
  %s5 = inlined_call_operand.vmem [shape: f32[8,8,128], index: 5, kind: output, shape index: {}]
  %s6 = sld [smem:[#allocation0]]
  $region57: #{df_decoder_forward.4} parent=0
    _
  %s8 = ssub.s32 1, %s6
  %s9 = scalar_select 0, %s8, %s6
  loop: start=0, step=1, limit=4
  $region2: #{df_decoder_forward.4} parent=0 // loop_pre_header
    _
  $region3: #{df_decoder_forward.4} parent=0 // loop_header
    %s11 = sphi 0, %s15
    %p12 = scmp.ge.s32.totalorder %s11, 4
    %s18 = sphi 0, %s30
    %s19 = sphi 0, %s26
    %s20 = sphi 0, %s18
    %s21 = sphi 0, %s19
    %s22 = sphi 0, %s20
    %s23 = sphi 0, %s21
    %s35 = sphi 0, %s37
    %s38 = sphi 0, %s35
    %s39 = sphi 0, %s38
    %s55 = sphi 0, %s39
    %s59 = sphi 0, %s59
    %s61 = sphi 0, %s59
    %s62 = sphi 0, %s61
    %s76 = sphi 0, %s62
    %s80 = sphi 0, %s80
    %s82 = sphi 0, %s80
    %s83 = sphi 0, %s82
    %s97 = sphi 0, %s83
    %s101 = sphi 0, %s101
    %s103 = sphi 0, %s101
    %s104 = sphi 0, %s103
    %s118 = sphi 0, %s104
    %s122 = sphi 0, %s122
    %s124 = sphi 0, %s122
    %s125 = sphi 0, %s124
    %s139 = sphi 0, %s125
    %s147 = sphi 0, %s149
    %s150 = sphi 0, %s147
    %s151 = sphi 0, %s150
    %s167 = sphi 0, %s151
  $region4: #{df_decoder_forward.4} parent=0 // loop_header_branch
    %14 = sbr.rel (%p12) target = $region8
  $region5: #{df_decoder_forward.4} parent=0 // loop_body
    %s16 = ssub.s32 %s11, 1
    %s17 = ssub.s32 %s11, 2
    %s24 = sadd.s32 1, %s19
    %p25 = scmp.ge.s32.totalorder %s24, 2
    %s26 = scalar_select %p25, 0, %s24
    %s27 = sadd.s32 1, %s18
    %s28 = scalar_select %p25, %s27, %s18
    %p29 = scmp.ge.s32.totalorder %s28, 1
    %s30 = scalar_select %p29, 0, %s28
    %s31 = ssub.s32 %s19, %s26
    %s32 = ssub.s32 %s18, %s30
    %s33 = sor.u32 %s31, %s32
    %p34 = scmp.eq.s32.totalorder %s33, 0
    %s36 = sadd.s32 %s35, 1
    %s37 = scalar_select %p34, %s35, %s36
    %p40 = pneg %p34
    %p41 = scmp.eq.s32.totalorder %s11, 1
    %p42 = por %p40, %p41
    %p43 = scmp.ne.s32.totalorder %s35, %s38
    %p44 = scmp.eq.s32.totalorder %s11, 0
    %p45 = por %p43, %p44
    %p46 = scmp.ne.s32.totalorder %s35, %s38
    %p47 = scmp.eq.s32.totalorder %s16, 1
    %p48 = por %p46, %p47
    %p49 = scmp.ne.s32.totalorder %s38, %s39
    %p50 = scmp.eq.s32.totalorder %s16, 0
    %p51 = por %p49, %p50
    %p52 = scmp.ne.s32.totalorder %s38, %s39
    %p53 = scmp.eq.s32.totalorder %s17, 1
    %p54 = por %p52, %p53
    %p56 = scmp.ne.s32.totalorder %s39, %s55
    %p57 = scmp.eq.s32.totalorder %s17, 0
    %p58 = por %p56, %p57
    %s60 = sadd.s32 %s59, 1
    %p63 = scmp.eq.s32.totalorder %s11, 1
    %p64 = scmp.ne.s32.totalorder %s59, %s61
    %p65 = scmp.eq.s32.totalorder %s11, 0
    %p66 = por %p64, %p65
    %p67 = scmp.ne.s32.totalorder %s59, %s61
    %p68 = scmp.eq.s32.totalorder %s16, 1
    %p69 = por %p67, %p68
    %p70 = scmp.ne.s32.totalorder %s61, %s62
    %p71 = scmp.eq.s32.totalorder %s16, 0
    %p72 = por %p70, %p71
    %p73 = scmp.ne.s32.totalorder %s61, %s62
    %p74 = scmp.eq.s32.totalorder %s17, 1
    %p75 = por %p73, %p74
    %p77 = scmp.ne.s32.totalorder %s62, %s76
    %p78 = scmp.eq.s32.totalorder %s17, 0
    %p79 = por %p77, %p78
    %s81 = sadd.s32 %s80, 1
    %p84 = scmp.eq.s32.totalorder %s11, 1
    %p85 = scmp.ne.s32.totalorder %s80, %s82
    %p86 = scmp.eq.s32.totalorder %s11, 0
    %p87 = por %p85, %p86
    %p88 = scmp.ne.s32.totalorder %s80, %s82
    %p89 = scmp.eq.s32.totalorder %s16, 1
    %p90 = por %p88, %p89
    %p91 = scmp.ne.s32.totalorder %s82, %s83
    %p92 = scmp.eq.s32.totalorder %s16, 0
    %p93 = por %p91, %p92
    %p94 = scmp.ne.s32.totalorder %s82, %s83
    %p95 = scmp.eq.s32.totalorder %s17, 1
    %p96 = por %p94, %p95
    %p98 = scmp.ne.s32.totalorder %s83, %s97
    %p99 = scmp.eq.s32.totalorder %s17, 0
    %p100 = por %p98, %p99
    %s102 = sadd.s32 %s101, 1
    %p105 = scmp.eq.s32.totalorder %s11, 1
    %p106 = scmp.ne.s32.totalorder %s101, %s103
    %p107 = scmp.eq.s32.totalorder %s11, 0
    %p108 = por %p106, %p107
    %p109 = scmp.ne.s32.totalorder %s101, %s103
    %p110 = scmp.eq.s32.totalorder %s16, 1
    %p111 = por %p109, %p110
    %p112 = scmp.ne.s32.totalorder %s103, %s104
    %p113 = scmp.eq.s32.totalorder %s16, 0
    %p114 = por %p112, %p113
    %p115 = scmp.ne.s32.totalorder %s103, %s104
    %p116 = scmp.eq.s32.totalorder %s17, 1
    %p117 = por %p115, %p116
    %p119 = scmp.ne.s32.totalorder %s104, %s118
    %p120 = scmp.eq.s32.totalorder %s17, 0
    %p121 = por %p119, %p120
    %s123 = sadd.s32 %s122, 1
    %p126 = scmp.eq.s32.totalorder %s11, 1
    %p127 = scmp.ne.s32.totalorder %s122, %s124
    %p128 = scmp.eq.s32.totalorder %s11, 0
    %p129 = por %p127, %p128
    %p130 = scmp.ne.s32.totalorder %s122, %s124
    %p131 = scmp.eq.s32.totalorder %s16, 1
    %p132 = por %p130, %p131
    %p133 = scmp.ne.s32.totalorder %s124, %s125
    %p134 = scmp.eq.s32.totalorder %s16, 0
    %p135 = por %p133, %p134
    %p136 = scmp.ne.s32.totalorder %s124, %s125
    %p137 = scmp.eq.s32.totalorder %s17, 1
    %p138 = por %p136, %p137
    %p140 = scmp.ne.s32.totalorder %s125, %s139
    %p141 = scmp.eq.s32.totalorder %s17, 0
    %p142 = por %p140, %p141
    %s143 = ssub.s32 %s19, %s26
    %s144 = ssub.s32 %s18, %s30
    %s145 = sor.u32 %s143, %s144
    %p146 = scmp.eq.s32.totalorder %s145, 0
    %s148 = sadd.s32 %s147, 1
    %s149 = scalar_select %p146, %s147, %s148
    %p152 = pneg %p146
    %p153 = scmp.eq.s32.totalorder %s11, 1
    %p154 = por %p152, %p153
    %p155 = scmp.ne.s32.totalorder %s147, %s150
    %p156 = scmp.eq.s32.totalorder %s11, 0
    %p157 = por %p155, %p156
    %p158 = scmp.ne.s32.totalorder %s147, %s150
    %p159 = scmp.eq.s32.totalorder %s16, 1
    %p160 = por %p158, %p159
    %p161 = scmp.ne.s32.totalorder %s150, %s151
    %p162 = scmp.eq.s32.totalorder %s16, 0
    %p163 = por %p161, %p162
    %p164 = scmp.ne.s32.totalorder %s150, %s151
    %p165 = scmp.eq.s32.totalorder %s17, 1
    %p166 = por %p164, %p165
    %p168 = scmp.ne.s32.totalorder %s151, %s167
    %p169 = scmp.eq.s32.totalorder %s17, 0
    %p170 = por %p168, %p169
    %p171 = scmp.le.s32.totalorder 1, %s11
    %p172 = scmp.lt.s32.totalorder %s11, 3
    %p173 = pnand %p171, %p172
    %p174 = pneg %p173
    // Predicated region
    $region9: #{df_decoder_forward.4} parent=5 // pred_check
      _
    $region10: #{df_decoder_forward.4} parent=5 // pred_check_branch
      %176 = sbr.rel (%p173) target = $region12
    $region11: #{df_decoder_forward.4} parent=5 // pred_region
      %s177 = ssub.s32 %s11, 1
      // Predicated region
      $region13: #{df_decoder_forward.4} parent=11 // pred_check
        %p178 = pneg %p72
      $region14: #{df_decoder_forward.4} parent=11 // pred_check_branch
        %180 = sbr.rel (%p178) target = $region16
      $region15: #{df_decoder_forward.4} parent=11 // pred_region
        _
      $region16: #{df_decoder_forward.4} parent=11 // pred_fallthru
        _
      // Predicated region
      $region17: #{df_decoder_forward.4} parent=11 // pred_check
        %p181 = pneg %p93
      $region18: #{df_decoder_forward.4} parent=11 // pred_check_branch
        %183 = sbr.rel (%p181) target = $region20
      $region19: #{df_decoder_forward.4} parent=11 // pred_region
        _
      $region20: #{df_decoder_forward.4} parent=11 // pred_fallthru
        _
      // Predicated region
      $region21: #{df_decoder_forward.4} parent=11 // pred_check
        %p184 = pneg %p114
      $region22: #{df_decoder_forward.4} parent=11 // pred_check_branch
        %186 = sbr.rel (%p184) target = $region24
      $region23: #{df_decoder_forward.4} parent=11 // pred_region
        _
      $region24: #{df_decoder_forward.4} parent=11 // pred_fallthru
        _
      // Predicated region
      $region25: #{df_decoder_forward.4} parent=11 // pred_check
        %p187 = pneg %p135
      $region26: #{df_decoder_forward.4} parent=11 // pred_check_branch
        %189 = sbr.rel (%p187) target = $region28
      $region27: #{df_decoder_forward.4} parent=11 // pred_region
        _
      $region28: #{df_decoder_forward.4} parent=11 // pred_fallthru
        _
    $region12: #{df_decoder_forward.4} parent=5 // pred_fallthru
      _
    %p190 = scmp.lt.s32.totalorder %s11, 2
    // Predicated region
    $region29: #{df_decoder_forward.4} parent=5 // pred_check
      %p191 = pneg %p190
    $region30: #{df_decoder_forward.4} parent=5 // pred_check_branch
      %193 = sbr.rel (%p191) target = $region32
    $region31: #{df_decoder_forward.4} parent=5 // pred_region
      // Predicated region
      $region33: #{df_decoder_forward.4} parent=31 // pred_check
        %p194 = pneg %p45
      $region34: #{df_decoder_forward.4} parent=31 // pred_check_branch
        %196 = sbr.rel (%p194) target = $region36
      $region35: #{df_decoder_forward.4} parent=31 // pred_region
        %s197 = smul.u32 4, %s19
        %p198 = scmp.lt.s32.totalorder %s197, 7
        %s199 = scalar_select %p198, %s197, 7
        %p200 = scmp.lt.s32.totalorder %s18, 0
        %s201 = scalar_select %p200, %s18, 0
        %s202 = sadd.s32 %s201, %s199
        %s203 = smul.addr %s202, 8
        %s204 = scalar_lea.vmem %s0, %s203
        %s205 = smul.u32 4, %s19
      $region36: #{df_decoder_forward.4} parent=31 // pred_fallthru
        _
    $region32: #{df_decoder_forward.4} parent=5 // pred_fallthru
      _
    %p206 = scmp.le.s32.totalorder 1, %s11
    %p207 = scmp.lt.s32.totalorder %s11, 3
    %p208 = pnand %p206, %p207
    %p209 = pneg %p208
    // Predicated region
    $region37: #{df_decoder_forward.4} parent=5 // pred_check
      _
    $region38: #{df_decoder_forward.4} parent=5 // pred_check_branch
      %211 = sbr.rel (%p208) target = $region40
    $region39: #{df_decoder_forward.4} parent=5 // pred_region
      %s212 = ssub.s32 %s11, 1
      %s213 = smul.u32 4, %s21
      %p214 = scmp.lt.s32.totalorder %s213, 7
      %s215 = scalar_select %p214, %s213, 7
      %p216 = scmp.lt.s32.totalorder %s20, 0
      %s217 = scalar_select %p216, %s20, 0
      %s218 = sadd.s32 %s217, %s215
      %s219 = smul.addr %s218, 8
      %s220 = scalar_lea.vmem %s0, %s219
      %p221 = pneg %p51
      %p222 = pneg %p48
      %p223 = pneg %p72
      %p224 = pneg %p69
      %p225 = pneg %p93
      %p226 = pneg %p90
      %p227 = pneg %p114
      %p228 = pneg %p111
      %p229 = pneg %p135
      %p230 = pneg %p132
      %p231 = pneg %p163
      %p232 = pneg %p160
      %s233 = smul.u32 4, %s21
      %p234 = scmp.lt.s32.totalorder %s233, 7
      %s235 = scalar_select %p234, %s233, 7
      %p236 = scmp.lt.s32.totalorder %s20, 0
      %s237 = scalar_select %p236, %s20, 0
      %s238 = sadd.s32 %s237, %s235
      %s239 = smul.addr %s238, 8
      %s240 = scalar_lea.vmem %s5, %s239
      %s241 = smul.u32 4, %s21
      %p242 = scmp.lt.s32.totalorder %s241, 7
      %s243 = scalar_select %p242, %s241, 7
      %p244 = scmp.lt.s32.totalorder %s20, 0
      %s245 = scalar_select %p244, %s20, 0
      %s246 = sadd.s32 %s245, %s243
      %s247 = smul.addr %s246, 8
      %s248 = scalar_lea.vmem %s0, %s247
      %s249 = smul.u32 4, %s21
      %s250 = smul.u32 4, %s21
      %p251 = scmp.lt.s32.totalorder %s250, 7
      %s252 = scalar_select %p251, %s250, 7
      %p253 = scmp.lt.s32.totalorder %s20, 0
      %s254 = scalar_select %p253, %s20, 0
      %s255 = sadd.s32 %s254, %s252
      %s256 = smul.addr %s255, 8
      %s257 = scalar_lea.vmem %s5, %s256
      %s258 = smul.u32 4, %s21
      %p260 = scmp.eq.s32.totalorder %s21, 0
      // Predicated region
      $region41: #{df_decoder_forward.4} parent=39 // pred_check
        %p261 = pneg %p260
      $region42: #{df_decoder_forward.4} parent=39 // pred_check_branch
        %263 = sbr.rel (%p261) target = $region44
      $region43: #{df_decoder_forward.4} parent=39 // pred_region
        %264 = vst [vmem:[#allocation2] sm:$0xff] 0.0
        %265 = vst [vmem:[#allocation2 + $0x8] sm:$0xff] 0.0
        %266 = vst [vmem:[#allocation2 + $0x10] sm:$0xff] 0.0
      $region44: #{df_decoder_forward.4} parent=39 // pred_fallthru
        _
      %v267 = vld [vmem:[%s248] sm:$0xff]
      %v268 = vld [vmem:[%s248 + $0x8] sm:$0xff]
      %v269 = vld [vmem:[%s248 + $0x10] sm:$0xff]
      %v270 = vld [vmem:[%s248 + $0x18] sm:$0xff]
      %v271 = vpack.c.bf16 %v268, %v267
      %v272 = vpack.c.bf16 %v270, %v269
      %v273 = vld [vmem:[%s1] sm:$0xff]
      %v274 = vld [vmem:[%s1 + $0x8] sm:$0xf]
      %v275 = vld [vmem:[%s1 + $0xc] sm:$0xff]
      %v276 = vld [vmem:[%s1 + $0x14] sm:$0xf]
      %v277 = vld [vmem:[%s1 + $0x18] sm:$0xff]
      %v278 = vld [vmem:[%s1 + $0x20] sm:$0xf]
      %v279 = vld [vmem:[%s1 + $0x24] sm:$0xff]
      %v280 = vld [vmem:[%s1 + $0x2c] sm:$0xf]
      %v281 = vld [vmem:[%s1 + $0x30] sm:$0xff]
      %v282 = vld [vmem:[%s1 + $0x38] sm:$0xf]
      %v283 = vld [vmem:[%s1 + $0x3c] sm:$0xff]
      %v284 = vld [vmem:[%s1 + $0x44] sm:$0xf]
      %v285 = vld [vmem:[%s1 + $0x48] sm:$0xff]
      %v286 = vld [vmem:[%s1 + $0x50] sm:$0xf]
      %v287 = vld [vmem:[%s1 + $0x54] sm:$0xff]
      %v288 = vld [vmem:[%s1 + $0x5c] sm:$0xf]
      %v289 = vld [vmem:[%s1 + $0x60] sm:$0xff]
      %v290 = vld [vmem:[%s1 + $0x68] sm:$0xf]
      %v291 = vld [vmem:[%s1 + $0x6c] sm:$0xff]
      %v292 = vld [vmem:[%s1 + $0x74] sm:$0xf]
      %v293 = vld [vmem:[%s1 + $0x78] sm:$0xff]
      %v294 = vld [vmem:[%s1 + $0x80] sm:$0xf]
      %v295 = vld [vmem:[%s1 + $0x84] sm:$0xff]
      %v296 = vld [vmem:[%s1 + $0x8c] sm:$0xf]
      %v297 = vld [vmem:[%s1 + $0x90] sm:$0xff]
      %v298 = vld [vmem:[%s1 + $0x98] sm:$0xf]
      %v299 = vld [vmem:[%s1 + $0x9c] sm:$0xff]
      %v300 = vld [vmem:[%s1 + $0xa4] sm:$0xf]
      %v301 = vld [vmem:[%s1 + $0xa8] sm:$0xff]
      %v302 = vld [vmem:[%s1 + $0xb0] sm:$0xf]
      %v303 = vld [vmem:[%s1 + $0xb4] sm:$0xff]
      %v304 = vld [vmem:[%s1 + $0xbc] sm:$0xf]
      %v305 = vld [vmem:[%s2] sm:$0x7]
      %v307 = vlaneseq
      %v308 = vshrl.u32 %v307, 7
      %v309 = vsub.s32 0, %v308
      %v310 = vrot.slane %v305, %v309
      %v311 = vlaneseq
      %v312 = vshrl.u32 %v311, 7
      %v313 = vsub.s32 1, %v312
      %v314 = vrot.slane %v305, %v313
      %v315 = vlaneseq
      %v316 = vshrl.u32 %v315, 7
      %v317 = vsub.s32 2, %v316
      %v318 = vrot.slane %v305, %v317
      %v354 = vunpack.c.l.b16 %v273
      %v355 = vunpack.c.h.b16 %v273
      %v356 = vunpack.c.l.b16 %v274
      %v357 = vunpack.c.l.b16 %v275
      %v358 = vunpack.c.h.b16 %v275
      %v359 = vunpack.c.l.b16 %v276
      %v360 = vunpack.c.l.b16 %v277
      %v361 = vunpack.c.h.b16 %v277
      %v362 = vunpack.c.l.b16 %v278
      %v363 = vunpack.c.l.b16 %v279
      %v364 = vunpack.c.h.b16 %v279
      %v365 = vunpack.c.l.b16 %v280
      %v366 = vunpack.c.l.b16 %v281
      %v367 = vunpack.c.h.b16 %v281
      %v368 = vunpack.c.l.b16 %v282
      %v369 = vunpack.c.l.b16 %v283
      %v370 = vunpack.c.h.b16 %v283
      %v371 = vunpack.c.l.b16 %v284
      %v372 = vunpack.c.l.b16 %v285
      %v373 = vunpack.c.h.b16 %v285
      %v374 = vunpack.c.l.b16 %v286
      %v375 = vunpack.c.l.b16 %v287
      %v376 = vunpack.c.h.b16 %v287
      %v377 = vunpack.c.l.b16 %v288
      %v378 = vunpack.c.l.b16 %v289
      %v379 = vunpack.c.h.b16 %v289
      %v380 = vunpack.c.l.b16 %v290
      %v381 = vunpack.c.l.b16 %v291
      %v382 = vunpack.c.h.b16 %v291
      %v383 = vunpack.c.l.b16 %v292
      %v384 = vunpack.c.l.b16 %v293
      %v385 = vunpack.c.h.b16 %v293
      %v386 = vunpack.c.l.b16 %v294
      %v387 = vunpack.c.l.b16 %v295
      %v388 = vunpack.c.h.b16 %v295
      %v389 = vunpack.c.l.b16 %v296
      %v390 = vunpack.c.l.b16 %v297
      %v391 = vunpack.c.h.b16 %v297
      %v392 = vunpack.c.l.b16 %v298
      %v393 = vunpack.c.l.b16 %v299
      %v394 = vunpack.c.h.b16 %v299
      %v395 = vunpack.c.l.b16 %v300
      %v396 = vunpack.c.l.b16 %v301
      %v397 = vunpack.c.h.b16 %v301
      %v398 = vunpack.c.l.b16 %v302
      %v399 = vunpack.c.l.b16 %v303
      %v400 = vunpack.c.h.b16 %v303
      %v401 = vunpack.c.l.b16 %v304
      %v402 = vpack.c.b16 %v357, %v354
      %v403 = vpack.c.b16 %v358, %v355
      %v404 = vpack.c.b16 %v359, %v356
      %v405 = vpack.c.b16 %v363, %v360
      %v406 = vpack.c.b16 %v364, %v361
      %v407 = vpack.c.b16 %v365, %v362
      %v408 = vpack.c.b16 %v369, %v366
      %v409 = vpack.c.b16 %v370, %v367
      %v410 = vpack.c.b16 %v371, %v368
      %v411 = vpack.c.b16 %v375, %v372
      %v412 = vpack.c.b16 %v376, %v373
      %v413 = vpack.c.b16 %v377, %v374
      %v414 = vpack.c.b16 %v381, %v378
      %v415 = vpack.c.b16 %v382, %v379
      %v416 = vpack.c.b16 %v383, %v380
      %v417 = vpack.c.b16 %v387, %v384
      %v418 = vpack.c.b16 %v388, %v385
      %v419 = vpack.c.b16 %v389, %v386
      %v420 = vpack.c.b16 %v393, %v390
      %v421 = vpack.c.b16 %v394, %v391
      %v422 = vpack.c.b16 %v395, %v392
      %v423 = vpack.c.b16 %v399, %v396
      %v424 = vpack.c.b16 %v400, %v397
      %v425 = vpack.c.b16 %v401, %v398
      %450 = vmatprep.subr.bf16.mxu0 %v403
      %451 = vmatpush1.bf16.msra.mxu0 %v402
      %452 = vmatprep.subr.bf16.mxu0 %v406
      %453 = vmatpush1.bf16.msra.mxu0 %v405
      %454 = vmatprep.subr.bf16.mxu0 %v409
      %455 = vmatpush1.bf16.msra.mxu0 %v408
      %456 = vmatprep.subr.bf16.mxu0 %v412
      %457 = vmatpush1.bf16.msra.mxu0 %v411
      %458 = vmatprep.subr.bf16.mxu0 %v415
      %459 = vmatpush1.bf16.msra.mxu0 %v414
      %460 = vmatprep.subr.bf16.mxu0 %v418
      %461 = vmatpush1.bf16.msra.mxu0 %v417
      %462 = vmatprep.subr.bf16.mxu0 %v421
      %463 = vmatpush1.bf16.msra.mxu0 %v420
      %464 = vmatprep.subr.bf16.mxu0 %v424
      %465 = vmatpush1.bf16.msra.mxu0 %v423
      %466 = vmatprep.subr.bf16.mxu0 0
      %467 = vmatpush1.bf16.msra.mxu0 0
      %468 = vmatprep.subr.bf16.mxu0 0
      %469 = vmatpush1.bf16.msra.mxu0 0
      %470 = vmatprep.subr.bf16.mxu0 0
      %471 = vmatpush1.bf16.msra.mxu0 0
      %472 = vmatprep.subr.bf16.mxu0 0
      %473 = vmatpush1.bf16.msra.mxu0 0
      %474 = vmatprep.subr.bf16.mxu0 0
      %475 = vmatpush1.bf16.msra.mxu0 0
      %476 = vmatprep.subr.bf16.mxu0 0
      %477 = vmatpush1.bf16.msra.mxu0 0
      %478 = vmatprep.subr.bf16.mxu0 0
      %479 = vmatpush1.bf16.msra.mxu0 0
      %480 = vmatprep.subr.bf16.mxu0 0
      %481 = vmatpush1.bf16.msra.mxu0 0
      %482 = vmatprep.mubr.bf16.mxu0 0
      %483 = vmatmul.mubr.bf16.gmra.mrb[0].mxu0 %v271
      %v484 = vpop.f32.mrb[0].mxu0
      %v485 = vadd.f32 %v310, %v484
      %v486 = vpop.f32.mrb[0].mxu0
      %v487 = vadd.f32 %v314, %v486
      %v488 = vpop.f32.mrb[0].mxu0
      %v489 = vadd.f32 %v310, %v488
      %v490 = vpop.f32.mrb[0].mxu0
      %v491 = vadd.f32 %v314, %v490
      %492 = vmatprep.mubr.bf16.mxu0 0
      %493 = vmatmul.mubr.bf16.gmra.mrb[0].mxu0 %v272
      %v494 = vpop.f32.mrb[0].mxu0
      %v495 = vadd.f32 %v310, %v494
      %v496 = vpop.f32.mrb[0].mxu0
      %v497 = vadd.f32 %v314, %v496
      %v498 = vpop.f32.mrb[0].mxu0
      %v499 = vadd.f32 %v310, %v498
      %v500 = vpop.f32.mrb[0].mxu0
      %v501 = vadd.f32 %v314, %v500
      %502 = vdwg.mxu0
      %503 = vmatprep.subr.bf16.mxu0 0
      %504 = vmatpush1.bf16.msra.mxu0 %v404
      %505 = vmatprep.subr.bf16.mxu0 0
      %506 = vmatpush1.bf16.msra.mxu0 %v407
      %507 = vmatprep.subr.bf16.mxu0 0
      %508 = vmatpush1.bf16.msra.mxu0 %v410
      %509 = vmatprep.subr.bf16.mxu0 0
      %510 = vmatpush1.bf16.msra.mxu0 %v413
      %511 = vmatprep.subr.bf16.mxu0 0
      %512 = vmatpush1.bf16.msra.mxu0 %v416
      %513 = vmatprep.subr.bf16.mxu0 0
      %514 = vmatpush1.bf16.msra.mxu0 %v419
      %515 = vmatprep.subr.bf16.mxu0 0
      %516 = vmatpush1.bf16.msra.mxu0 %v422
      %517 = vmatprep.subr.bf16.mxu0 0
      %518 = vmatpush1.bf16.msra.mxu0 %v425
      %519 = vmatprep.subr.bf16.mxu0 0
      %520 = vmatpush1.bf16.msra.mxu0 0
      %521 = vmatprep.subr.bf16.mxu0 0
      %522 = vmatpush1.bf16.msra.mxu0 0
      %523 = vmatprep.subr.bf16.mxu0 0
      %524 = vmatpush1.bf16.msra.mxu0 0
      %525 = vmatprep.subr.bf16.mxu0 0
      %526 = vmatpush1.bf16.msra.mxu0 0
      %527 = vmatprep.subr.bf16.mxu0 0
      %528 = vmatpush1.bf16.msra.mxu0 0
      %529 = vmatprep.subr.bf16.mxu0 0
      %530 = vmatpush1.bf16.msra.mxu0 0
      %531 = vmatprep.subr.bf16.mxu0 0
      %532 = vmatpush1.bf16.msra.mxu0 0
      %533 = vmatprep.subr.bf16.mxu0 0
      %534 = vmatpush1.bf16.msra.mxu0 0
      %535 = vmatprep.mubr.bf16.mxu0 0
      %536 = vmatmul.mubr.bf16.gmra.mrb[0].mxu0 %v271
      %v537 = vpop.f32.mrb[0].mxu0
      %v538 = vadd.f32 %v318, %v537
      %v539 = vpop.f32.mrb[0].mxu0
      %v540 = vpop.f32.mrb[0].mxu0
      %v541 = vadd.f32 %v318, %v540
      %v542 = vpop.f32.mrb[0].mxu0
      %543 = vmatprep.mubr.bf16.mxu0 0
      %544 = vmatmul.mubr.bf16.gmra.mrb[0].mxu0 %v272
      %v545 = vpop.f32.mrb[0].mxu0
      %v546 = vadd.f32 %v318, %v545
      %v547 = vpop.f32.mrb[0].mxu0
      %v548 = vpop.f32.mrb[0].mxu0
      %v549 = vadd.f32 %v318, %v548
      %v550 = vpop.f32.mrb[0].mxu0
      %551 = vdwg.mxu0
      %552 = vst [vmem:[#allocation3] sm:$0xff] %v485
      %553 = vst [vmem:[#allocation3 + $0x8] sm:$0xff] %v487
      %554 = vst [vmem:[#allocation3 + $0x10] sm:$0xff] %v538
      %555 = vst [vmem:[#allocation3 + $0x18] sm:$0xff] %v489
      %556 = vst [vmem:[#allocation3 + $0x20] sm:$0xff] %v491
      %557 = vst [vmem:[#allocation3 + $0x28] sm:$0xff] %v541
      %558 = vst [vmem:[#allocation3 + $0x30] sm:$0xff] %v495
      %559 = vst [vmem:[#allocation3 + $0x38] sm:$0xff] %v497
      %560 = vst [vmem:[#allocation3 + $0x40] sm:$0xff] %v546
      %561 = vst [vmem:[#allocation3 + $0x48] sm:$0xff] %v499
      %562 = vst [vmem:[#allocation3 + $0x50] sm:$0xff] %v501
      %563 = vst [vmem:[#allocation3 + $0x58] sm:$0xff] %v549
      %v564 = vld [vmem:[%s3] sm:$0xff]
      %v565 = vld [vmem:[%s3 + $0x8] sm:$0xf]
      %v566 = vld [vmem:[%s3 + $0xc] sm:$0xff]
      %v567 = vld [vmem:[%s3 + $0x14] sm:$0xf]
      %v568 = vld [vmem:[%s3 + $0x18] sm:$0xff]
      %v569 = vld [vmem:[%s3 + $0x20] sm:$0xf]
      %v570 = vld [vmem:[%s3 + $0x24] sm:$0xff]
      %v571 = vld [vmem:[%s3 + $0x2c] sm:$0xf]
      %v572 = vld [vmem:[%s3 + $0x30] sm:$0xff]
      %v573 = vld [vmem:[%s3 + $0x38] sm:$0xf]
      %v574 = vld [vmem:[%s3 + $0x3c] sm:$0xff]
      %v575 = vld [vmem:[%s3 + $0x44] sm:$0xf]
      %v576 = vld [vmem:[%s3 + $0x48] sm:$0xff]
      %v577 = vld [vmem:[%s3 + $0x50] sm:$0xf]
      %v578 = vld [vmem:[%s3 + $0x54] sm:$0xff]
      %v579 = vld [vmem:[%s3 + $0x5c] sm:$0xf]
      %v580 = vld [vmem:[%s3 + $0x60] sm:$0xff]
      %v581 = vld [vmem:[%s3 + $0x68] sm:$0xf]
      %v582 = vld [vmem:[%s3 + $0x6c] sm:$0xff]
      %v583 = vld [vmem:[%s3 + $0x74] sm:$0xf]
      %v584 = vld [vmem:[%s3 + $0x78] sm:$0xff]
      %v585 = vld [vmem:[%s3 + $0x80] sm:$0xf]
      %v586 = vld [vmem:[%s3 + $0x84] sm:$0xff]
      %v587 = vld [vmem:[%s3 + $0x8c] sm:$0xf]
      %v588 = vld [vmem:[%s3 + $0x90] sm:$0xff]
      %v589 = vld [vmem:[%s3 + $0x98] sm:$0xf]
      %v590 = vld [vmem:[%s3 + $0x9c] sm:$0xff]
      %v591 = vld [vmem:[%s3 + $0xa4] sm:$0xf]
      %v592 = vld [vmem:[%s3 + $0xa8] sm:$0xff]
      %v593 = vld [vmem:[%s3 + $0xb0] sm:$0xf]
      %v594 = vld [vmem:[%s3 + $0xb4] sm:$0xff]
      %v595 = vld [vmem:[%s3 + $0xbc] sm:$0xf]
      %v596 = vld [vmem:[%s4] sm:$0x7]
      %v597 = vld [vmem:[#allocation2] sm:$0xff]
      %v598 = vld [vmem:[#allocation3] sm:$0xff]
      %v599 = vld [vmem:[#allocation3 + $0x8] sm:$0xff]
      %v600 = vld [vmem:[#allocation3 + $0x10] sm:$0xff]
      %v601 = vpack.c.bf16 %v597, %v597
      %v603 = vlaneseq
      %v604 = vshrl.u32 %v603, 7
      %v605 = vsub.s32 0, %v604
      %v606 = vrot.slane %v596, %v605
      %v607 = vlaneseq
      %v608 = vshrl.u32 %v607, 7
      %v609 = vsub.s32 1, %v608
      %v610 = vrot.slane %v596, %v609
      %v611 = vlaneseq
      %v612 = vshrl.u32 %v611, 7
      %v613 = vsub.s32 2, %v612
      %v614 = vrot.slane %v596, %v613
      %v650 = vunpack.c.l.b16 %v564
      %v651 = vunpack.c.h.b16 %v564
      %v652 = vunpack.c.l.b16 %v565
      %v653 = vunpack.c.l.b16 %v566
      %v654 = vunpack.c.h.b16 %v566
      %v655 = vunpack.c.l.b16 %v567
      %v656 = vunpack.c.l.b16 %v568
      %v657 = vunpack.c.h.b16 %v568
      %v658 = vunpack.c.l.b16 %v569
      %v659 = vunpack.c.l.b16 %v570
      %v660 = vunpack.c.h.b16 %v570
      %v661 = vunpack.c.l.b16 %v571
      %v662 = vunpack.c.l.b16 %v572
      %v663 = vunpack.c.h.b16 %v572
      %v664 = vunpack.c.l.b16 %v573
      %v665 = vunpack.c.l.b16 %v574
      %v666 = vunpack.c.h.b16 %v574
      %v667 = vunpack.c.l.b16 %v575
      %v668 = vunpack.c.l.b16 %v576
      %v669 = vunpack.c.h.b16 %v576
      %v670 = vunpack.c.l.b16 %v577
      %v671 = vunpack.c.l.b16 %v578
      %v672 = vunpack.c.h.b16 %v578
      %v673 = vunpack.c.l.b16 %v579
      %v674 = vunpack.c.l.b16 %v580
      %v675 = vunpack.c.h.b16 %v580
      %v676 = vunpack.c.l.b16 %v581
      %v677 = vunpack.c.l.b16 %v582
      %v678 = vunpack.c.h.b16 %v582
      %v679 = vunpack.c.l.b16 %v583
      %v680 = vunpack.c.l.b16 %v584
      %v681 = vunpack.c.h.b16 %v584
      %v682 = vunpack.c.l.b16 %v585
      %v683 = vunpack.c.l.b16 %v586
      %v684 = vunpack.c.h.b16 %v586
      %v685 = vunpack.c.l.b16 %v587
      %v686 = vunpack.c.l.b16 %v588
      %v687 = vunpack.c.h.b16 %v588
      %v688 = vunpack.c.l.b16 %v589
      %v689 = vunpack.c.l.b16 %v590
      %v690 = vunpack.c.h.b16 %v590
      %v691 = vunpack.c.l.b16 %v591
      %v692 = vunpack.c.l.b16 %v592
      %v693 = vunpack.c.h.b16 %v592
      %v694 = vunpack.c.l.b16 %v593
      %v695 = vunpack.c.l.b16 %v594
      %v696 = vunpack.c.h.b16 %v594
      %v697 = vunpack.c.l.b16 %v595
      %v698 = vpack.c.b16 %v653, %v650
      %v699 = vpack.c.b16 %v654, %v651
      %v700 = vpack.c.b16 %v655, %v652
      %v701 = vpack.c.b16 %v659, %v656
      %v702 = vpack.c.b16 %v660, %v657
      %v703 = vpack.c.b16 %v661, %v658
      %v704 = vpack.c.b16 %v665, %v662
      %v705 = vpack.c.b16 %v666, %v663
      %v706 = vpack.c.b16 %v667, %v664
      %v707 = vpack.c.b16 %v671, %v668
      %v708 = vpack.c.b16 %v672, %v669
      %v709 = vpack.c.b16 %v673, %v670
      %v710 = vpack.c.b16 %v677, %v674
      %v711 = vpack.c.b16 %v678, %v675
      %v712 = vpack.c.b16 %v679, %v676
      %v713 = vpack.c.b16 %v683, %v680
      %v714 = vpack.c.b16 %v684, %v681
      %v715 = vpack.c.b16 %v685, %v682
      %v716 = vpack.c.b16 %v689, %v686
      %v717 = vpack.c.b16 %v690, %v687
      %v718 = vpack.c.b16 %v691, %v688
      %v719 = vpack.c.b16 %v695, %v692
      %v720 = vpack.c.b16 %v696, %v693
      %v721 = vpack.c.b16 %v697, %v694
      %746 = vmatprep.subr.bf16.mxu0 %v699
      %747 = vmatpush1.bf16.msra.mxu0 %v698
      %748 = vmatprep.subr.bf16.mxu0 %v702
      %749 = vmatpush1.bf16.msra.mxu0 %v701
      %750 = vmatprep.subr.bf16.mxu0 %v705
      %751 = vmatpush1.bf16.msra.mxu0 %v704
      %752 = vmatprep.subr.bf16.mxu0 %v708
      %753 = vmatpush1.bf16.msra.mxu0 %v707
      %754 = vmatprep.subr.bf16.mxu0 %v711
      %755 = vmatpush1.bf16.msra.mxu0 %v710
      %756 = vmatprep.subr.bf16.mxu0 %v714
      %757 = vmatpush1.bf16.msra.mxu0 %v713
      %758 = vmatprep.subr.bf16.mxu0 %v717
      %759 = vmatpush1.bf16.msra.mxu0 %v716
      %760 = vmatprep.subr.bf16.mxu0 %v720
      %761 = vmatpush1.bf16.msra.mxu0 %v719
      %762 = vmatprep.subr.bf16.mxu0 0
      %763 = vmatpush1.bf16.msra.mxu0 0
      %764 = vmatprep.subr.bf16.mxu0 0
      %765 = vmatpush1.bf16.msra.mxu0 0
      %766 = vmatprep.subr.bf16.mxu0 0
      %767 = vmatpush1.bf16.msra.mxu0 0
      %768 = vmatprep.subr.bf16.mxu0 0
      %769 = vmatpush1.bf16.msra.mxu0 0
      %770 = vmatprep.subr.bf16.mxu0 0
      %771 = vmatpush1.bf16.msra.mxu0 0
      %772 = vmatprep.subr.bf16.mxu0 0
      %773 = vmatpush1.bf16.msra.mxu0 0
      %774 = vmatprep.subr.bf16.mxu0 0
      %775 = vmatpush1.bf16.msra.mxu0 0
      %776 = vmatprep.subr.bf16.mxu0 0
      %777 = vmatpush1.bf16.msra.mxu0 0
      %778 = vmatprep.mubr.bf16.mxu0 0
      %779 = vmatmul.mubr.bf16.gmra.mrb[0].mxu0 %v601
      %v780 = vpop.f32.mrb[0].mxu0
      %v781 = vadd.f32 %v606, %v780
      %v782 = vpop.f32.mrb[0].mxu0
      %v783 = vadd.f32 %v610, %v782
      %v784 = vpop.f32.mrb[0].mxu0
      %v785 = vpop.f32.mrb[0].mxu0
      %786 = vdwg.mxu0
      %787 = vmatprep.subr.bf16.mxu0 0
      %788 = vmatpush1.bf16.msra.mxu0 %v700
      %789 = vmatprep.subr.bf16.mxu0 0
      %790 = vmatpush1.bf16.msra.mxu0 %v703
      %791 = vmatprep.subr.bf16.mxu0 0
      %792 = vmatpush1.bf16.msra.mxu0 %v706
      %793 = vmatprep.subr.bf16.mxu0 0
      %794 = vmatpush1.bf16.msra.mxu0 %v709
      %795 = vmatprep.subr.bf16.mxu0 0
      %796 = vmatpush1.bf16.msra.mxu0 %v712
      %797 = vmatprep.subr.bf16.mxu0 0
      %798 = vmatpush1.bf16.msra.mxu0 %v715
      %799 = vmatprep.subr.bf16.mxu0 0
      %800 = vmatpush1.bf16.msra.mxu0 %v718
      %801 = vmatprep.subr.bf16.mxu0 0
      %802 = vmatpush1.bf16.msra.mxu0 %v721
      %803 = vmatprep.subr.bf16.mxu0 0
      %804 = vmatpush1.bf16.msra.mxu0 0
      %805 = vmatprep.subr.bf16.mxu0 0
      %806 = vmatpush1.bf16.msra.mxu0 0
      %807 = vmatprep.subr.bf16.mxu0 0
      %808 = vmatpush1.bf16.msra.mxu0 0
      %809 = vmatprep.subr.bf16.mxu0 0
      %810 = vmatpush1.bf16.msra.mxu0 0
      %811 = vmatprep.subr.bf16.mxu0 0
      %812 = vmatpush1.bf16.msra.mxu0 0
      %813 = vmatprep.subr.bf16.mxu0 0
      %814 = vmatpush1.bf16.msra.mxu0 0
      %815 = vmatprep.subr.bf16.mxu0 0
      %816 = vmatpush1.bf16.msra.mxu0 0
      %817 = vmatprep.subr.bf16.mxu0 0
      %818 = vmatpush1.bf16.msra.mxu0 0
      %819 = vmatprep.mubr.bf16.mxu0 0
      %820 = vmatmul.mubr.bf16.gmra.mrb[0].mxu0 %v601
      %v821 = vpop.f32.mrb[0].mxu0
      %v822 = vadd.f32 %v614, %v821
      %v823 = vpop.f32.mrb[0].mxu0
      %v824 = vpop.f32.mrb[0].mxu0
      %v825 = vpop.f32.mrb[0].mxu0
      %826 = vdwg.mxu0
      %v827 = vadd.f32 %v598, %v781
      %v828 = vmul.f32 %v827, 0.5
      %v829 = vtanh.pop %v828
      %v830 = vmul.f32 %v829, 0.5
      %v831 = vadd.f32 %v830, 0.5
      %v832 = vadd.f32 %v599, %v783
      %v833 = vmul.f32 %v832, 0.5
      %v834 = vtanh.pop %v833
      %v835 = vmul.f32 %v834, 0.5
      %v836 = vadd.f32 %v835, 0.5
      %v837 = vmul.f32 %v831, %v822
      %v838 = vadd.f32 %v600, %v837
      %v839 = vtanh.pop %v838
      %v840 = vsub.f32 1.0, %v836
      %v841 = vmul.f32 %v840, %v839
      %v842 = vmul.f32 %v836, %v597
      %v843 = vadd.f32 %v841, %v842
      %844 = vst [vmem:[#allocation4] sm:$0xff] %v843
      %s845 = scalar_lea.vmem [#allocation3], 24
      %v846 = vld [vmem:[%s845] sm:$0xff]
      %v847 = vld [vmem:[%s845 + $0x8] sm:$0xff]
      %v848 = vld [vmem:[%s845 + $0x10] sm:$0xff]
      %v849 = vpack.c.bf16 %v843, %v843
      %850 = vmatprep.subr.bf16.mxu0 %v699
      %851 = vmatpush1.bf16.msra.mxu0 %v698
      %852 = vmatprep.subr.bf16.mxu0 %v702
      %853 = vmatpush1.bf16.msra.mxu0 %v701
      %854 = vmatprep.subr.bf16.mxu0 %v705
      %855 = vmatpush1.bf16.msra.mxu0 %v704
      %856 = vmatprep.subr.bf16.mxu0 %v708
      %857 = vmatpush1.bf16.msra.mxu0 %v707
      %858 = vmatprep.subr.bf16.mxu0 %v711
      %859 = vmatpush1.bf16.msra.mxu0 %v710
      %860 = vmatprep.subr.bf16.mxu0 %v714
      %861 = vmatpush1.bf16.msra.mxu0 %v713
      %862 = vmatprep.subr.bf16.mxu0 %v717
      %863 = vmatpush1.bf16.msra.mxu0 %v716
      %864 = vmatprep.subr.bf16.mxu0 %v720
      %865 = vmatpush1.bf16.msra.mxu0 %v719
      %866 = vmatprep.subr.bf16.mxu0 0
      %867 = vmatpush1.bf16.msra.mxu0 0
      %868 = vmatprep.subr.bf16.mxu0 0
      %869 = vmatpush1.bf16.msra.mxu0 0
      %870 = vmatprep.subr.bf16.mxu0 0
      %871 = vmatpush1.bf16.msra.mxu0 0
      %872 = vmatprep.subr.bf16.mxu0 0
      %873 = vmatpush1.bf16.msra.mxu0 0
      %874 = vmatprep.subr.bf16.mxu0 0
      %875 = vmatpush1.bf16.msra.mxu0 0
      %876 = vmatprep.subr.bf16.mxu0 0
      %877 = vmatpush1.bf16.msra.mxu0 0
      %878 = vmatprep.subr.bf16.mxu0 0
      %879 = vmatpush1.bf16.msra.mxu0 0
      %880 = vmatprep.subr.bf16.mxu0 0
      %881 = vmatpush1.bf16.msra.mxu0 0
      %882 = vmatprep.mubr.bf16.mxu0 0
      %883 = vmatmul.mubr.bf16.gmra.mrb[0].mxu0 %v849
      %v884 = vpop.f32.mrb[0].mxu0
      %v885 = vadd.f32 %v606, %v884
      %v886 = vpop.f32.mrb[0].mxu0
      %v887 = vadd.f32 %v610, %v886
      %v888 = vpop.f32.mrb[0].mxu0
      %v889 = vpop.f32.mrb[0].mxu0
      %890 = vdwg.mxu0
      %891 = vmatprep.subr.bf16.mxu0 0
      %892 = vmatpush1.bf16.msra.mxu0 %v700
      %893 = vmatprep.subr.bf16.mxu0 0
      %894 = vmatpush1.bf16.msra.mxu0 %v703
      %895 = vmatprep.subr.bf16.mxu0 0
      %896 = vmatpush1.bf16.msra.mxu0 %v706
      %897 = vmatprep.subr.bf16.mxu0 0
      %898 = vmatpush1.bf16.msra.mxu0 %v709
      %899 = vmatprep.subr.bf16.mxu0 0
      %900 = vmatpush1.bf16.msra.mxu0 %v712
      %901 = vmatprep.subr.bf16.mxu0 0
      %902 = vmatpush1.bf16.msra.mxu0 %v715
      %903 = vmatprep.subr.bf16.mxu0 0
      %904 = vmatpush1.bf16.msra.mxu0 %v718
      %905 = vmatprep.subr.bf16.mxu0 0
      %906 = vmatpush1.bf16.msra.mxu0 %v721
      %907 = vmatprep.subr.bf16.mxu0 0
      %908 = vmatpush1.bf16.msra.mxu0 0
      %909 = vmatprep.subr.bf16.mxu0 0
      %910 = vmatpush1.bf16.msra.mxu0 0
      %911 = vmatprep.subr.bf16.mxu0 0
      %912 = vmatpush1.bf16.msra.mxu0 0
      %913 = vmatprep.subr.bf16.mxu0 0
      %914 = vmatpush1.bf16.msra.mxu0 0
      %915 = vmatprep.subr.bf16.mxu0 0
      %916 = vmatpush1.bf16.msra.mxu0 0
      %917 = vmatprep.subr.bf16.mxu0 0
      %918 = vmatpush1.bf16.msra.mxu0 0
      %919 = vmatprep.subr.bf16.mxu0 0
      %920 = vmatpush1.bf16.msra.mxu0 0
      %921 = vmatprep.subr.bf16.mxu0 0
      %922 = vmatpush1.bf16.msra.mxu0 0
      %923 = vmatprep.mubr.bf16.mxu0 0
      %924 = vmatmul.mubr.bf16.gmra.mrb[0].mxu0 %v849
      %v925 = vpop.f32.mrb[0].mxu0
      %v926 = vadd.f32 %v614, %v925
      %v927 = vpop.f32.mrb[0].mxu0
      %v928 = vpop.f32.mrb[0].mxu0
      %v929 = vpop.f32.mrb[0].mxu0
      %930 = vdwg.mxu0
      %v931 = vadd.f32 %v846, %v885
      %v932 = vmul.f32 %v931, 0.5
      %v933 = vtanh.pop %v932
      %v934 = vmul.f32 %v933, 0.5
      %v935 = vadd.f32 %v934, 0.5
      %v936 = vadd.f32 %v847, %v887
      %v937 = vmul.f32 %v936, 0.5
      %v938 = vtanh.pop %v937
      %v939 = vmul.f32 %v938, 0.5
      %v940 = vadd.f32 %v939, 0.5
      %v941 = vmul.f32 %v935, %v926
      %v942 = vadd.f32 %v848, %v941
      %v943 = vtanh.pop %v942
      %v944 = vsub.f32 1.0, %v940
      %v945 = vmul.f32 %v944, %v943
      %v946 = vmul.f32 %v940, %v843
      %v947 = vadd.f32 %v945, %v946
      %s948 = scalar_lea.vmem [#allocation4], 8
      %949 = vst [vmem:[%s948] sm:$0xff] %v947
      %s950 = scalar_lea.vmem [#allocation3], 48
      %v951 = vld [vmem:[%s950] sm:$0xff]
      %v952 = vld [vmem:[%s950 + $0x8] sm:$0xff]
      %v953 = vld [vmem:[%s950 + $0x10] sm:$0xff]
      %v954 = vpack.c.bf16 %v947, %v947
      %955 = vmatprep.subr.bf16.mxu0 %v699
      %956 = vmatpush1.bf16.msra.mxu0 %v698
      %957 = vmatprep.subr.bf16.mxu0 %v702
      %958 = vmatpush1.bf16.msra.mxu0 %v701
      %959 = vmatprep.subr.bf16.mxu0 %v705
      %960 = vmatpush1.bf16.msra.mxu0 %v704
      %961 = vmatprep.subr.bf16.mxu0 %v708
      %962 = vmatpush1.bf16.msra.mxu0 %v707
      %963 = vmatprep.subr.bf16.mxu0 %v711
      %964 = vmatpush1.bf16.msra.mxu0 %v710
      %965 = vmatprep.subr.bf16.mxu0 %v714
      %966 = vmatpush1.bf16.msra.mxu0 %v713
      %967 = vmatprep.subr.bf16.mxu0 %v717
      %968 = vmatpush1.bf16.msra.mxu0 %v716
      %969 = vmatprep.subr.bf16.mxu0 %v720
      %970 = vmatpush1.bf16.msra.mxu0 %v719
      %971 = vmatprep.subr.bf16.mxu0 0
      %972 = vmatpush1.bf16.msra.mxu0 0
      %973 = vmatprep.subr.bf16.mxu0 0
      %974 = vmatpush1.bf16.msra.mxu0 0
      %975 = vmatprep.subr.bf16.mxu0 0
      %976 = vmatpush1.bf16.msra.mxu0 0
      %977 = vmatprep.subr.bf16.mxu0 0
      %978 = vmatpush1.bf16.msra.mxu0 0
      %979 = vmatprep.subr.bf16.mxu0 0
      %980 = vmatpush1.bf16.msra.mxu0 0
      %981 = vmatprep.subr.bf16.mxu0 0
      %982 = vmatpush1.bf16.msra.mxu0 0
      %983 = vmatprep.subr.bf16.mxu0 0
      %984 = vmatpush1.bf16.msra.mxu0 0
      %985 = vmatprep.subr.bf16.mxu0 0
      %986 = vmatpush1.bf16.msra.mxu0 0
      %987 = vmatprep.mubr.bf16.mxu0 0
      %988 = vmatmul.mubr.bf16.gmra.mrb[0].mxu0 %v954
      %v989 = vpop.f32.mrb[0].mxu0
      %v990 = vadd.f32 %v606, %v989
      %v991 = vpop.f32.mrb[0].mxu0
      %v992 = vadd.f32 %v610, %v991
      %v993 = vpop.f32.mrb[0].mxu0
      %v994 = vpop.f32.mrb[0].mxu0
      %995 = vdwg.mxu0
      %996 = vmatprep.subr.bf16.mxu0 0
      %997 = vmatpush1.bf16.msra.mxu0 %v700
      %998 = vmatprep.subr.bf16.mxu0 0
      %999 = vmatpush1.bf16.msra.mxu0 %v703
      %1000 = vmatprep.subr.bf16.mxu0 0
      %1001 = vmatpush1.bf16.msra.mxu0 %v706
      %1002 = vmatprep.subr.bf16.mxu0 0
      %1003 = vmatpush1.bf16.msra.mxu0 %v709
      %1004 = vmatprep.subr.bf16.mxu0 0
      %1005 = vmatpush1.bf16.msra.mxu0 %v712
      %1006 = vmatprep.subr.bf16.mxu0 0
      %1007 = vmatpush1.bf16.msra.mxu0 %v715
      %1008 = vmatprep.subr.bf16.mxu0 0
      %1009 = vmatpush1.bf16.msra.mxu0 %v718
      %1010 = vmatprep.subr.bf16.mxu0 0
      %1011 = vmatpush1.bf16.msra.mxu0 %v721
      %1012 = vmatprep.subr.bf16.mxu0 0
      %1013 = vmatpush1.bf16.msra.mxu0 0
      %1014 = vmatprep.subr.bf16.mxu0 0
      %1015 = vmatpush1.bf16.msra.mxu0 0
      %1016 = vmatprep.subr.bf16.mxu0 0
      %1017 = vmatpush1.bf16.msra.mxu0 0
      %1018 = vmatprep.subr.bf16.mxu0 0
      %1019 = vmatpush1.bf16.msra.mxu0 0
      %1020 = vmatprep.subr.bf16.mxu0 0
      %1021 = vmatpush1.bf16.msra.mxu0 0
      %1022 = vmatprep.subr.bf16.mxu0 0
      %1023 = vmatpush1.bf16.msra.mxu0 0
      %1024 = vmatprep.subr.bf16.mxu0 0
      %1025 = vmatpush1.bf16.msra.mxu0 0
      %1026 = vmatprep.subr.bf16.mxu0 0
      %1027 = vmatpush1.bf16.msra.mxu0 0
      %1028 = vmatprep.mubr.bf16.mxu0 0
      %1029 = vmatmul.mubr.bf16.gmra.mrb[0].mxu0 %v954
      %v1030 = vpop.f32.mrb[0].mxu0
      %v1031 = vadd.f32 %v614, %v1030
      %v1032 = vpop.f32.mrb[0].mxu0
      %v1033 = vpop.f32.mrb[0].mxu0
      %v1034 = vpop.f32.mrb[0].mxu0
      %1035 = vdwg.mxu0
      %v1036 = vadd.f32 %v951, %v990
      %v1037 = vmul.f32 %v1036, 0.5
      %v1038 = vtanh.pop %v1037
      %v1039 = vmul.f32 %v1038, 0.5
      %v1040 = vadd.f32 %v1039, 0.5
      %v1041 = vadd.f32 %v952, %v992
      %v1042 = vmul.f32 %v1041, 0.5
      %v1043 = vtanh.pop %v1042
      %v1044 = vmul.f32 %v1043, 0.5
      %v1045 = vadd.f32 %v1044, 0.5
      %v1046 = vmul.f32 %v1040, %v1031
      %v1047 = vadd.f32 %v953, %v1046
      %v1048 = vtanh.pop %v1047
      %v1049 = vsub.f32 1.0, %v1045
      %v1050 = vmul.f32 %v1049, %v1048
      %v1051 = vmul.f32 %v1045, %v947
      %v1052 = vadd.f32 %v1050, %v1051
      %s1053 = scalar_lea.vmem [#allocation4], 16
      %1054 = vst [vmem:[%s1053] sm:$0xff] %v1052
      %s1055 = scalar_lea.vmem [#allocation3], 72
      %v1056 = vld [vmem:[%s1055] sm:$0xff]
      %v1057 = vld [vmem:[%s1055 + $0x8] sm:$0xff]
      %v1058 = vld [vmem:[%s1055 + $0x10] sm:$0xff]
      %v1059 = vpack.c.bf16 %v1052, %v1052
      %1060 = vmatprep.subr.bf16.mxu0 %v699
      %1061 = vmatpush1.bf16.msra.mxu0 %v698
      %1062 = vmatprep.subr.bf16.mxu0 %v702
      %1063 = vmatpush1.bf16.msra.mxu0 %v701
      %1064 = vmatprep.subr.bf16.mxu0 %v705
      %1065 = vmatpush1.bf16.msra.mxu0 %v704
      %1066 = vmatprep.subr.bf16.mxu0 %v708
      %1067 = vmatpush1.bf16.msra.mxu0 %v707
      %1068 = vmatprep.subr.bf16.mxu0 %v711
      %1069 = vmatpush1.bf16.msra.mxu0 %v710
      %1070 = vmatprep.subr.bf16.mxu0 %v714
      %1071 = vmatpush1.bf16.msra.mxu0 %v713
      %1072 = vmatprep.subr.bf16.mxu0 %v717
      %1073 = vmatpush1.bf16.msra.mxu0 %v716
      %1074 = vmatprep.subr.bf16.mxu0 %v720
      %1075 = vmatpush1.bf16.msra.mxu0 %v719
      %1076 = vmatprep.subr.bf16.mxu0 0
      %1077 = vmatpush1.bf16.msra.mxu0 0
      %1078 = vmatprep.subr.bf16.mxu0 0
      %1079 = vmatpush1.bf16.msra.mxu0 0
      %1080 = vmatprep.subr.bf16.mxu0 0
      %1081 = vmatpush1.bf16.msra.mxu0 0
      %1082 = vmatprep.subr.bf16.mxu0 0
      %1083 = vmatpush1.bf16.msra.mxu0 0
      %1084 = vmatprep.subr.bf16.mxu0 0
      %1085 = vmatpush1.bf16.msra.mxu0 0
      %1086 = vmatprep.subr.bf16.mxu0 0
      %1087 = vmatpush1.bf16.msra.mxu0 0
      %1088 = vmatprep.subr.bf16.mxu0 0
      %1089 = vmatpush1.bf16.msra.mxu0 0
      %1090 = vmatprep.subr.bf16.mxu0 0
      %1091 = vmatpush1.bf16.msra.mxu0 0
      %1092 = vmatprep.mubr.bf16.mxu0 0
      %1093 = vmatmul.mubr.bf16.gmra.mrb[0].mxu0 %v1059
      %v1094 = vpop.f32.mrb[0].mxu0
      %v1095 = vadd.f32 %v606, %v1094
      %v1096 = vpop.f32.mrb[0].mxu0
      %v1097 = vadd.f32 %v610, %v1096
      %v1098 = vpop.f32.mrb[0].mxu0
      %v1099 = vpop.f32.mrb[0].mxu0
      %1100 = vdwg.mxu0
      %1101 = vmatprep.subr.bf16.mxu0 0
      %1102 = vmatpush1.bf16.msra.mxu0 %v700
      %1103 = vmatprep.subr.bf16.mxu0 0
      %1104 = vmatpush1.bf16.msra.mxu0 %v703
      %1105 = vmatprep.subr.bf16.mxu0 0
      %1106 = vmatpush1.bf16.msra.mxu0 %v706
      %1107 = vmatprep.subr.bf16.mxu0 0
      %1108 = vmatpush1.bf16.msra.mxu0 %v709
      %1109 = vmatprep.subr.bf16.mxu0 0
      %1110 = vmatpush1.bf16.msra.mxu0 %v712
      %1111 = vmatprep.subr.bf16.mxu0 0
      %1112 = vmatpush1.bf16.msra.mxu0 %v715
      %1113 = vmatprep.subr.bf16.mxu0 0
      %1114 = vmatpush1.bf16.msra.mxu0 %v718
      %1115 = vmatprep.subr.bf16.mxu0 0
      %1116 = vmatpush1.bf16.msra.mxu0 %v721
      %1117 = vmatprep.subr.bf16.mxu0 0
      %1118 = vmatpush1.bf16.msra.mxu0 0
      %1119 = vmatprep.subr.bf16.mxu0 0
      %1120 = vmatpush1.bf16.msra.mxu0 0
      %1121 = vmatprep.subr.bf16.mxu0 0
      %1122 = vmatpush1.bf16.msra.mxu0 0
      %1123 = vmatprep.subr.bf16.mxu0 0
      %1124 = vmatpush1.bf16.msra.mxu0 0
      %1125 = vmatprep.subr.bf16.mxu0 0
      %1126 = vmatpush1.bf16.msra.mxu0 0
      %1127 = vmatprep.subr.bf16.mxu0 0
      %1128 = vmatpush1.bf16.msra.mxu0 0
      %1129 = vmatprep.subr.bf16.mxu0 0
      %1130 = vmatpush1.bf16.msra.mxu0 0
      %1131 = vmatprep.subr.bf16.mxu0 0
      %1132 = vmatpush1.bf16.msra.mxu0 0
      %1133 = vmatprep.mubr.bf16.mxu0 0
      %1134 = vmatmul.mubr.bf16.gmra.mrb[0].mxu0 %v1059
      %v1135 = vpop.f32.mrb[0].mxu0
      %v1136 = vadd.f32 %v614, %v1135
      %v1137 = vpop.f32.mrb[0].mxu0
      %v1138 = vpop.f32.mrb[0].mxu0
      %v1139 = vpop.f32.mrb[0].mxu0
      %1140 = vdwg.mxu0
      %v1141 = vadd.f32 %v1056, %v1095
      %v1142 = vmul.f32 %v1141, 0.5
      %v1143 = vtanh.pop %v1142
      %v1144 = vmul.f32 %v1143, 0.5
      %v1145 = vadd.f32 %v1144, 0.5
      %v1146 = vadd.f32 %v1057, %v1097
      %v1147 = vmul.f32 %v1146, 0.5
      %v1148 = vtanh.pop %v1147
      %v1149 = vmul.f32 %v1148, 0.5
      %v1150 = vadd.f32 %v1149, 0.5
      %v1151 = vmul.f32 %v1145, %v1136
      %v1152 = vadd.f32 %v1058, %v1151
      %v1153 = vtanh.pop %v1152
      %v1154 = vsub.f32 1.0, %v1150
      %v1155 = vmul.f32 %v1154, %v1153
      %v1156 = vmul.f32 %v1150, %v1052
      %v1157 = vadd.f32 %v1155, %v1156
      %s1158 = scalar_lea.vmem [#allocation4], 24
      %1159 = vst [vmem:[%s1158] sm:$0xff] %v1157
      %1160 = vst [vmem:[#allocation2] sm:$0xff] %v1157
      %v1161 = vld [vmem:[#allocation4] sm:$0xff]
      %v1162 = vld [vmem:[#allocation4 + $0x8] sm:$0xff]
      %v1163 = vld [vmem:[#allocation4 + $0x10] sm:$0xff]
      %v1164 = vld [vmem:[#allocation4 + $0x18] sm:$0xff]
      %1165 = vst [vmem:[%s257] sm:$0xff] %v1161
      %1166 = vst [vmem:[%s257 + $0x8] sm:$0xff] %v1162
      %1167 = vst [vmem:[%s257 + $0x10] sm:$0xff] %v1163
      %1168 = vst [vmem:[%s257 + $0x18] sm:$0xff] %v1164
      %v1169 = vld [vmem:[#allocation4] sm:$0xff]
      %v1170 = vld [vmem:[#allocation4 + $0x8] sm:$0xff]
      %v1171 = vld [vmem:[#allocation4 + $0x10] sm:$0xff]
      %v1172 = vld [vmem:[#allocation4 + $0x18] sm:$0xff]
      %v1173 = vpack.c.bf16 %v1170, %v1169
      %v1174 = vpack.c.bf16 %v1172, %v1171
      %s1175 = scalar_lea.vmem %s1, 192
      %v1176 = vld [vmem:[%s1175] sm:$0xff]
      %v1177 = vld [vmem:[%s1175 + $0x8] sm:$0xf]
      %v1178 = vld [vmem:[%s1175 + $0xc] sm:$0xff]
      %v1179 = vld [vmem:[%s1175 + $0x14] sm:$0xf]
      %v1180 = vld [vmem:[%s1175 + $0x18] sm:$0xff]
      %v1181 = vld [vmem:[%s1175 + $0x20] sm:$0xf]
      %v1182 = vld [vmem:[%s1175 + $0x24] sm:$0xff]
      %v1183 = vld [vmem:[%s1175 + $0x2c] sm:$0xf]
      %v1184 = vld [vmem:[%s1175 + $0x30] sm:$0xff]
      %v1185 = vld [vmem:[%s1175 + $0x38] sm:$0xf]
      %v1186 = vld [vmem:[%s1175 + $0x3c] sm:$0xff]
      %v1187 = vld [vmem:[%s1175 + $0x44] sm:$0xf]
      %v1188 = vld [vmem:[%s1175 + $0x48] sm:$0xff]
      %v1189 = vld [vmem:[%s1175 + $0x50] sm:$0xf]
      %v1190 = vld [vmem:[%s1175 + $0x54] sm:$0xff]
      %v1191 = vld [vmem:[%s1175 + $0x5c] sm:$0xf]
      %v1192 = vld [vmem:[%s1175 + $0x60] sm:$0xff]
      %v1193 = vld [vmem:[%s1175 + $0x68] sm:$0xf]
      %v1194 = vld [vmem:[%s1175 + $0x6c] sm:$0xff]
      %v1195 = vld [vmem:[%s1175 + $0x74] sm:$0xf]
      %v1196 = vld [vmem:[%s1175 + $0x78] sm:$0xff]
      %v1197 = vld [vmem:[%s1175 + $0x80] sm:$0xf]
      %v1198 = vld [vmem:[%s1175 + $0x84] sm:$0xff]
      %v1199 = vld [vmem:[%s1175 + $0x8c] sm:$0xf]
      %v1200 = vld [vmem:[%s1175 + $0x90] sm:$0xff]
      %v1201 = vld [vmem:[%s1175 + $0x98] sm:$0xf]
      %v1202 = vld [vmem:[%s1175 + $0x9c] sm:$0xff]
      %v1203 = vld [vmem:[%s1175 + $0xa4] sm:$0xf]
      %v1204 = vld [vmem:[%s1175 + $0xa8] sm:$0xff]
      %v1205 = vld [vmem:[%s1175 + $0xb0] sm:$0xf]
      %v1206 = vld [vmem:[%s1175 + $0xb4] sm:$0xff]
      %v1207 = vld [vmem:[%s1175 + $0xbc] sm:$0xf]
      %s1208 = scalar_lea.vmem %s2, 3
      %v1209 = vld [vmem:[%s1208] sm:$0x7]
      %v1211 = vlaneseq
      %v1212 = vshrl.u32 %v1211, 7
      %v1213 = vsub.s32 0, %v1212
      %v1214 = vrot.slane %v1209, %v1213
      %v1215 = vlaneseq
      %v1216 = vshrl.u32 %v1215, 7
      %v1217 = vsub.s32 1, %v1216
      %v1218 = vrot.slane %v1209, %v1217
      %v1219 = vlaneseq
      %v1220 = vshrl.u32 %v1219, 7
      %v1221 = vsub.s32 2, %v1220
      %v1222 = vrot.slane %v1209, %v1221
      %v1258 = vunpack.c.l.b16 %v1176
      %v1259 = vunpack.c.h.b16 %v1176
      %v1260 = vunpack.c.l.b16 %v1177
      %v1261 = vunpack.c.l.b16 %v1178
      %v1262 = vunpack.c.h.b16 %v1178
      %v1263 = vunpack.c.l.b16 %v1179
      %v1264 = vunpack.c.l.b16 %v1180
      %v1265 = vunpack.c.h.b16 %v1180
      %v1266 = vunpack.c.l.b16 %v1181
      %v1267 = vunpack.c.l.b16 %v1182
      %v1268 = vunpack.c.h.b16 %v1182
      %v1269 = vunpack.c.l.b16 %v1183
      %v1270 = vunpack.c.l.b16 %v1184
      %v1271 = vunpack.c.h.b16 %v1184
      %v1272 = vunpack.c.l.b16 %v1185
      %v1273 = vunpack.c.l.b16 %v1186
      %v1274 = vunpack.c.h.b16 %v1186
      %v1275 = vunpack.c.l.b16 %v1187
      %v1276 = vunpack.c.l.b16 %v1188
      %v1277 = vunpack.c.h.b16 %v1188
      %v1278 = vunpack.c.l.b16 %v1189
      %v1279 = vunpack.c.l.b16 %v1190
      %v1280 = vunpack.c.h.b16 %v1190
      %v1281 = vunpack.c.l.b16 %v1191
      %v1282 = vunpack.c.l.b16 %v1192
      %v1283 = vunpack.c.h.b16 %v1192
      %v1284 = vunpack.c.l.b16 %v1193
      %v1285 = vunpack.c.l.b16 %v1194
      %v1286 = vunpack.c.h.b16 %v1194
      %v1287 = vunpack.c.l.b16 %v1195
      %v1288 = vunpack.c.l.b16 %v1196
      %v1289 = vunpack.c.h.b16 %v1196
      %v1290 = vunpack.c.l.b16 %v1197
      %v1291 = vunpack.c.l.b16 %v1198
      %v1292 = vunpack.c.h.b16 %v1198
      %v1293 = vunpack.c.l.b16 %v1199
      %v1294 = vunpack.c.l.b16 %v1200
      %v1295 = vunpack.c.h.b16 %v1200
      %v1296 = vunpack.c.l.b16 %v1201
      %v1297 = vunpack.c.l.b16 %v1202
      %v1298 = vunpack.c.h.b16 %v1202
      %v1299 = vunpack.c.l.b16 %v1203
      %v1300 = vunpack.c.l.b16 %v1204
      %v1301 = vunpack.c.h.b16 %v1204
      %v1302 = vunpack.c.l.b16 %v1205
      %v1303 = vunpack.c.l.b16 %v1206
      %v1304 = vunpack.c.h.b16 %v1206
      %v1305 = vunpack.c.l.b16 %v1207
      %v1306 = vpack.c.b16 %v1261, %v1258
      %v1307 = vpack.c.b16 %v1262, %v1259
      %v1308 = vpack.c.b16 %v1263, %v1260
      %v1309 = vpack.c.b16 %v1267, %v1264
      %v1310 = vpack.c.b16 %v1268, %v1265
      %v1311 = vpack.c.b16 %v1269, %v1266
      %v1312 = vpack.c.b16 %v1273, %v1270
      %v1313 = vpack.c.b16 %v1274, %v1271
      %v1314 = vpack.c.b16 %v1275, %v1272
      %v1315 = vpack.c.b16 %v1279, %v1276
      %v1316 = vpack.c.b16 %v1280, %v1277
      %v1317 = vpack.c.b16 %v1281, %v1278
      %v1318 = vpack.c.b16 %v1285, %v1282
      %v1319 = vpack.c.b16 %v1286, %v1283
      %v1320 = vpack.c.b16 %v1287, %v1284
      %v1321 = vpack.c.b16 %v1291, %v1288
      %v1322 = vpack.c.b16 %v1292, %v1289
      %v1323 = vpack.c.b16 %v1293, %v1290
      %v1324 = vpack.c.b16 %v1297, %v1294
      %v1325 = vpack.c.b16 %v1298, %v1295
      %v1326 = vpack.c.b16 %v1299, %v1296
      %v1327 = vpack.c.b16 %v1303, %v1300
      %v1328 = vpack.c.b16 %v1304, %v1301
      %v1329 = vpack.c.b16 %v1305, %v1302
      %1354 = vmatprep.subr.bf16.mxu0 %v1307
      %1355 = vmatpush1.bf16.msra.mxu0 %v1306
      %1356 = vmatprep.subr.bf16.mxu0 %v1310
      %1357 = vmatpush1.bf16.msra.mxu0 %v1309
      %1358 = vmatprep.subr.bf16.mxu0 %v1313
      %1359 = vmatpush1.bf16.msra.mxu0 %v1312
      %1360 = vmatprep.subr.bf16.mxu0 %v1316
      %1361 = vmatpush1.bf16.msra.mxu0 %v1315
      %1362 = vmatprep.subr.bf16.mxu0 %v1319
      %1363 = vmatpush1.bf16.msra.mxu0 %v1318
      %1364 = vmatprep.subr.bf16.mxu0 %v1322
      %1365 = vmatpush1.bf16.msra.mxu0 %v1321
      %1366 = vmatprep.subr.bf16.mxu0 %v1325
      %1367 = vmatpush1.bf16.msra.mxu0 %v1324
      %1368 = vmatprep.subr.bf16.mxu0 %v1328
      %1369 = vmatpush1.bf16.msra.mxu0 %v1327
      %1370 = vmatprep.subr.bf16.mxu0 0
      %1371 = vmatpush1.bf16.msra.mxu0 0
      %1372 = vmatprep.subr.bf16.mxu0 0
      %1373 = vmatpush1.bf16.msra.mxu0 0
      %1374 = vmatprep.subr.bf16.mxu0 0
      %1375 = vmatpush1.bf16.msra.mxu0 0
      %1376 = vmatprep.subr.bf16.mxu0 0
      %1377 = vmatpush1.bf16.msra.mxu0 0
      %1378 = vmatprep.subr.bf16.mxu0 0
      %1379 = vmatpush1.bf16.msra.mxu0 0
      %1380 = vmatprep.subr.bf16.mxu0 0
      %1381 = vmatpush1.bf16.msra.mxu0 0
      %1382 = vmatprep.subr.bf16.mxu0 0
      %1383 = vmatpush1.bf16.msra.mxu0 0
      %1384 = vmatprep.subr.bf16.mxu0 0
      %1385 = vmatpush1.bf16.msra.mxu0 0
      %1386 = vmatprep.mubr.bf16.mxu0 0
      %1387 = vmatmul.mubr.bf16.gmra.mrb[0].mxu0 %v1173
      %v1388 = vpop.f32.mrb[0].mxu0
      %v1389 = vadd.f32 %v1214, %v1388
      %v1390 = vpop.f32.mrb[0].mxu0
      %v1391 = vadd.f32 %v1218, %v1390
      %v1392 = vpop.f32.mrb[0].mxu0
      %v1393 = vadd.f32 %v1214, %v1392
      %v1394 = vpop.f32.mrb[0].mxu0
      %v1395 = vadd.f32 %v1218, %v1394
      %1396 = vmatprep.mubr.bf16.mxu0 0
      %1397 = vmatmul.mubr.bf16.gmra.mrb[0].mxu0 %v1174
      %v1398 = vpop.f32.mrb[0].mxu0
      %v1399 = vadd.f32 %v1214, %v1398
      %v1400 = vpop.f32.mrb[0].mxu0
      %v1401 = vadd.f32 %v1218, %v1400
      %v1402 = vpop.f32.mrb[0].mxu0
      %v1403 = vadd.f32 %v1214, %v1402
      %v1404 = vpop.f32.mrb[0].mxu0
      %v1405 = vadd.f32 %v1218, %v1404
      %1406 = vdwg.mxu0
      %1407 = vmatprep.subr.bf16.mxu0 0
      %1408 = vmatpush1.bf16.msra.mxu0 %v1308
      %1409 = vmatprep.subr.bf16.mxu0 0
      %1410 = vmatpush1.bf16.msra.mxu0 %v1311
      %1411 = vmatprep.subr.bf16.mxu0 0
      %1412 = vmatpush1.bf16.msra.mxu0 %v1314
      %1413 = vmatprep.subr.bf16.mxu0 0
      %1414 = vmatpush1.bf16.msra.mxu0 %v1317
      %1415 = vmatprep.subr.bf16.mxu0 0
      %1416 = vmatpush1.bf16.msra.mxu0 %v1320
      %1417 = vmatprep.subr.bf16.mxu0 0
      %1418 = vmatpush1.bf16.msra.mxu0 %v1323
      %1419 = vmatprep.subr.bf16.mxu0 0
      %1420 = vmatpush1.bf16.msra.mxu0 %v1326
      %1421 = vmatprep.subr.bf16.mxu0 0
      %1422 = vmatpush1.bf16.msra.mxu0 %v1329
      %1423 = vmatprep.subr.bf16.mxu0 0
      %1424 = vmatpush1.bf16.msra.mxu0 0
      %1425 = vmatprep.subr.bf16.mxu0 0
      %1426 = vmatpush1.bf16.msra.mxu0 0
      %1427 = vmatprep.subr.bf16.mxu0 0
      %1428 = vmatpush1.bf16.msra.mxu0 0
      %1429 = vmatprep.subr.bf16.mxu0 0
      %1430 = vmatpush1.bf16.msra.mxu0 0
      %1431 = vmatprep.subr.bf16.mxu0 0
      %1432 = vmatpush1.bf16.msra.mxu0 0
      %1433 = vmatprep.subr.bf16.mxu0 0
      %1434 = vmatpush1.bf16.msra.mxu0 0
      %1435 = vmatprep.subr.bf16.mxu0 0
      %1436 = vmatpush1.bf16.msra.mxu0 0
      %1437 = vmatprep.subr.bf16.mxu0 0
      %1438 = vmatpush1.bf16.msra.mxu0 0
      %1439 = vmatprep.mubr.bf16.mxu0 0
      %1440 = vmatmul.mubr.bf16.gmra.mrb[0].mxu0 %v1173
      %v1441 = vpop.f32.mrb[0].mxu0
      %v1442 = vadd.f32 %v1222, %v1441
      %v1443 = vpop.f32.mrb[0].mxu0
      %v1444 = vpop.f32.mrb[0].mxu0
      %v1445 = vadd.f32 %v1222, %v1444
      %v1446 = vpop.f32.mrb[0].mxu0
      %1447 = vmatprep.mubr.bf16.mxu0 0
      %1448 = vmatmul.mubr.bf16.gmra.mrb[0].mxu0 %v1174
      %v1449 = vpop.f32.mrb[0].mxu0
      %v1450 = vadd.f32 %v1222, %v1449
      %v1451 = vpop.f32.mrb[0].mxu0
      %v1452 = vpop.f32.mrb[0].mxu0
      %v1453 = vadd.f32 %v1222, %v1452
      %v1454 = vpop.f32.mrb[0].mxu0
      %1455 = vdwg.mxu0
      %1456 = vst [vmem:[#allocation3] sm:$0xff] %v1389
      %1457 = vst [vmem:[#allocation3 + $0x8] sm:$0xff] %v1391
      %1458 = vst [vmem:[#allocation3 + $0x10] sm:$0xff] %v1442
      %1459 = vst [vmem:[#allocation3 + $0x18] sm:$0xff] %v1393
      %1460 = vst [vmem:[#allocation3 + $0x20] sm:$0xff] %v1395
      %1461 = vst [vmem:[#allocation3 + $0x28] sm:$0xff] %v1445
      %1462 = vst [vmem:[#allocation3 + $0x30] sm:$0xff] %v1399
      %1463 = vst [vmem:[#allocation3 + $0x38] sm:$0xff] %v1401
      %1464 = vst [vmem:[#allocation3 + $0x40] sm:$0xff] %v1450
      %1465 = vst [vmem:[#allocation3 + $0x48] sm:$0xff] %v1403
      %1466 = vst [vmem:[#allocation3 + $0x50] sm:$0xff] %v1405
      %1467 = vst [vmem:[#allocation3 + $0x58] sm:$0xff] %v1453
      %s1468 = scalar_lea.vmem %s3, 192
      %v1469 = vld [vmem:[%s1468] sm:$0xff]
      %v1470 = vld [vmem:[%s1468 + $0x8] sm:$0xf]
      %v1471 = vld [vmem:[%s1468 + $0xc] sm:$0xff]
      %v1472 = vld [vmem:[%s1468 + $0x14] sm:$0xf]
      %v1473 = vld [vmem:[%s1468 + $0x18] sm:$0xff]
      %v1474 = vld [vmem:[%s1468 + $0x20] sm:$0xf]
      %v1475 = vld [vmem:[%s1468 + $0x24] sm:$0xff]
      %v1476 = vld [vmem:[%s1468 + $0x2c] sm:$0xf]
      %v1477 = vld [vmem:[%s1468 + $0x30] sm:$0xff]
      %v1478 = vld [vmem:[%s1468 + $0x38] sm:$0xf]
      %v1479 = vld [vmem:[%s1468 + $0x3c] sm:$0xff]
      %v1480 = vld [vmem:[%s1468 + $0x44] sm:$0xf]
      %v1481 = vld [vmem:[%s1468 + $0x48] sm:$0xff]
      %v1482 = vld [vmem:[%s1468 + $0x50] sm:$0xf]
      %v1483 = vld [vmem:[%s1468 + $0x54] sm:$0xff]
      %v1484 = vld [vmem:[%s1468 + $0x5c] sm:$0xf]
      %v1485 = vld [vmem:[%s1468 + $0x60] sm:$0xff]
      %v1486 = vld [vmem:[%s1468 + $0x68] sm:$0xf]
      %v1487 = vld [vmem:[%s1468 + $0x6c] sm:$0xff]
      %v1488 = vld [vmem:[%s1468 + $0x74] sm:$0xf]
      %v1489 = vld [vmem:[%s1468 + $0x78] sm:$0xff]
      %v1490 = vld [vmem:[%s1468 + $0x80] sm:$0xf]
      %v1491 = vld [vmem:[%s1468 + $0x84] sm:$0xff]
      %v1492 = vld [vmem:[%s1468 + $0x8c] sm:$0xf]
      %v1493 = vld [vmem:[%s1468 + $0x90] sm:$0xff]
      %v1494 = vld [vmem:[%s1468 + $0x98] sm:$0xf]
      %v1495 = vld [vmem:[%s1468 + $0x9c] sm:$0xff]
      %v1496 = vld [vmem:[%s1468 + $0xa4] sm:$0xf]
      %v1497 = vld [vmem:[%s1468 + $0xa8] sm:$0xff]
      %v1498 = vld [vmem:[%s1468 + $0xb0] sm:$0xf]
      %v1499 = vld [vmem:[%s1468 + $0xb4] sm:$0xff]
      %v1500 = vld [vmem:[%s1468 + $0xbc] sm:$0xf]
      %s1501 = scalar_lea.vmem %s4, 3
      %v1502 = vld [vmem:[%s1501] sm:$0x7]
      %s1503 = scalar_lea.vmem [#allocation2], 8
      %v1504 = vld [vmem:[%s1503] sm:$0xff]
      %v1505 = vld [vmem:[#allocation3] sm:$0xff]
      %v1506 = vld [vmem:[#allocation3 + $0x8] sm:$0xff]
      %v1507 = vld [vmem:[#allocation3 + $0x10] sm:$0xff]
      %v1508 = vpack.c.bf16 %v1504, %v1504
      %v1510 = vlaneseq
      %v1511 = vshrl.u32 %v1510, 7
      %v1512 = vsub.s32 0, %v1511
      %v1513 = vrot.slane %v1502, %v1512
      %v1514 = vlaneseq
      %v1515 = vshrl.u32 %v1514, 7
      %v1516 = vsub.s32 1, %v1515
      %v1517 = vrot.slane %v1502, %v1516
      %v1518 = vlaneseq
      %v1519 = vshrl.u32 %v1518, 7
      %v1520 = vsub.s32 2, %v1519
      %v1521 = vrot.slane %v1502, %v1520
      %v1557 = vunpack.c.l.b16 %v1469
      %v1558 = vunpack.c.h.b16 %v1469
      %v1559 = vunpack.c.l.b16 %v1470
      %v1560 = vunpack.c.l.b16 %v1471
      %v1561 = vunpack.c.h.b16 %v1471
      %v1562 = vunpack.c.l.b16 %v1472
      %v1563 = vunpack.c.l.b16 %v1473
      %v1564 = vunpack.c.h.b16 %v1473
      %v1565 = vunpack.c.l.b16 %v1474
      %v1566 = vunpack.c.l.b16 %v1475
      %v1567 = vunpack.c.h.b16 %v1475
      %v1568 = vunpack.c.l.b16 %v1476
      %v1569 = vunpack.c.l.b16 %v1477
      %v1570 = vunpack.c.h.b16 %v1477
      %v1571 = vunpack.c.l.b16 %v1478
      %v1572 = vunpack.c.l.b16 %v1479
      %v1573 = vunpack.c.h.b16 %v1479
      %v1574 = vunpack.c.l.b16 %v1480
      %v1575 = vunpack.c.l.b16 %v1481
      %v1576 = vunpack.c.h.b16 %v1481
      %v1577 = vunpack.c.l.b16 %v1482
      %v1578 = vunpack.c.l.b16 %v1483
      %v1579 = vunpack.c.h.b16 %v1483
      %v1580 = vunpack.c.l.b16 %v1484
      %v1581 = vunpack.c.l.b16 %v1485
      %v1582 = vunpack.c.h.b16 %v1485
      %v1583 = vunpack.c.l.b16 %v1486
      %v1584 = vunpack.c.l.b16 %v1487
      %v1585 = vunpack.c.h.b16 %v1487
      %v1586 = vunpack.c.l.b16 %v1488
      %v1587 = vunpack.c.l.b16 %v1489
      %v1588 = vunpack.c.h.b16 %v1489
      %v1589 = vunpack.c.l.b16 %v1490
      %v1590 = vunpack.c.l.b16 %v1491
      %v1591 = vunpack.c.h.b16 %v1491
      %v1592 = vunpack.c.l.b16 %v1492
      %v1593 = vunpack.c.l.b16 %v1493
      %v1594 = vunpack.c.h.b16 %v1493
      %v1595 = vunpack.c.l.b16 %v1494
      %v1596 = vunpack.c.l.b16 %v1495
      %v1597 = vunpack.c.h.b16 %v1495
      %v1598 = vunpack.c.l.b16 %v1496
      %v1599 = vunpack.c.l.b16 %v1497
      %v1600 = vunpack.c.h.b16 %v1497
      %v1601 = vunpack.c.l.b16 %v1498
      %v1602 = vunpack.c.l.b16 %v1499
      %v1603 = vunpack.c.h.b16 %v1499
      %v1604 = vunpack.c.l.b16 %v1500
      %v1605 = vpack.c.b16 %v1560, %v1557
      %v1606 = vpack.c.b16 %v1561, %v1558
      %v1607 = vpack.c.b16 %v1562, %v1559
      %v1608 = vpack.c.b16 %v1566, %v1563
      %v1609 = vpack.c.b16 %v1567, %v1564
      %v1610 = vpack.c.b16 %v1568, %v1565
      %v1611 = vpack.c.b16 %v1572, %v1569
      %v1612 = vpack.c.b16 %v1573, %v1570
      %v1613 = vpack.c.b16 %v1574, %v1571
      %v1614 = vpack.c.b16 %v1578, %v1575
      %v1615 = vpack.c.b16 %v1579, %v1576
      %v1616 = vpack.c.b16 %v1580, %v1577
      %v1617 = vpack.c.b16 %v1584, %v1581
      %v1618 = vpack.c.b16 %v1585, %v1582
      %v1619 = vpack.c.b16 %v1586, %v1583
      %v1620 = vpack.c.b16 %v1590, %v1587
      %v1621 = vpack.c.b16 %v1591, %v1588
      %v1622 = vpack.c.b16 %v1592, %v1589
      %v1623 = vpack.c.b16 %v1596, %v1593
      %v1624 = vpack.c.b16 %v1597, %v1594
      %v1625 = vpack.c.b16 %v1598, %v1595
      %v1626 = vpack.c.b16 %v1602, %v1599
      %v1627 = vpack.c.b16 %v1603, %v1600
      %v1628 = vpack.c.b16 %v1604, %v1601
      %1653 = vmatprep.subr.bf16.mxu0 %v1606
      %1654 = vmatpush1.bf16.msra.mxu0 %v1605
      %1655 = vmatprep.subr.bf16.mxu0 %v1609
      %1656 = vmatpush1.bf16.msra.mxu0 %v1608
      %1657 = vmatprep.subr.bf16.mxu0 %v1612
      %1658 = vmatpush1.bf16.msra.mxu0 %v1611
      %1659 = vmatprep.subr.bf16.mxu0 %v1615
      %1660 = vmatpush1.bf16.msra.mxu0 %v1614
      %1661 = vmatprep.subr.bf16.mxu0 %v1618
      %1662 = vmatpush1.bf16.msra.mxu0 %v1617
      %1663 = vmatprep.subr.bf16.mxu0 %v1621
      %1664 = vmatpush1.bf16.msra.mxu0 %v1620
      %1665 = vmatprep.subr.bf16.mxu0 %v1624
      %1666 = vmatpush1.bf16.msra.mxu0 %v1623
      %1667 = vmatprep.subr.bf16.mxu0 %v1627
      %1668 = vmatpush1.bf16.msra.mxu0 %v1626
      %1669 = vmatprep.subr.bf16.mxu0 0
      %1670 = vmatpush1.bf16.msra.mxu0 0
      %1671 = vmatprep.subr.bf16.mxu0 0
      %1672 = vmatpush1.bf16.msra.mxu0 0
      %1673 = vmatprep.subr.bf16.mxu0 0
      %1674 = vmatpush1.bf16.msra.mxu0 0
      %1675 = vmatprep.subr.bf16.mxu0 0
      %1676 = vmatpush1.bf16.msra.mxu0 0
      %1677 = vmatprep.subr.bf16.mxu0 0
      %1678 = vmatpush1.bf16.msra.mxu0 0
      %1679 = vmatprep.subr.bf16.mxu0 0
      %1680 = vmatpush1.bf16.msra.mxu0 0
      %1681 = vmatprep.subr.bf16.mxu0 0
      %1682 = vmatpush1.bf16.msra.mxu0 0
      %1683 = vmatprep.subr.bf16.mxu0 0
      %1684 = vmatpush1.bf16.msra.mxu0 0
      %1685 = vmatprep.mubr.bf16.mxu0 0
      %1686 = vmatmul.mubr.bf16.gmra.mrb[0].mxu0 %v1508
      %v1687 = vpop.f32.mrb[0].mxu0
      %v1688 = vadd.f32 %v1513, %v1687
      %v1689 = vpop.f32.mrb[0].mxu0
      %v1690 = vadd.f32 %v1517, %v1689
      %v1691 = vpop.f32.mrb[0].mxu0
      %v1692 = vpop.f32.mrb[0].mxu0
      %1693 = vdwg.mxu0
      %1694 = vmatprep.subr.bf16.mxu0 0
      %1695 = vmatpush1.bf16.msra.mxu0 %v1607
      %1696 = vmatprep.subr.bf16.mxu0 0
      %1697 = vmatpush1.bf16.msra.mxu0 %v1610
      %1698 = vmatprep.subr.bf16.mxu0 0
      %1699 = vmatpush1.bf16.msra.mxu0 %v1613
      %1700 = vmatprep.subr.bf16.mxu0 0
      %1701 = vmatpush1.bf16.msra.mxu0 %v1616
      %1702 = vmatprep.subr.bf16.mxu0 0
      %1703 = vmatpush1.bf16.msra.mxu0 %v1619
      %1704 = vmatprep.subr.bf16.mxu0 0
      %1705 = vmatpush1.bf16.msra.mxu0 %v1622
      %1706 = vmatprep.subr.bf16.mxu0 0
      %1707 = vmatpush1.bf16.msra.mxu0 %v1625
      %1708 = vmatprep.subr.bf16.mxu0 0
      %1709 = vmatpush1.bf16.msra.mxu0 %v1628
      %1710 = vmatprep.subr.bf16.mxu0 0
      %1711 = vmatpush1.bf16.msra.mxu0 0
      %1712 = vmatprep.subr.bf16.mxu0 0
      %1713 = vmatpush1.bf16.msra.mxu0 0
      %1714 = vmatprep.subr.bf16.mxu0 0
      %1715 = vmatpush1.bf16.msra.mxu0 0
      %1716 = vmatprep.subr.bf16.mxu0 0
      %1717 = vmatpush1.bf16.msra.mxu0 0
      %1718 = vmatprep.subr.bf16.mxu0 0
      %1719 = vmatpush1.bf16.msra.mxu0 0
      %1720 = vmatprep.subr.bf16.mxu0 0
      %1721 = vmatpush1.bf16.msra.mxu0 0
      %1722 = vmatprep.subr.bf16.mxu0 0
      %1723 = vmatpush1.bf16.msra.mxu0 0
      %1724 = vmatprep.subr.bf16.mxu0 0
      %1725 = vmatpush1.bf16.msra.mxu0 0
      %1726 = vmatprep.mubr.bf16.mxu0 0
      %1727 = vmatmul.mubr.bf16.gmra.mrb[0].mxu0 %v1508
      %v1728 = vpop.f32.mrb[0].mxu0
      %v1729 = vadd.f32 %v1521, %v1728
      %v1730 = vpop.f32.mrb[0].mxu0
      %v1731 = vpop.f32.mrb[0].mxu0
      %v1732 = vpop.f32.mrb[0].mxu0
      %1733 = vdwg.mxu0
      %v1734 = vadd.f32 %v1505, %v1688
      %v1735 = vmul.f32 %v1734, 0.5
      %v1736 = vtanh.pop %v1735
      %v1737 = vmul.f32 %v1736, 0.5
      %v1738 = vadd.f32 %v1737, 0.5
      %v1739 = vadd.f32 %v1506, %v1690
      %v1740 = vmul.f32 %v1739, 0.5
      %v1741 = vtanh.pop %v1740
      %v1742 = vmul.f32 %v1741, 0.5
      %v1743 = vadd.f32 %v1742, 0.5
      %v1744 = vmul.f32 %v1738, %v1729
      %v1745 = vadd.f32 %v1507, %v1744
      %v1746 = vtanh.pop %v1745
      %v1747 = vsub.f32 1.0, %v1743
      %v1748 = vmul.f32 %v1747, %v1746
      %v1749 = vmul.f32 %v1743, %v1504
      %v1750 = vadd.f32 %v1748, %v1749
      %1751 = vst [vmem:[#allocation4] sm:$0xff] %v1750
      %v1752 = vld [vmem:[%s845] sm:$0xff]
      %v1753 = vld [vmem:[%s845 + $0x8] sm:$0xff]
      %v1754 = vld [vmem:[%s845 + $0x10] sm:$0xff]
      %v1755 = vpack.c.bf16 %v1750, %v1750
      %1756 = vmatprep.subr.bf16.mxu0 %v1606
      %1757 = vmatpush1.bf16.msra.mxu0 %v1605
      %1758 = vmatprep.subr.bf16.mxu0 %v1609
      %1759 = vmatpush1.bf16.msra.mxu0 %v1608
      %1760 = vmatprep.subr.bf16.mxu0 %v1612
      %1761 = vmatpush1.bf16.msra.mxu0 %v1611
      %1762 = vmatprep.subr.bf16.mxu0 %v1615
      %1763 = vmatpush1.bf16.msra.mxu0 %v1614
      %1764 = vmatprep.subr.bf16.mxu0 %v1618
      %1765 = vmatpush1.bf16.msra.mxu0 %v1617
      %1766 = vmatprep.subr.bf16.mxu0 %v1621
      %1767 = vmatpush1.bf16.msra.mxu0 %v1620
      %1768 = vmatprep.subr.bf16.mxu0 %v1624
      %1769 = vmatpush1.bf16.msra.mxu0 %v1623
      %1770 = vmatprep.subr.bf16.mxu0 %v1627
      %1771 = vmatpush1.bf16.msra.mxu0 %v1626
      %1772 = vmatprep.subr.bf16.mxu0 0
      %1773 = vmatpush1.bf16.msra.mxu0 0
      %1774 = vmatprep.subr.bf16.mxu0 0
      %1775 = vmatpush1.bf16.msra.mxu0 0
      %1776 = vmatprep.subr.bf16.mxu0 0
      %1777 = vmatpush1.bf16.msra.mxu0 0
      %1778 = vmatprep.subr.bf16.mxu0 0
      %1779 = vmatpush1.bf16.msra.mxu0 0
      %1780 = vmatprep.subr.bf16.mxu0 0
      %1781 = vmatpush1.bf16.msra.mxu0 0
      %1782 = vmatprep.subr.bf16.mxu0 0
      %1783 = vmatpush1.bf16.msra.mxu0 0
      %1784 = vmatprep.subr.bf16.mxu0 0
      %1785 = vmatpush1.bf16.msra.mxu0 0
      %1786 = vmatprep.subr.bf16.mxu0 0
      %1787 = vmatpush1.bf16.msra.mxu0 0
      %1788 = vmatprep.mubr.bf16.mxu0 0
      %1789 = vmatmul.mubr.bf16.gmra.mrb[0].mxu0 %v1755
      %v1790 = vpop.f32.mrb[0].mxu0
      %v1791 = vadd.f32 %v1513, %v1790
      %v1792 = vpop.f32.mrb[0].mxu0
      %v1793 = vadd.f32 %v1517, %v1792
      %v1794 = vpop.f32.mrb[0].mxu0
      %v1795 = vpop.f32.mrb[0].mxu0
      %1796 = vdwg.mxu0
      %1797 = vmatprep.subr.bf16.mxu0 0
      %1798 = vmatpush1.bf16.msra.mxu0 %v1607
      %1799 = vmatprep.subr.bf16.mxu0 0
      %1800 = vmatpush1.bf16.msra.mxu0 %v1610
      %1801 = vmatprep.subr.bf16.mxu0 0
      %1802 = vmatpush1.bf16.msra.mxu0 %v1613
      %1803 = vmatprep.subr.bf16.mxu0 0
      %1804 = vmatpush1.bf16.msra.mxu0 %v1616
      %1805 = vmatprep.subr.bf16.mxu0 0
      %1806 = vmatpush1.bf16.msra.mxu0 %v1619
      %1807 = vmatprep.subr.bf16.mxu0 0
      %1808 = vmatpush1.bf16.msra.mxu0 %v1622
      %1809 = vmatprep.subr.bf16.mxu0 0
      %1810 = vmatpush1.bf16.msra.mxu0 %v1625
      %1811 = vmatprep.subr.bf16.mxu0 0
      %1812 = vmatpush1.bf16.msra.mxu0 %v1628
      %1813 = vmatprep.subr.bf16.mxu0 0
      %1814 = vmatpush1.bf16.msra.mxu0 0
      %1815 = vmatprep.subr.bf16.mxu0 0
      %1816 = vmatpush1.bf16.msra.mxu0 0
      %1817 = vmatprep.subr.bf16.mxu0 0
      %1818 = vmatpush1.bf16.msra.mxu0 0
      %1819 = vmatprep.subr.bf16.mxu0 0
      %1820 = vmatpush1.bf16.msra.mxu0 0
      %1821 = vmatprep.subr.bf16.mxu0 0
      %1822 = vmatpush1.bf16.msra.mxu0 0
      %1823 = vmatprep.subr.bf16.mxu0 0
      %1824 = vmatpush1.bf16.msra.mxu0 0
      %1825 = vmatprep.subr.bf16.mxu0 0
      %1826 = vmatpush1.bf16.msra.mxu0 0
      %1827 = vmatprep.subr.bf16.mxu0 0
      %1828 = vmatpush1.bf16.msra.mxu0 0
      %1829 = vmatprep.mubr.bf16.mxu0 0
      %1830 = vmatmul.mubr.bf16.gmra.mrb[0].mxu0 %v1755
      %v1831 = vpop.f32.mrb[0].mxu0
      %v1832 = vadd.f32 %v1521, %v1831
      %v1833 = vpop.f32.mrb[0].mxu0
      %v1834 = vpop.f32.mrb[0].mxu0
      %v1835 = vpop.f32.mrb[0].mxu0
      %1836 = vdwg.mxu0
      %v1837 = vadd.f32 %v1752, %v1791
      %v1838 = vmul.f32 %v1837, 0.5
      %v1839 = vtanh.pop %v1838
      %v1840 = vmul.f32 %v1839, 0.5
      %v1841 = vadd.f32 %v1840, 0.5
      %v1842 = vadd.f32 %v1753, %v1793
      %v1843 = vmul.f32 %v1842, 0.5
      %v1844 = vtanh.pop %v1843
      %v1845 = vmul.f32 %v1844, 0.5
      %v1846 = vadd.f32 %v1845, 0.5
      %v1847 = vmul.f32 %v1841, %v1832
      %v1848 = vadd.f32 %v1754, %v1847
      %v1849 = vtanh.pop %v1848
      %v1850 = vsub.f32 1.0, %v1846
      %v1851 = vmul.f32 %v1850, %v1849
      %v1852 = vmul.f32 %v1846, %v1750
      %v1853 = vadd.f32 %v1851, %v1852
      %1854 = vst [vmem:[%s948] sm:$0xff] %v1853
      %v1855 = vld [vmem:[%s950] sm:$0xff]
      %v1856 = vld [vmem:[%s950 + $0x8] sm:$0xff]
      %v1857 = vld [vmem:[%s950 + $0x10] sm:$0xff]
      %v1858 = vpack.c.bf16 %v1853, %v1853
      %1859 = vmatprep.subr.bf16.mxu0 %v1606
      %1860 = vmatpush1.bf16.msra.mxu0 %v1605
      %1861 = vmatprep.subr.bf16.mxu0 %v1609
      %1862 = vmatpush1.bf16.msra.mxu0 %v1608
      %1863 = vmatprep.subr.bf16.mxu0 %v1612
      %1864 = vmatpush1.bf16.msra.mxu0 %v1611
      %1865 = vmatprep.subr.bf16.mxu0 %v1615
      %1866 = vmatpush1.bf16.msra.mxu0 %v1614
      %1867 = vmatprep.subr.bf16.mxu0 %v1618
      %1868 = vmatpush1.bf16.msra.mxu0 %v1617
      %1869 = vmatprep.subr.bf16.mxu0 %v1621
      %1870 = vmatpush1.bf16.msra.mxu0 %v1620
      %1871 = vmatprep.subr.bf16.mxu0 %v1624
      %1872 = vmatpush1.bf16.msra.mxu0 %v1623
      %1873 = vmatprep.subr.bf16.mxu0 %v1627
      %1874 = vmatpush1.bf16.msra.mxu0 %v1626
      %1875 = vmatprep.subr.bf16.mxu0 0
      %1876 = vmatpush1.bf16.msra.mxu0 0
      %1877 = vmatprep.subr.bf16.mxu0 0
      %1878 = vmatpush1.bf16.msra.mxu0 0
      %1879 = vmatprep.subr.bf16.mxu0 0
      %1880 = vmatpush1.bf16.msra.mxu0 0
      %1881 = vmatprep.subr.bf16.mxu0 0
      %1882 = vmatpush1.bf16.msra.mxu0 0
      %1883 = vmatprep.subr.bf16.mxu0 0
      %1884 = vmatpush1.bf16.msra.mxu0 0
      %1885 = vmatprep.subr.bf16.mxu0 0
      %1886 = vmatpush1.bf16.msra.mxu0 0
      %1887 = vmatprep.subr.bf16.mxu0 0
      %1888 = vmatpush1.bf16.msra.mxu0 0
      %1889 = vmatprep.subr.bf16.mxu0 0
      %1890 = vmatpush1.bf16.msra.mxu0 0
      %1891 = vmatprep.mubr.bf16.mxu0 0
      %1892 = vmatmul.mubr.bf16.gmra.mrb[0].mxu0 %v1858
      %v1893 = vpop.f32.mrb[0].mxu0
      %v1894 = vadd.f32 %v1513, %v1893
      %v1895 = vpop.f32.mrb[0].mxu0
      %v1896 = vadd.f32 %v1517, %v1895
      %v1897 = vpop.f32.mrb[0].mxu0
      %v1898 = vpop.f32.mrb[0].mxu0
      %1899 = vdwg.mxu0
      %1900 = vmatprep.subr.bf16.mxu0 0
      %1901 = vmatpush1.bf16.msra.mxu0 %v1607
      %1902 = vmatprep.subr.bf16.mxu0 0
      %1903 = vmatpush1.bf16.msra.mxu0 %v1610
      %1904 = vmatprep.subr.bf16.mxu0 0
      %1905 = vmatpush1.bf16.msra.mxu0 %v1613
      %1906 = vmatprep.subr.bf16.mxu0 0
      %1907 = vmatpush1.bf16.msra.mxu0 %v1616
      %1908 = vmatprep.subr.bf16.mxu0 0
      %1909 = vmatpush1.bf16.msra.mxu0 %v1619
      %1910 = vmatprep.subr.bf16.mxu0 0
      %1911 = vmatpush1.bf16.msra.mxu0 %v1622
      %1912 = vmatprep.subr.bf16.mxu0 0
      %1913 = vmatpush1.bf16.msra.mxu0 %v1625
      %1914 = vmatprep.subr.bf16.mxu0 0
      %1915 = vmatpush1.bf16.msra.mxu0 %v1628
      %1916 = vmatprep.subr.bf16.mxu0 0
      %1917 = vmatpush1.bf16.msra.mxu0 0
      %1918 = vmatprep.subr.bf16.mxu0 0
      %1919 = vmatpush1.bf16.msra.mxu0 0
      %1920 = vmatprep.subr.bf16.mxu0 0
      %1921 = vmatpush1.bf16.msra.mxu0 0
      %1922 = vmatprep.subr.bf16.mxu0 0
      %1923 = vmatpush1.bf16.msra.mxu0 0
      %1924 = vmatprep.subr.bf16.mxu0 0
      %1925 = vmatpush1.bf16.msra.mxu0 0
      %1926 = vmatprep.subr.bf16.mxu0 0
      %1927 = vmatpush1.bf16.msra.mxu0 0
      %1928 = vmatprep.subr.bf16.mxu0 0
      %1929 = vmatpush1.bf16.msra.mxu0 0
      %1930 = vmatprep.subr.bf16.mxu0 0
      %1931 = vmatpush1.bf16.msra.mxu0 0
      %1932 = vmatprep.mubr.bf16.mxu0 0
      %1933 = vmatmul.mubr.bf16.gmra.mrb[0].mxu0 %v1858
      %v1934 = vpop.f32.mrb[0].mxu0
      %v1935 = vadd.f32 %v1521, %v1934
      %v1936 = vpop.f32.mrb[0].mxu0
      %v1937 = vpop.f32.mrb[0].mxu0
      %v1938 = vpop.f32.mrb[0].mxu0
      %1939 = vdwg.mxu0
      %v1940 = vadd.f32 %v1855, %v1894
      %v1941 = vmul.f32 %v1940, 0.5
      %v1942 = vtanh.pop %v1941
      %v1943 = vmul.f32 %v1942, 0.5
      %v1944 = vadd.f32 %v1943, 0.5
      %v1945 = vadd.f32 %v1856, %v1896
      %v1946 = vmul.f32 %v1945, 0.5
      %v1947 = vtanh.pop %v1946
      %v1948 = vmul.f32 %v1947, 0.5
      %v1949 = vadd.f32 %v1948, 0.5
      %v1950 = vmul.f32 %v1944, %v1935
      %v1951 = vadd.f32 %v1857, %v1950
      %v1952 = vtanh.pop %v1951
      %v1953 = vsub.f32 1.0, %v1949
      %v1954 = vmul.f32 %v1953, %v1952
      %v1955 = vmul.f32 %v1949, %v1853
      %v1956 = vadd.f32 %v1954, %v1955
      %1957 = vst [vmem:[%s1053] sm:$0xff] %v1956
      %v1958 = vld [vmem:[%s1055] sm:$0xff]
      %v1959 = vld [vmem:[%s1055 + $0x8] sm:$0xff]
      %v1960 = vld [vmem:[%s1055 + $0x10] sm:$0xff]
      %v1961 = vpack.c.bf16 %v1956, %v1956
      %1962 = vmatprep.subr.bf16.mxu0 %v1606
      %1963 = vmatpush1.bf16.msra.mxu0 %v1605
      %1964 = vmatprep.subr.bf16.mxu0 %v1609
      %1965 = vmatpush1.bf16.msra.mxu0 %v1608
      %1966 = vmatprep.subr.bf16.mxu0 %v1612
      %1967 = vmatpush1.bf16.msra.mxu0 %v1611
      %1968 = vmatprep.subr.bf16.mxu0 %v1615
      %1969 = vmatpush1.bf16.msra.mxu0 %v1614
      %1970 = vmatprep.subr.bf16.mxu0 %v1618
      %1971 = vmatpush1.bf16.msra.mxu0 %v1617
      %1972 = vmatprep.subr.bf16.mxu0 %v1621
      %1973 = vmatpush1.bf16.msra.mxu0 %v1620
      %1974 = vmatprep.subr.bf16.mxu0 %v1624
      %1975 = vmatpush1.bf16.msra.mxu0 %v1623
      %1976 = vmatprep.subr.bf16.mxu0 %v1627
      %1977 = vmatpush1.bf16.msra.mxu0 %v1626
      %1978 = vmatprep.subr.bf16.mxu0 0
      %1979 = vmatpush1.bf16.msra.mxu0 0
      %1980 = vmatprep.subr.bf16.mxu0 0
      %1981 = vmatpush1.bf16.msra.mxu0 0
      %1982 = vmatprep.subr.bf16.mxu0 0
      %1983 = vmatpush1.bf16.msra.mxu0 0
      %1984 = vmatprep.subr.bf16.mxu0 0
      %1985 = vmatpush1.bf16.msra.mxu0 0
      %1986 = vmatprep.subr.bf16.mxu0 0
      %1987 = vmatpush1.bf16.msra.mxu0 0
      %1988 = vmatprep.subr.bf16.mxu0 0
      %1989 = vmatpush1.bf16.msra.mxu0 0
      %1990 = vmatprep.subr.bf16.mxu0 0
      %1991 = vmatpush1.bf16.msra.mxu0 0
      %1992 = vmatprep.subr.bf16.mxu0 0
      %1993 = vmatpush1.bf16.msra.mxu0 0
      %1994 = vmatprep.mubr.bf16.mxu0 0
      %1995 = vmatmul.mubr.bf16.gmra.mrb[0].mxu0 %v1961
      %v1996 = vpop.f32.mrb[0].mxu0
      %v1997 = vadd.f32 %v1513, %v1996
      %v1998 = vpop.f32.mrb[0].mxu0
      %v1999 = vadd.f32 %v1517, %v1998
      %v2000 = vpop.f32.mrb[0].mxu0
      %v2001 = vpop.f32.mrb[0].mxu0
      %2002 = vdwg.mxu0
      %2003 = vmatprep.subr.bf16.mxu0 0
      %2004 = vmatpush1.bf16.msra.mxu0 %v1607
      %2005 = vmatprep.subr.bf16.mxu0 0
      %2006 = vmatpush1.bf16.msra.mxu0 %v1610
      %2007 = vmatprep.subr.bf16.mxu0 0
      %2008 = vmatpush1.bf16.msra.mxu0 %v1613
      %2009 = vmatprep.subr.bf16.mxu0 0
      %2010 = vmatpush1.bf16.msra.mxu0 %v1616
      %2011 = vmatprep.subr.bf16.mxu0 0
      %2012 = vmatpush1.bf16.msra.mxu0 %v1619
      %2013 = vmatprep.subr.bf16.mxu0 0
      %2014 = vmatpush1.bf16.msra.mxu0 %v1622
      %2015 = vmatprep.subr.bf16.mxu0 0
      %2016 = vmatpush1.bf16.msra.mxu0 %v1625
      %2017 = vmatprep.subr.bf16.mxu0 0
      %2018 = vmatpush1.bf16.msra.mxu0 %v1628
      %2019 = vmatprep.subr.bf16.mxu0 0
      %2020 = vmatpush1.bf16.msra.mxu0 0
      %2021 = vmatprep.subr.bf16.mxu0 0
      %2022 = vmatpush1.bf16.msra.mxu0 0
      %2023 = vmatprep.subr.bf16.mxu0 0
      %2024 = vmatpush1.bf16.msra.mxu0 0
      %2025 = vmatprep.subr.bf16.mxu0 0
      %2026 = vmatpush1.bf16.msra.mxu0 0
      %2027 = vmatprep.subr.bf16.mxu0 0
      %2028 = vmatpush1.bf16.msra.mxu0 0
      %2029 = vmatprep.subr.bf16.mxu0 0
      %2030 = vmatpush1.bf16.msra.mxu0 0
      %2031 = vmatprep.subr.bf16.mxu0 0
      %2032 = vmatpush1.bf16.msra.mxu0 0
      %2033 = vmatprep.subr.bf16.mxu0 0
      %2034 = vmatpush1.bf16.msra.mxu0 0
      %2035 = vmatprep.mubr.bf16.mxu0 0
      %2036 = vmatmul.mubr.bf16.gmra.mrb[0].mxu0 %v1961
      %v2037 = vpop.f32.mrb[0].mxu0
      %v2038 = vadd.f32 %v1521, %v2037
      %v2039 = vpop.f32.mrb[0].mxu0
      %v2040 = vpop.f32.mrb[0].mxu0
      %v2041 = vpop.f32.mrb[0].mxu0
      %2042 = vdwg.mxu0
      %v2043 = vadd.f32 %v1958, %v1997
      %v2044 = vmul.f32 %v2043, 0.5
      %v2045 = vtanh.pop %v2044
      %v2046 = vmul.f32 %v2045, 0.5
      %v2047 = vadd.f32 %v2046, 0.5
      %v2048 = vadd.f32 %v1959, %v1999
      %v2049 = vmul.f32 %v2048, 0.5
      %v2050 = vtanh.pop %v2049
      %v2051 = vmul.f32 %v2050, 0.5
      %v2052 = vadd.f32 %v2051, 0.5
      %v2053 = vmul.f32 %v2047, %v2038
      %v2054 = vadd.f32 %v1960, %v2053
      %v2055 = vtanh.pop %v2054
      %v2056 = vsub.f32 1.0, %v2052
      %v2057 = vmul.f32 %v2056, %v2055
      %v2058 = vmul.f32 %v2052, %v1956
      %v2059 = vadd.f32 %v2057, %v2058
      %2060 = vst [vmem:[%s1158] sm:$0xff] %v2059
      %2061 = vst [vmem:[%s1503] sm:$0xff] %v2059
      %v2062 = vld [vmem:[%s257] sm:$0xff]
      %v2063 = vld [vmem:[%s257 + $0x8] sm:$0xff]
      %v2064 = vld [vmem:[%s257 + $0x10] sm:$0xff]
      %v2065 = vld [vmem:[%s257 + $0x18] sm:$0xff]
      %v2066 = vld [vmem:[#allocation4] sm:$0xff]
      %v2067 = vld [vmem:[#allocation4 + $0x8] sm:$0xff]
      %v2068 = vld [vmem:[#allocation4 + $0x10] sm:$0xff]
      %v2069 = vld [vmem:[#allocation4 + $0x18] sm:$0xff]
      %v2070 = vadd.f32 %v2062, %v2066
      %v2071 = vadd.f32 %v2063, %v2067
      %v2072 = vadd.f32 %v2064, %v2068
      %v2073 = vadd.f32 %v2065, %v2069
      %2074 = vst [vmem:[%s257] sm:$0xff] %v2070
      %2075 = vst [vmem:[%s257 + $0x8] sm:$0xff] %v2071
      %2076 = vst [vmem:[%s257 + $0x10] sm:$0xff] %v2072
      %2077 = vst [vmem:[%s257 + $0x18] sm:$0xff] %v2073
      %v2078 = vld [vmem:[#allocation4] sm:$0xff]
      %v2079 = vld [vmem:[#allocation4 + $0x8] sm:$0xff]
      %v2080 = vld [vmem:[#allocation4 + $0x10] sm:$0xff]
      %v2081 = vld [vmem:[#allocation4 + $0x18] sm:$0xff]
      %v2082 = vpack.c.bf16 %v2079, %v2078
      %v2083 = vpack.c.bf16 %v2081, %v2080
      %s2084 = scalar_lea.vmem %s1, 384
      %v2085 = vld [vmem:[%s2084] sm:$0xff]
      %v2086 = vld [vmem:[%s2084 + $0x8] sm:$0xf]
      %v2087 = vld [vmem:[%s2084 + $0xc] sm:$0xff]
      %v2088 = vld [vmem:[%s2084 + $0x14] sm:$0xf]
      %v2089 = vld [vmem:[%s2084 + $0x18] sm:$0xff]
      %v2090 = vld [vmem:[%s2084 + $0x20] sm:$0xf]
      %v2091 = vld [vmem:[%s2084 + $0x24] sm:$0xff]
      %v2092 = vld [vmem:[%s2084 + $0x2c] sm:$0xf]
      %v2093 = vld [vmem:[%s2084 + $0x30] sm:$0xff]
      %v2094 = vld [vmem:[%s2084 + $0x38] sm:$0xf]
      %v2095 = vld [vmem:[%s2084 + $0x3c] sm:$0xff]
      %v2096 = vld [vmem:[%s2084 + $0x44] sm:$0xf]
      %v2097 = vld [vmem:[%s2084 + $0x48] sm:$0xff]
      %v2098 = vld [vmem:[%s2084 + $0x50] sm:$0xf]
      %v2099 = vld [vmem:[%s2084 + $0x54] sm:$0xff]
      %v2100 = vld [vmem:[%s2084 + $0x5c] sm:$0xf]
      %v2101 = vld [vmem:[%s2084 + $0x60] sm:$0xff]
      %v2102 = vld [vmem:[%s2084 + $0x68] sm:$0xf]
      %v2103 = vld [vmem:[%s2084 + $0x6c] sm:$0xff]
      %v2104 = vld [vmem:[%s2084 + $0x74] sm:$0xf]
      %v2105 = vld [vmem:[%s2084 + $0x78] sm:$0xff]
      %v2106 = vld [vmem:[%s2084 + $0x80] sm:$0xf]
      %v2107 = vld [vmem:[%s2084 + $0x84] sm:$0xff]
      %v2108 = vld [vmem:[%s2084 + $0x8c] sm:$0xf]
      %v2109 = vld [vmem:[%s2084 + $0x90] sm:$0xff]
      %v2110 = vld [vmem:[%s2084 + $0x98] sm:$0xf]
      %v2111 = vld [vmem:[%s2084 + $0x9c] sm:$0xff]
      %v2112 = vld [vmem:[%s2084 + $0xa4] sm:$0xf]
      %v2113 = vld [vmem:[%s2084 + $0xa8] sm:$0xff]
      %v2114 = vld [vmem:[%s2084 + $0xb0] sm:$0xf]
      %v2115 = vld [vmem:[%s2084 + $0xb4] sm:$0xff]
      %v2116 = vld [vmem:[%s2084 + $0xbc] sm:$0xf]
      %s2117 = scalar_lea.vmem %s2, 6
      %v2118 = vld [vmem:[%s2117] sm:$0x7]
      %v2120 = vlaneseq
      %v2121 = vshrl.u32 %v2120, 7
      %v2122 = vsub.s32 0, %v2121
      %v2123 = vrot.slane %v2118, %v2122
      %v2124 = vlaneseq
      %v2125 = vshrl.u32 %v2124, 7
      %v2126 = vsub.s32 1, %v2125
      %v2127 = vrot.slane %v2118, %v2126
      %v2128 = vlaneseq
      %v2129 = vshrl.u32 %v2128, 7
      %v2130 = vsub.s32 2, %v2129
      %v2131 = vrot.slane %v2118, %v2130
      %v2167 = vunpack.c.l.b16 %v2085
      %v2168 = vunpack.c.h.b16 %v2085
      %v2169 = vunpack.c.l.b16 %v2086
      %v2170 = vunpack.c.l.b16 %v2087
      %v2171 = vunpack.c.h.b16 %v2087
      %v2172 = vunpack.c.l.b16 %v2088
      %v2173 = vunpack.c.l.b16 %v2089
      %v2174 = vunpack.c.h.b16 %v2089
      %v2175 = vunpack.c.l.b16 %v2090
      %v2176 = vunpack.c.l.b16 %v2091
      %v2177 = vunpack.c.h.b16 %v2091
      %v2178 = vunpack.c.l.b16 %v2092
      %v2179 = vunpack.c.l.b16 %v2093
      %v2180 = vunpack.c.h.b16 %v2093
      %v2181 = vunpack.c.l.b16 %v2094
      %v2182 = vunpack.c.l.b16 %v2095
      %v2183 = vunpack.c.h.b16 %v2095
      %v2184 = vunpack.c.l.b16 %v2096
      %v2185 = vunpack.c.l.b16 %v2097
      %v2186 = vunpack.c.h.b16 %v2097
      %v2187 = vunpack.c.l.b16 %v2098
      %v2188 = vunpack.c.l.b16 %v2099
      %v2189 = vunpack.c.h.b16 %v2099
      %v2190 = vunpack.c.l.b16 %v2100
      %v2191 = vunpack.c.l.b16 %v2101
      %v2192 = vunpack.c.h.b16 %v2101
      %v2193 = vunpack.c.l.b16 %v2102
      %v2194 = vunpack.c.l.b16 %v2103
      %v2195 = vunpack.c.h.b16 %v2103
      %v2196 = vunpack.c.l.b16 %v2104
      %v2197 = vunpack.c.l.b16 %v2105
      %v2198 = vunpack.c.h.b16 %v2105
      %v2199 = vunpack.c.l.b16 %v2106
      %v2200 = vunpack.c.l.b16 %v2107
      %v2201 = vunpack.c.h.b16 %v2107
      %v2202 = vunpack.c.l.b16 %v2108
      %v2203 = vunpack.c.l.b16 %v2109
      %v2204 = vunpack.c.h.b16 %v2109
      %v2205 = vunpack.c.l.b16 %v2110
      %v2206 = vunpack.c.l.b16 %v2111
      %v2207 = vunpack.c.h.b16 %v2111
      %v2208 = vunpack.c.l.b16 %v2112
      %v2209 = vunpack.c.l.b16 %v2113
      %v2210 = vunpack.c.h.b16 %v2113
      %v2211 = vunpack.c.l.b16 %v2114
      %v2212 = vunpack.c.l.b16 %v2115
      %v2213 = vunpack.c.h.b16 %v2115
      %v2214 = vunpack.c.l.b16 %v2116
      %v2215 = vpack.c.b16 %v2170, %v2167
      %v2216 = vpack.c.b16 %v2171, %v2168
      %v2217 = vpack.c.b16 %v2172, %v2169
      %v2218 = vpack.c.b16 %v2176, %v2173
      %v2219 = vpack.c.b16 %v2177, %v2174
      %v2220 = vpack.c.b16 %v2178, %v2175
      %v2221 = vpack.c.b16 %v2182, %v2179
      %v2222 = vpack.c.b16 %v2183, %v2180
      %v2223 = vpack.c.b16 %v2184, %v2181
      %v2224 = vpack.c.b16 %v2188, %v2185
      %v2225 = vpack.c.b16 %v2189, %v2186
      %v2226 = vpack.c.b16 %v2190, %v2187
      %v2227 = vpack.c.b16 %v2194, %v2191
      %v2228 = vpack.c.b16 %v2195, %v2192
      %v2229 = vpack.c.b16 %v2196, %v2193
      %v2230 = vpack.c.b16 %v2200, %v2197
      %v2231 = vpack.c.b16 %v2201, %v2198
      %v2232 = vpack.c.b16 %v2202, %v2199
      %v2233 = vpack.c.b16 %v2206, %v2203
      %v2234 = vpack.c.b16 %v2207, %v2204
      %v2235 = vpack.c.b16 %v2208, %v2205
      %v2236 = vpack.c.b16 %v2212, %v2209
      %v2237 = vpack.c.b16 %v2213, %v2210
      %v2238 = vpack.c.b16 %v2214, %v2211
      %2263 = vmatprep.subr.bf16.mxu0 %v2216
      %2264 = vmatpush1.bf16.msra.mxu0 %v2215
      %2265 = vmatprep.subr.bf16.mxu0 %v2219
      %2266 = vmatpush1.bf16.msra.mxu0 %v2218
      %2267 = vmatprep.subr.bf16.mxu0 %v2222
      %2268 = vmatpush1.bf16.msra.mxu0 %v2221
      %2269 = vmatprep.subr.bf16.mxu0 %v2225
      %2270 = vmatpush1.bf16.msra.mxu0 %v2224
      %2271 = vmatprep.subr.bf16.mxu0 %v2228
      %2272 = vmatpush1.bf16.msra.mxu0 %v2227
      %2273 = vmatprep.subr.bf16.mxu0 %v2231
      %2274 = vmatpush1.bf16.msra.mxu0 %v2230
      %2275 = vmatprep.subr.bf16.mxu0 %v2234
      %2276 = vmatpush1.bf16.msra.mxu0 %v2233
      %2277 = vmatprep.subr.bf16.mxu0 %v2237
      %2278 = vmatpush1.bf16.msra.mxu0 %v2236
      %2279 = vmatprep.subr.bf16.mxu0 0
      %2280 = vmatpush1.bf16.msra.mxu0 0
      %2281 = vmatprep.subr.bf16.mxu0 0
      %2282 = vmatpush1.bf16.msra.mxu0 0
      %2283 = vmatprep.subr.bf16.mxu0 0
      %2284 = vmatpush1.bf16.msra.mxu0 0
      %2285 = vmatprep.subr.bf16.mxu0 0
      %2286 = vmatpush1.bf16.msra.mxu0 0
      %2287 = vmatprep.subr.bf16.mxu0 0
      %2288 = vmatpush1.bf16.msra.mxu0 0
      %2289 = vmatprep.subr.bf16.mxu0 0
      %2290 = vmatpush1.bf16.msra.mxu0 0
      %2291 = vmatprep.subr.bf16.mxu0 0
      %2292 = vmatpush1.bf16.msra.mxu0 0
      %2293 = vmatprep.subr.bf16.mxu0 0
      %2294 = vmatpush1.bf16.msra.mxu0 0
      %2295 = vmatprep.mubr.bf16.mxu0 0
      %2296 = vmatmul.mubr.bf16.gmra.mrb[0].mxu0 %v2082
      %v2297 = vpop.f32.mrb[0].mxu0
      %v2298 = vadd.f32 %v2123, %v2297
      %v2299 = vpop.f32.mrb[0].mxu0
      %v2300 = vadd.f32 %v2127, %v2299
      %v2301 = vpop.f32.mrb[0].mxu0
      %v2302 = vadd.f32 %v2123, %v2301
      %v2303 = vpop.f32.mrb[0].mxu0
      %v2304 = vadd.f32 %v2127, %v2303
      %2305 = vmatprep.mubr.bf16.mxu0 0
      %2306 = vmatmul.mubr.bf16.gmra.mrb[0].mxu0 %v2083
      %v2307 = vpop.f32.mrb[0].mxu0
      %v2308 = vadd.f32 %v2123, %v2307
      %v2309 = vpop.f32.mrb[0].mxu0
      %v2310 = vadd.f32 %v2127, %v2309
      %v2311 = vpop.f32.mrb[0].mxu0
      %v2312 = vadd.f32 %v2123, %v2311
      %v2313 = vpop.f32.mrb[0].mxu0
      %v2314 = vadd.f32 %v2127, %v2313
      %2315 = vdwg.mxu0
      %2316 = vmatprep.subr.bf16.mxu0 0
      %2317 = vmatpush1.bf16.msra.mxu0 %v2217
      %2318 = vmatprep.subr.bf16.mxu0 0
      %2319 = vmatpush1.bf16.msra.mxu0 %v2220
      %2320 = vmatprep.subr.bf16.mxu0 0
      %2321 = vmatpush1.bf16.msra.mxu0 %v2223
      %2322 = vmatprep.subr.bf16.mxu0 0
      %2323 = vmatpush1.bf16.msra.mxu0 %v2226
      %2324 = vmatprep.subr.bf16.mxu0 0
      %2325 = vmatpush1.bf16.msra.mxu0 %v2229
      %2326 = vmatprep.subr.bf16.mxu0 0
      %2327 = vmatpush1.bf16.msra.mxu0 %v2232
      %2328 = vmatprep.subr.bf16.mxu0 0
      %2329 = vmatpush1.bf16.msra.mxu0 %v2235
      %2330 = vmatprep.subr.bf16.mxu0 0
      %2331 = vmatpush1.bf16.msra.mxu0 %v2238
      %2332 = vmatprep.subr.bf16.mxu0 0
      %2333 = vmatpush1.bf16.msra.mxu0 0
      %2334 = vmatprep.subr.bf16.mxu0 0
      %2335 = vmatpush1.bf16.msra.mxu0 0
      %2336 = vmatprep.subr.bf16.mxu0 0
      %2337 = vmatpush1.bf16.msra.mxu0 0
      %2338 = vmatprep.subr.bf16.mxu0 0
      %2339 = vmatpush1.bf16.msra.mxu0 0
      %2340 = vmatprep.subr.bf16.mxu0 0
      %2341 = vmatpush1.bf16.msra.mxu0 0
      %2342 = vmatprep.subr.bf16.mxu0 0
      %2343 = vmatpush1.bf16.msra.mxu0 0
      %2344 = vmatprep.subr.bf16.mxu0 0
      %2345 = vmatpush1.bf16.msra.mxu0 0
      %2346 = vmatprep.subr.bf16.mxu0 0
      %2347 = vmatpush1.bf16.msra.mxu0 0
      %2348 = vmatprep.mubr.bf16.mxu0 0
      %2349 = vmatmul.mubr.bf16.gmra.mrb[0].mxu0 %v2082
      %v2350 = vpop.f32.mrb[0].mxu0
      %v2351 = vadd.f32 %v2131, %v2350
      %v2352 = vpop.f32.mrb[0].mxu0
      %v2353 = vpop.f32.mrb[0].mxu0
      %v2354 = vadd.f32 %v2131, %v2353
      %v2355 = vpop.f32.mrb[0].mxu0
      %2356 = vmatprep.mubr.bf16.mxu0 0
      %2357 = vmatmul.mubr.bf16.gmra.mrb[0].mxu0 %v2083
      %v2358 = vpop.f32.mrb[0].mxu0
      %v2359 = vadd.f32 %v2131, %v2358
      %v2360 = vpop.f32.mrb[0].mxu0
      %v2361 = vpop.f32.mrb[0].mxu0
      %v2362 = vadd.f32 %v2131, %v2361
      %v2363 = vpop.f32.mrb[0].mxu0
      %2364 = vdwg.mxu0
      %2365 = vst [vmem:[#allocation3] sm:$0xff] %v2298
      %2366 = vst [vmem:[#allocation3 + $0x8] sm:$0xff] %v2300
      %2367 = vst [vmem:[#allocation3 + $0x10] sm:$0xff] %v2351
      %2368 = vst [vmem:[#allocation3 + $0x18] sm:$0xff] %v2302
      %2369 = vst [vmem:[#allocation3 + $0x20] sm:$0xff] %v2304
      %2370 = vst [vmem:[#allocation3 + $0x28] sm:$0xff] %v2354
      %2371 = vst [vmem:[#allocation3 + $0x30] sm:$0xff] %v2308
      %2372 = vst [vmem:[#allocation3 + $0x38] sm:$0xff] %v2310
      %2373 = vst [vmem:[#allocation3 + $0x40] sm:$0xff] %v2359
      %2374 = vst [vmem:[#allocation3 + $0x48] sm:$0xff] %v2312
      %2375 = vst [vmem:[#allocation3 + $0x50] sm:$0xff] %v2314
      %2376 = vst [vmem:[#allocation3 + $0x58] sm:$0xff] %v2362
      %s2377 = scalar_lea.vmem %s3, 384
      %v2378 = vld [vmem:[%s2377] sm:$0xff]
      %v2379 = vld [vmem:[%s2377 + $0x8] sm:$0xf]
      %v2380 = vld [vmem:[%s2377 + $0xc] sm:$0xff]
      %v2381 = vld [vmem:[%s2377 + $0x14] sm:$0xf]
      %v2382 = vld [vmem:[%s2377 + $0x18] sm:$0xff]
      %v2383 = vld [vmem:[%s2377 + $0x20] sm:$0xf]
      %v2384 = vld [vmem:[%s2377 + $0x24] sm:$0xff]
      %v2385 = vld [vmem:[%s2377 + $0x2c] sm:$0xf]
      %v2386 = vld [vmem:[%s2377 + $0x30] sm:$0xff]
      %v2387 = vld [vmem:[%s2377 + $0x38] sm:$0xf]
      %v2388 = vld [vmem:[%s2377 + $0x3c] sm:$0xff]
      %v2389 = vld [vmem:[%s2377 + $0x44] sm:$0xf]
      %v2390 = vld [vmem:[%s2377 + $0x48] sm:$0xff]
      %v2391 = vld [vmem:[%s2377 + $0x50] sm:$0xf]
      %v2392 = vld [vmem:[%s2377 + $0x54] sm:$0xff]
      %v2393 = vld [vmem:[%s2377 + $0x5c] sm:$0xf]
      %v2394 = vld [vmem:[%s2377 + $0x60] sm:$0xff]
      %v2395 = vld [vmem:[%s2377 + $0x68] sm:$0xf]
      %v2396 = vld [vmem:[%s2377 + $0x6c] sm:$0xff]
      %v2397 = vld [vmem:[%s2377 + $0x74] sm:$0xf]
      %v2398 = vld [vmem:[%s2377 + $0x78] sm:$0xff]
      %v2399 = vld [vmem:[%s2377 + $0x80] sm:$0xf]
      %v2400 = vld [vmem:[%s2377 + $0x84] sm:$0xff]
      %v2401 = vld [vmem:[%s2377 + $0x8c] sm:$0xf]
      %v2402 = vld [vmem:[%s2377 + $0x90] sm:$0xff]
      %v2403 = vld [vmem:[%s2377 + $0x98] sm:$0xf]
      %v2404 = vld [vmem:[%s2377 + $0x9c] sm:$0xff]
      %v2405 = vld [vmem:[%s2377 + $0xa4] sm:$0xf]
      %v2406 = vld [vmem:[%s2377 + $0xa8] sm:$0xff]
      %v2407 = vld [vmem:[%s2377 + $0xb0] sm:$0xf]
      %v2408 = vld [vmem:[%s2377 + $0xb4] sm:$0xff]
      %v2409 = vld [vmem:[%s2377 + $0xbc] sm:$0xf]
      %s2410 = scalar_lea.vmem %s4, 6
      %v2411 = vld [vmem:[%s2410] sm:$0x7]
      %s2412 = scalar_lea.vmem [#allocation2], 16
      %v2413 = vld [vmem:[%s2412] sm:$0xff]
      %v2414 = vld [vmem:[#allocation3] sm:$0xff]
      %v2415 = vld [vmem:[#allocation3 + $0x8] sm:$0xff]
      %v2416 = vld [vmem:[#allocation3 + $0x10] sm:$0xff]
      %v2417 = vpack.c.bf16 %v2413, %v2413
      %v2419 = vlaneseq
      %v2420 = vshrl.u32 %v2419, 7
      %v2421 = vsub.s32 0, %v2420
      %v2422 = vrot.slane %v2411, %v2421
      %v2423 = vlaneseq
      %v2424 = vshrl.u32 %v2423, 7
      %v2425 = vsub.s32 1, %v2424
      %v2426 = vrot.slane %v2411, %v2425
      %v2427 = vlaneseq
      %v2428 = vshrl.u32 %v2427, 7
      %v2429 = vsub.s32 2, %v2428
      %v2430 = vrot.slane %v2411, %v2429
      %v2466 = vunpack.c.l.b16 %v2378
      %v2467 = vunpack.c.h.b16 %v2378
      %v2468 = vunpack.c.l.b16 %v2379
      %v2469 = vunpack.c.l.b16 %v2380
      %v2470 = vunpack.c.h.b16 %v2380
      %v2471 = vunpack.c.l.b16 %v2381
      %v2472 = vunpack.c.l.b16 %v2382
      %v2473 = vunpack.c.h.b16 %v2382
      %v2474 = vunpack.c.l.b16 %v2383
      %v2475 = vunpack.c.l.b16 %v2384
      %v2476 = vunpack.c.h.b16 %v2384
      %v2477 = vunpack.c.l.b16 %v2385
      %v2478 = vunpack.c.l.b16 %v2386
      %v2479 = vunpack.c.h.b16 %v2386
      %v2480 = vunpack.c.l.b16 %v2387
      %v2481 = vunpack.c.l.b16 %v2388
      %v2482 = vunpack.c.h.b16 %v2388
      %v2483 = vunpack.c.l.b16 %v2389
      %v2484 = vunpack.c.l.b16 %v2390
      %v2485 = vunpack.c.h.b16 %v2390
      %v2486 = vunpack.c.l.b16 %v2391
      %v2487 = vunpack.c.l.b16 %v2392
      %v2488 = vunpack.c.h.b16 %v2392
      %v2489 = vunpack.c.l.b16 %v2393
      %v2490 = vunpack.c.l.b16 %v2394
      %v2491 = vunpack.c.h.b16 %v2394
      %v2492 = vunpack.c.l.b16 %v2395
      %v2493 = vunpack.c.l.b16 %v2396
      %v2494 = vunpack.c.h.b16 %v2396
      %v2495 = vunpack.c.l.b16 %v2397
      %v2496 = vunpack.c.l.b16 %v2398
      %v2497 = vunpack.c.h.b16 %v2398
      %v2498 = vunpack.c.l.b16 %v2399
      %v2499 = vunpack.c.l.b16 %v2400
      %v2500 = vunpack.c.h.b16 %v2400
      %v2501 = vunpack.c.l.b16 %v2401
      %v2502 = vunpack.c.l.b16 %v2402
      %v2503 = vunpack.c.h.b16 %v2402
      %v2504 = vunpack.c.l.b16 %v2403
      %v2505 = vunpack.c.l.b16 %v2404
      %v2506 = vunpack.c.h.b16 %v2404
      %v2507 = vunpack.c.l.b16 %v2405
      %v2508 = vunpack.c.l.b16 %v2406
      %v2509 = vunpack.c.h.b16 %v2406
      %v2510 = vunpack.c.l.b16 %v2407
      %v2511 = vunpack.c.l.b16 %v2408
      %v2512 = vunpack.c.h.b16 %v2408
      %v2513 = vunpack.c.l.b16 %v2409
      %v2514 = vpack.c.b16 %v2469, %v2466
      %v2515 = vpack.c.b16 %v2470, %v2467
      %v2516 = vpack.c.b16 %v2471, %v2468
      %v2517 = vpack.c.b16 %v2475, %v2472
      %v2518 = vpack.c.b16 %v2476, %v2473
      %v2519 = vpack.c.b16 %v2477, %v2474
      %v2520 = vpack.c.b16 %v2481, %v2478
      %v2521 = vpack.c.b16 %v2482, %v2479
      %v2522 = vpack.c.b16 %v2483, %v2480
      %v2523 = vpack.c.b16 %v2487, %v2484
      %v2524 = vpack.c.b16 %v2488, %v2485
      %v2525 = vpack.c.b16 %v2489, %v2486
      %v2526 = vpack.c.b16 %v2493, %v2490
      %v2527 = vpack.c.b16 %v2494, %v2491
      %v2528 = vpack.c.b16 %v2495, %v2492
      %v2529 = vpack.c.b16 %v2499, %v2496
      %v2530 = vpack.c.b16 %v2500, %v2497
      %v2531 = vpack.c.b16 %v2501, %v2498
      %v2532 = vpack.c.b16 %v2505, %v2502
      %v2533 = vpack.c.b16 %v2506, %v2503
      %v2534 = vpack.c.b16 %v2507, %v2504
      %v2535 = vpack.c.b16 %v2511, %v2508
      %v2536 = vpack.c.b16 %v2512, %v2509
      %v2537 = vpack.c.b16 %v2513, %v2510
      %2562 = vmatprep.subr.bf16.mxu0 %v2515
      %2563 = vmatpush1.bf16.msra.mxu0 %v2514
      %2564 = vmatprep.subr.bf16.mxu0 %v2518
      %2565 = vmatpush1.bf16.msra.mxu0 %v2517
      %2566 = vmatprep.subr.bf16.mxu0 %v2521
      %2567 = vmatpush1.bf16.msra.mxu0 %v2520
      %2568 = vmatprep.subr.bf16.mxu0 %v2524
      %2569 = vmatpush1.bf16.msra.mxu0 %v2523
      %2570 = vmatprep.subr.bf16.mxu0 %v2527
      %2571 = vmatpush1.bf16.msra.mxu0 %v2526
      %2572 = vmatprep.subr.bf16.mxu0 %v2530
      %2573 = vmatpush1.bf16.msra.mxu0 %v2529
      %2574 = vmatprep.subr.bf16.mxu0 %v2533
      %2575 = vmatpush1.bf16.msra.mxu0 %v2532
      %2576 = vmatprep.subr.bf16.mxu0 %v2536
      %2577 = vmatpush1.bf16.msra.mxu0 %v2535
      %2578 = vmatprep.subr.bf16.mxu0 0
      %2579 = vmatpush1.bf16.msra.mxu0 0
      %2580 = vmatprep.subr.bf16.mxu0 0
      %2581 = vmatpush1.bf16.msra.mxu0 0
      %2582 = vmatprep.subr.bf16.mxu0 0
      %2583 = vmatpush1.bf16.msra.mxu0 0
      %2584 = vmatprep.subr.bf16.mxu0 0
      %2585 = vmatpush1.bf16.msra.mxu0 0
      %2586 = vmatprep.subr.bf16.mxu0 0
      %2587 = vmatpush1.bf16.msra.mxu0 0
      %2588 = vmatprep.subr.bf16.mxu0 0
      %2589 = vmatpush1.bf16.msra.mxu0 0
      %2590 = vmatprep.subr.bf16.mxu0 0
      %2591 = vmatpush1.bf16.msra.mxu0 0
      %2592 = vmatprep.subr.bf16.mxu0 0
      %2593 = vmatpush1.bf16.msra.mxu0 0
      %2594 = vmatprep.mubr.bf16.mxu0 0
      %2595 = vmatmul.mubr.bf16.gmra.mrb[0].mxu0 %v2417
      %v2596 = vpop.f32.mrb[0].mxu0
      %v2597 = vadd.f32 %v2422, %v2596
      %v2598 = vpop.f32.mrb[0].mxu0
      %v2599 = vadd.f32 %v2426, %v2598
      %v2600 = vpop.f32.mrb[0].mxu0
      %v2601 = vpop.f32.mrb[0].mxu0
      %2602 = vdwg.mxu0
      %2603 = vmatprep.subr.bf16.mxu0 0
      %2604 = vmatpush1.bf16.msra.mxu0 %v2516
      %2605 = vmatprep.subr.bf16.mxu0 0
      %2606 = vmatpush1.bf16.msra.mxu0 %v2519
      %2607 = vmatprep.subr.bf16.mxu0 0
      %2608 = vmatpush1.bf16.msra.mxu0 %v2522
      %2609 = vmatprep.subr.bf16.mxu0 0
      %2610 = vmatpush1.bf16.msra.mxu0 %v2525
      %2611 = vmatprep.subr.bf16.mxu0 0
      %2612 = vmatpush1.bf16.msra.mxu0 %v2528
      %2613 = vmatprep.subr.bf16.mxu0 0
      %2614 = vmatpush1.bf16.msra.mxu0 %v2531
      %2615 = vmatprep.subr.bf16.mxu0 0
      %2616 = vmatpush1.bf16.msra.mxu0 %v2534
      %2617 = vmatprep.subr.bf16.mxu0 0
      %2618 = vmatpush1.bf16.msra.mxu0 %v2537
      %2619 = vmatprep.subr.bf16.mxu0 0
      %2620 = vmatpush1.bf16.msra.mxu0 0
      %2621 = vmatprep.subr.bf16.mxu0 0
      %2622 = vmatpush1.bf16.msra.mxu0 0
      %2623 = vmatprep.subr.bf16.mxu0 0
      %2624 = vmatpush1.bf16.msra.mxu0 0
      %2625 = vmatprep.subr.bf16.mxu0 0
      %2626 = vmatpush1.bf16.msra.mxu0 0
      %2627 = vmatprep.subr.bf16.mxu0 0
      %2628 = vmatpush1.bf16.msra.mxu0 0
      %2629 = vmatprep.subr.bf16.mxu0 0
      %2630 = vmatpush1.bf16.msra.mxu0 0
      %2631 = vmatprep.subr.bf16.mxu0 0
      %2632 = vmatpush1.bf16.msra.mxu0 0
      %2633 = vmatprep.subr.bf16.mxu0 0
      %2634 = vmatpush1.bf16.msra.mxu0 0
      %2635 = vmatprep.mubr.bf16.mxu0 0
      %2636 = vmatmul.mubr.bf16.gmra.mrb[0].mxu0 %v2417
      %v2637 = vpop.f32.mrb[0].mxu0
      %v2638 = vadd.f32 %v2430, %v2637
      %v2639 = vpop.f32.mrb[0].mxu0
      %v2640 = vpop.f32.mrb[0].mxu0
      %v2641 = vpop.f32.mrb[0].mxu0
      %2642 = vdwg.mxu0
      %v2643 = vadd.f32 %v2414, %v2597
      %v2644 = vmul.f32 %v2643, 0.5
      %v2645 = vtanh.pop %v2644
      %v2646 = vmul.f32 %v2645, 0.5
      %v2647 = vadd.f32 %v2646, 0.5
      %v2648 = vadd.f32 %v2415, %v2599
      %v2649 = vmul.f32 %v2648, 0.5
      %v2650 = vtanh.pop %v2649
      %v2651 = vmul.f32 %v2650, 0.5
      %v2652 = vadd.f32 %v2651, 0.5
      %v2653 = vmul.f32 %v2647, %v2638
      %v2654 = vadd.f32 %v2416, %v2653
      %v2655 = vtanh.pop %v2654
      %v2656 = vsub.f32 1.0, %v2652
      %v2657 = vmul.f32 %v2656, %v2655
      %v2658 = vmul.f32 %v2652, %v2413
      %v2659 = vadd.f32 %v2657, %v2658
      %2660 = vst [vmem:[#allocation4] sm:$0xff] %v2659
      %v2661 = vld [vmem:[%s845] sm:$0xff]
      %v2662 = vld [vmem:[%s845 + $0x8] sm:$0xff]
      %v2663 = vld [vmem:[%s845 + $0x10] sm:$0xff]
      %v2664 = vpack.c.bf16 %v2659, %v2659
      %2665 = vmatprep.subr.bf16.mxu0 %v2515
      %2666 = vmatpush1.bf16.msra.mxu0 %v2514
      %2667 = vmatprep.subr.bf16.mxu0 %v2518
      %2668 = vmatpush1.bf16.msra.mxu0 %v2517
      %2669 = vmatprep.subr.bf16.mxu0 %v2521
      %2670 = vmatpush1.bf16.msra.mxu0 %v2520
      %2671 = vmatprep.subr.bf16.mxu0 %v2524
      %2672 = vmatpush1.bf16.msra.mxu0 %v2523
      %2673 = vmatprep.subr.bf16.mxu0 %v2527
      %2674 = vmatpush1.bf16.msra.mxu0 %v2526
      %2675 = vmatprep.subr.bf16.mxu0 %v2530
      %2676 = vmatpush1.bf16.msra.mxu0 %v2529
      %2677 = vmatprep.subr.bf16.mxu0 %v2533
      %2678 = vmatpush1.bf16.msra.mxu0 %v2532
      %2679 = vmatprep.subr.bf16.mxu0 %v2536
      %2680 = vmatpush1.bf16.msra.mxu0 %v2535
      %2681 = vmatprep.subr.bf16.mxu0 0
      %2682 = vmatpush1.bf16.msra.mxu0 0
      %2683 = vmatprep.subr.bf16.mxu0 0
      %2684 = vmatpush1.bf16.msra.mxu0 0
      %2685 = vmatprep.subr.bf16.mxu0 0
      %2686 = vmatpush1.bf16.msra.mxu0 0
      %2687 = vmatprep.subr.bf16.mxu0 0
      %2688 = vmatpush1.bf16.msra.mxu0 0
      %2689 = vmatprep.subr.bf16.mxu0 0
      %2690 = vmatpush1.bf16.msra.mxu0 0
      %2691 = vmatprep.subr.bf16.mxu0 0
      %2692 = vmatpush1.bf16.msra.mxu0 0
      %2693 = vmatprep.subr.bf16.mxu0 0
      %2694 = vmatpush1.bf16.msra.mxu0 0
      %2695 = vmatprep.subr.bf16.mxu0 0
      %2696 = vmatpush1.bf16.msra.mxu0 0
      %2697 = vmatprep.mubr.bf16.mxu0 0
      %2698 = vmatmul.mubr.bf16.gmra.mrb[0].mxu0 %v2664
      %v2699 = vpop.f32.mrb[0].mxu0
      %v2700 = vadd.f32 %v2422, %v2699
      %v2701 = vpop.f32.mrb[0].mxu0
      %v2702 = vadd.f32 %v2426, %v2701
      %v2703 = vpop.f32.mrb[0].mxu0
      %v2704 = vpop.f32.mrb[0].mxu0
      %2705 = vdwg.mxu0
      %2706 = vmatprep.subr.bf16.mxu0 0
      %2707 = vmatpush1.bf16.msra.mxu0 %v2516
      %2708 = vmatprep.subr.bf16.mxu0 0
      %2709 = vmatpush1.bf16.msra.mxu0 %v2519
      %2710 = vmatprep.subr.bf16.mxu0 0
      %2711 = vmatpush1.bf16.msra.mxu0 %v2522
      %2712 = vmatprep.subr.bf16.mxu0 0
      %2713 = vmatpush1.bf16.msra.mxu0 %v2525
      %2714 = vmatprep.subr.bf16.mxu0 0
      %2715 = vmatpush1.bf16.msra.mxu0 %v2528
      %2716 = vmatprep.subr.bf16.mxu0 0
      %2717 = vmatpush1.bf16.msra.mxu0 %v2531
      %2718 = vmatprep.subr.bf16.mxu0 0
      %2719 = vmatpush1.bf16.msra.mxu0 %v2534
      %2720 = vmatprep.subr.bf16.mxu0 0
      %2721 = vmatpush1.bf16.msra.mxu0 %v2537
      %2722 = vmatprep.subr.bf16.mxu0 0
      %2723 = vmatpush1.bf16.msra.mxu0 0
      %2724 = vmatprep.subr.bf16.mxu0 0
      %2725 = vmatpush1.bf16.msra.mxu0 0
      %2726 = vmatprep.subr.bf16.mxu0 0
      %2727 = vmatpush1.bf16.msra.mxu0 0
      %2728 = vmatprep.subr.bf16.mxu0 0
      %2729 = vmatpush1.bf16.msra.mxu0 0
      %2730 = vmatprep.subr.bf16.mxu0 0
      %2731 = vmatpush1.bf16.msra.mxu0 0
      %2732 = vmatprep.subr.bf16.mxu0 0
      %2733 = vmatpush1.bf16.msra.mxu0 0
      %2734 = vmatprep.subr.bf16.mxu0 0
      %2735 = vmatpush1.bf16.msra.mxu0 0
      %2736 = vmatprep.subr.bf16.mxu0 0
      %2737 = vmatpush1.bf16.msra.mxu0 0
      %2738 = vmatprep.mubr.bf16.mxu0 0
      %2739 = vmatmul.mubr.bf16.gmra.mrb[0].mxu0 %v2664
      %v2740 = vpop.f32.mrb[0].mxu0
      %v2741 = vadd.f32 %v2430, %v2740
      %v2742 = vpop.f32.mrb[0].mxu0
      %v2743 = vpop.f32.mrb[0].mxu0
      %v2744 = vpop.f32.mrb[0].mxu0
      %2745 = vdwg.mxu0
      %v2746 = vadd.f32 %v2661, %v2700
      %v2747 = vmul.f32 %v2746, 0.5
      %v2748 = vtanh.pop %v2747
      %v2749 = vmul.f32 %v2748, 0.5
      %v2750 = vadd.f32 %v2749, 0.5
      %v2751 = vadd.f32 %v2662, %v2702
      %v2752 = vmul.f32 %v2751, 0.5
      %v2753 = vtanh.pop %v2752
      %v2754 = vmul.f32 %v2753, 0.5
      %v2755 = vadd.f32 %v2754, 0.5
      %v2756 = vmul.f32 %v2750, %v2741
      %v2757 = vadd.f32 %v2663, %v2756
      %v2758 = vtanh.pop %v2757
      %v2759 = vsub.f32 1.0, %v2755
      %v2760 = vmul.f32 %v2759, %v2758
      %v2761 = vmul.f32 %v2755, %v2659
      %v2762 = vadd.f32 %v2760, %v2761
      %2763 = vst [vmem:[%s948] sm:$0xff] %v2762
      %v2764 = vld [vmem:[%s950] sm:$0xff]
      %v2765 = vld [vmem:[%s950 + $0x8] sm:$0xff]
      %v2766 = vld [vmem:[%s950 + $0x10] sm:$0xff]
      %v2767 = vpack.c.bf16 %v2762, %v2762
      %2768 = vmatprep.subr.bf16.mxu0 %v2515
      %2769 = vmatpush1.bf16.msra.mxu0 %v2514
      %2770 = vmatprep.subr.bf16.mxu0 %v2518
      %2771 = vmatpush1.bf16.msra.mxu0 %v2517
      %2772 = vmatprep.subr.bf16.mxu0 %v2521
      %2773 = vmatpush1.bf16.msra.mxu0 %v2520
      %2774 = vmatprep.subr.bf16.mxu0 %v2524
      %2775 = vmatpush1.bf16.msra.mxu0 %v2523
      %2776 = vmatprep.subr.bf16.mxu0 %v2527
      %2777 = vmatpush1.bf16.msra.mxu0 %v2526
      %2778 = vmatprep.subr.bf16.mxu0 %v2530
      %2779 = vmatpush1.bf16.msra.mxu0 %v2529
      %2780 = vmatprep.subr.bf16.mxu0 %v2533
      %2781 = vmatpush1.bf16.msra.mxu0 %v2532
      %2782 = vmatprep.subr.bf16.mxu0 %v2536
      %2783 = vmatpush1.bf16.msra.mxu0 %v2535
      %2784 = vmatprep.subr.bf16.mxu0 0
      %2785 = vmatpush1.bf16.msra.mxu0 0
      %2786 = vmatprep.subr.bf16.mxu0 0
      %2787 = vmatpush1.bf16.msra.mxu0 0
      %2788 = vmatprep.subr.bf16.mxu0 0
      %2789 = vmatpush1.bf16.msra.mxu0 0
      %2790 = vmatprep.subr.bf16.mxu0 0
      %2791 = vmatpush1.bf16.msra.mxu0 0
      %2792 = vmatprep.subr.bf16.mxu0 0
      %2793 = vmatpush1.bf16.msra.mxu0 0
      %2794 = vmatprep.subr.bf16.mxu0 0
      %2795 = vmatpush1.bf16.msra.mxu0 0
      %2796 = vmatprep.subr.bf16.mxu0 0
      %2797 = vmatpush1.bf16.msra.mxu0 0
      %2798 = vmatprep.subr.bf16.mxu0 0
      %2799 = vmatpush1.bf16.msra.mxu0 0
      %2800 = vmatprep.mubr.bf16.mxu0 0
      %2801 = vmatmul.mubr.bf16.gmra.mrb[0].mxu0 %v2767
      %v2802 = vpop.f32.mrb[0].mxu0
      %v2803 = vadd.f32 %v2422, %v2802
      %v2804 = vpop.f32.mrb[0].mxu0
      %v2805 = vadd.f32 %v2426, %v2804
      %v2806 = vpop.f32.mrb[0].mxu0
      %v2807 = vpop.f32.mrb[0].mxu0
      %2808 = vdwg.mxu0
      %2809 = vmatprep.subr.bf16.mxu0 0
      %2810 = vmatpush1.bf16.msra.mxu0 %v2516
      %2811 = vmatprep.subr.bf16.mxu0 0
      %2812 = vmatpush1.bf16.msra.mxu0 %v2519
      %2813 = vmatprep.subr.bf16.mxu0 0
      %2814 = vmatpush1.bf16.msra.mxu0 %v2522
      %2815 = vmatprep.subr.bf16.mxu0 0
      %2816 = vmatpush1.bf16.msra.mxu0 %v2525
      %2817 = vmatprep.subr.bf16.mxu0 0
      %2818 = vmatpush1.bf16.msra.mxu0 %v2528
      %2819 = vmatprep.subr.bf16.mxu0 0
      %2820 = vmatpush1.bf16.msra.mxu0 %v2531
      %2821 = vmatprep.subr.bf16.mxu0 0
      %2822 = vmatpush1.bf16.msra.mxu0 %v2534
      %2823 = vmatprep.subr.bf16.mxu0 0
      %2824 = vmatpush1.bf16.msra.mxu0 %v2537
      %2825 = vmatprep.subr.bf16.mxu0 0
      %2826 = vmatpush1.bf16.msra.mxu0 0
      %2827 = vmatprep.subr.bf16.mxu0 0
      %2828 = vmatpush1.bf16.msra.mxu0 0
      %2829 = vmatprep.subr.bf16.mxu0 0
      %2830 = vmatpush1.bf16.msra.mxu0 0
      %2831 = vmatprep.subr.bf16.mxu0 0
      %2832 = vmatpush1.bf16.msra.mxu0 0
      %2833 = vmatprep.subr.bf16.mxu0 0
      %2834 = vmatpush1.bf16.msra.mxu0 0
      %2835 = vmatprep.subr.bf16.mxu0 0
      %2836 = vmatpush1.bf16.msra.mxu0 0
      %2837 = vmatprep.subr.bf16.mxu0 0
      %2838 = vmatpush1.bf16.msra.mxu0 0
      %2839 = vmatprep.subr.bf16.mxu0 0
      %2840 = vmatpush1.bf16.msra.mxu0 0
      %2841 = vmatprep.mubr.bf16.mxu0 0
      %2842 = vmatmul.mubr.bf16.gmra.mrb[0].mxu0 %v2767
      %v2843 = vpop.f32.mrb[0].mxu0
      %v2844 = vadd.f32 %v2430, %v2843
      %v2845 = vpop.f32.mrb[0].mxu0
      %v2846 = vpop.f32.mrb[0].mxu0
      %v2847 = vpop.f32.mrb[0].mxu0
      %2848 = vdwg.mxu0
      %v2849 = vadd.f32 %v2764, %v2803
      %v2850 = vmul.f32 %v2849, 0.5
      %v2851 = vtanh.pop %v2850
      %v2852 = vmul.f32 %v2851, 0.5
      %v2853 = vadd.f32 %v2852, 0.5
      %v2854 = vadd.f32 %v2765, %v2805
      %v2855 = vmul.f32 %v2854, 0.5
      %v2856 = vtanh.pop %v2855
      %v2857 = vmul.f32 %v2856, 0.5
      %v2858 = vadd.f32 %v2857, 0.5
      %v2859 = vmul.f32 %v2853, %v2844
      %v2860 = vadd.f32 %v2766, %v2859
      %v2861 = vtanh.pop %v2860
      %v2862 = vsub.f32 1.0, %v2858
      %v2863 = vmul.f32 %v2862, %v2861
      %v2864 = vmul.f32 %v2858, %v2762
      %v2865 = vadd.f32 %v2863, %v2864
      %2866 = vst [vmem:[%s1053] sm:$0xff] %v2865
      %v2867 = vld [vmem:[%s1055] sm:$0xff]
      %v2868 = vld [vmem:[%s1055 + $0x8] sm:$0xff]
      %v2869 = vld [vmem:[%s1055 + $0x10] sm:$0xff]
      %v2870 = vpack.c.bf16 %v2865, %v2865
      %2871 = vmatprep.subr.bf16.mxu0 %v2515
      %2872 = vmatpush1.bf16.msra.mxu0 %v2514
      %2873 = vmatprep.subr.bf16.mxu0 %v2518
      %2874 = vmatpush1.bf16.msra.mxu0 %v2517
      %2875 = vmatprep.subr.bf16.mxu0 %v2521
      %2876 = vmatpush1.bf16.msra.mxu0 %v2520
      %2877 = vmatprep.subr.bf16.mxu0 %v2524
      %2878 = vmatpush1.bf16.msra.mxu0 %v2523
      %2879 = vmatprep.subr.bf16.mxu0 %v2527
      %2880 = vmatpush1.bf16.msra.mxu0 %v2526
      %2881 = vmatprep.subr.bf16.mxu0 %v2530
      %2882 = vmatpush1.bf16.msra.mxu0 %v2529
      %2883 = vmatprep.subr.bf16.mxu0 %v2533
      %2884 = vmatpush1.bf16.msra.mxu0 %v2532
      %2885 = vmatprep.subr.bf16.mxu0 %v2536
      %2886 = vmatpush1.bf16.msra.mxu0 %v2535
      %2887 = vmatprep.subr.bf16.mxu0 0
      %2888 = vmatpush1.bf16.msra.mxu0 0
      %2889 = vmatprep.subr.bf16.mxu0 0
      %2890 = vmatpush1.bf16.msra.mxu0 0
      %2891 = vmatprep.subr.bf16.mxu0 0
      %2892 = vmatpush1.bf16.msra.mxu0 0
      %2893 = vmatprep.subr.bf16.mxu0 0
      %2894 = vmatpush1.bf16.msra.mxu0 0
      %2895 = vmatprep.subr.bf16.mxu0 0
      %2896 = vmatpush1.bf16.msra.mxu0 0
      %2897 = vmatprep.subr.bf16.mxu0 0
      %2898 = vmatpush1.bf16.msra.mxu0 0
      %2899 = vmatprep.subr.bf16.mxu0 0
      %2900 = vmatpush1.bf16.msra.mxu0 0
      %2901 = vmatprep.subr.bf16.mxu0 0
      %2902 = vmatpush1.bf16.msra.mxu0 0
      %2903 = vmatprep.mubr.bf16.mxu0 0
      %2904 = vmatmul.mubr.bf16.gmra.mrb[0].mxu0 %v2870
      %v2905 = vpop.f32.mrb[0].mxu0
      %v2906 = vadd.f32 %v2422, %v2905
      %v2907 = vpop.f32.mrb[0].mxu0
      %v2908 = vadd.f32 %v2426, %v2907
      %v2909 = vpop.f32.mrb[0].mxu0
      %v2910 = vpop.f32.mrb[0].mxu0
      %2911 = vdwg.mxu0
      %2912 = vmatprep.subr.bf16.mxu0 0
      %2913 = vmatpush1.bf16.msra.mxu0 %v2516
      %2914 = vmatprep.subr.bf16.mxu0 0
      %2915 = vmatpush1.bf16.msra.mxu0 %v2519
      %2916 = vmatprep.subr.bf16.mxu0 0
      %2917 = vmatpush1.bf16.msra.mxu0 %v2522
      %2918 = vmatprep.subr.bf16.mxu0 0
      %2919 = vmatpush1.bf16.msra.mxu0 %v2525
      %2920 = vmatprep.subr.bf16.mxu0 0
      %2921 = vmatpush1.bf16.msra.mxu0 %v2528
      %2922 = vmatprep.subr.bf16.mxu0 0
      %2923 = vmatpush1.bf16.msra.mxu0 %v2531
      %2924 = vmatprep.subr.bf16.mxu0 0
      %2925 = vmatpush1.bf16.msra.mxu0 %v2534
      %2926 = vmatprep.subr.bf16.mxu0 0
      %2927 = vmatpush1.bf16.msra.mxu0 %v2537
      %2928 = vmatprep.subr.bf16.mxu0 0
      %2929 = vmatpush1.bf16.msra.mxu0 0
      %2930 = vmatprep.subr.bf16.mxu0 0
      %2931 = vmatpush1.bf16.msra.mxu0 0
      %2932 = vmatprep.subr.bf16.mxu0 0
      %2933 = vmatpush1.bf16.msra.mxu0 0
      %2934 = vmatprep.subr.bf16.mxu0 0
      %2935 = vmatpush1.bf16.msra.mxu0 0
      %2936 = vmatprep.subr.bf16.mxu0 0
      %2937 = vmatpush1.bf16.msra.mxu0 0
      %2938 = vmatprep.subr.bf16.mxu0 0
      %2939 = vmatpush1.bf16.msra.mxu0 0
      %2940 = vmatprep.subr.bf16.mxu0 0
      %2941 = vmatpush1.bf16.msra.mxu0 0
      %2942 = vmatprep.subr.bf16.mxu0 0
      %2943 = vmatpush1.bf16.msra.mxu0 0
      %2944 = vmatprep.mubr.bf16.mxu0 0
      %2945 = vmatmul.mubr.bf16.gmra.mrb[0].mxu0 %v2870
      %v2946 = vpop.f32.mrb[0].mxu0
      %v2947 = vadd.f32 %v2430, %v2946
      %v2948 = vpop.f32.mrb[0].mxu0
      %v2949 = vpop.f32.mrb[0].mxu0
      %v2950 = vpop.f32.mrb[0].mxu0
      %2951 = vdwg.mxu0
      %v2952 = vadd.f32 %v2867, %v2906
      %v2953 = vmul.f32 %v2952, 0.5
      %v2954 = vtanh.pop %v2953
      %v2955 = vmul.f32 %v2954, 0.5
      %v2956 = vadd.f32 %v2955, 0.5
      %v2957 = vadd.f32 %v2868, %v2908
      %v2958 = vmul.f32 %v2957, 0.5
      %v2959 = vtanh.pop %v2958
      %v2960 = vmul.f32 %v2959, 0.5
      %v2961 = vadd.f32 %v2960, 0.5
      %v2962 = vmul.f32 %v2956, %v2947
      %v2963 = vadd.f32 %v2869, %v2962
      %v2964 = vtanh.pop %v2963
      %v2965 = vsub.f32 1.0, %v2961
      %v2966 = vmul.f32 %v2965, %v2964
      %v2967 = vmul.f32 %v2961, %v2865
      %v2968 = vadd.f32 %v2966, %v2967
      %2969 = vst [vmem:[%s1158] sm:$0xff] %v2968
      %2970 = vst [vmem:[%s2412] sm:$0xff] %v2968
      %v2971 = vld [vmem:[%s257] sm:$0xff]
      %v2972 = vld [vmem:[%s257 + $0x8] sm:$0xff]
      %v2973 = vld [vmem:[%s257 + $0x10] sm:$0xff]
      %v2974 = vld [vmem:[%s257 + $0x18] sm:$0xff]
      %v2975 = vld [vmem:[#allocation4] sm:$0xff]
      %v2976 = vld [vmem:[#allocation4 + $0x8] sm:$0xff]
      %v2977 = vld [vmem:[#allocation4 + $0x10] sm:$0xff]
      %v2978 = vld [vmem:[#allocation4 + $0x18] sm:$0xff]
      %v2979 = vadd.f32 %v2971, %v2975
      %v2980 = vadd.f32 %v2972, %v2976
      %v2981 = vadd.f32 %v2973, %v2977
      %v2982 = vadd.f32 %v2974, %v2978
      %2983 = vst [vmem:[%s257] sm:$0xff] %v2979
      %2984 = vst [vmem:[%s257 + $0x8] sm:$0xff] %v2980
      %2985 = vst [vmem:[%s257 + $0x10] sm:$0xff] %v2981
      %2986 = vst [vmem:[%s257 + $0x18] sm:$0xff] %v2982
      %s2987 = smul.u32 4, %s21
      %p2988 = scmp.lt.s32.totalorder %s2987, 7
      %s2989 = scalar_select %p2988, %s2987, 7
      %p2990 = scmp.lt.s32.totalorder %s20, 0
      %s2991 = scalar_select %p2990, %s20, 0
      %s2992 = sadd.s32 %s2991, %s2989
      %s2993 = smul.addr %s2992, 8
      %s2994 = scalar_lea.vmem %s5, %s2993
      // Predicated region
      $region45: #{df_decoder_forward.4} parent=39 // pred_check
        %p2995 = pneg %p160
      $region46: #{df_decoder_forward.4} parent=39 // pred_check_branch
        %2997 = sbr.rel (%p2995) target = $region48
      $region47: #{df_decoder_forward.4} parent=39 // pred_region
        %s2998 = smul.u32 4, %s21
      $region48: #{df_decoder_forward.4} parent=39 // pred_fallthru
        _
    $region40: #{df_decoder_forward.4} parent=5 // pred_fallthru
      _
    %p2999 = scmp.le.s32.totalorder 2, %s11
    // Predicated region
    $region49: #{df_decoder_forward.4} parent=5 // pred_check
      %p3000 = pneg %p2999
    $region50: #{df_decoder_forward.4} parent=5 // pred_check_branch
      %3002 = sbr.rel (%p3000) target = $region52
    $region51: #{df_decoder_forward.4} parent=5 // pred_region
      %s3003 = ssub.s32 %s11, 2
      // Predicated region
      $region53: #{df_decoder_forward.4} parent=51 // pred_check
        %p3004 = pneg %p166
      $region54: #{df_decoder_forward.4} parent=51 // pred_check_branch
        %3006 = sbr.rel (%p3004) target = $region56
      $region55: #{df_decoder_forward.4} parent=51 // pred_region
        %s3007 = smul.u32 4, %s23
        %p3008 = scmp.lt.s32.totalorder %s3007, 7
        %s3009 = scalar_select %p3008, %s3007, 7
        %p3010 = scmp.lt.s32.totalorder %s22, 0
        %s3011 = scalar_select %p3010, %s22, 0
        %s3012 = sadd.s32 %s3011, %s3009
        %s3013 = smul.addr %s3012, 8
        %s3014 = scalar_lea.vmem %s5, %s3013
      $region56: #{df_decoder_forward.4} parent=51 // pred_fallthru
        _
    $region52: #{df_decoder_forward.4} parent=5 // pred_fallthru
      _
  $region6: #{df_decoder_forward.4} parent=0 // loop_footer
    %s15 = sadd.s32 1, %s11
  $region7: #{df_decoder_forward.4} parent=0 // loop_footer_branch
    %10 = sbr.rel target = $region3
  $region8: #{df_decoder_forward.4} parent=0 // loop_exit
    _

</llo_original>
